<compile_context>
chip_gen: v6e
topology: v6e:2x2x1
jax: 0.10.0
libtpu: 0.0.40
codegen_flags: <defaults>
</compile_context>

<pallas_src>
import functools

import jax
import jax.numpy as jnp
from jax import lax
from jax.experimental import pallas as pl
from jax.experimental.pallas import tpu as pltpu

# ---- "vocab" / model config (synthetic, deterministic) ----------------------
INP_VOCAB = 16
OUT_VOCAB = 16
EMB_SIZE = 32
HID_SIZE = 32
BOS_IX = 0
EOS_IX = 1


# ---- fully fused forward kernel ----------------------------------------------
def _fused_seq2seq_kernel(inp_tok_ref, out_tok_ref,
                          emb_inp_ref, emb_out_ref,
                          enc_wih_ref, enc_whh_ref, enc_bih_ref, enc_bhh_ref,
                          ds_w_ref, ds_b_ref,
                          dec_wih_ref, dec_whh_ref, dec_bih_ref, dec_bhh_ref,
                          log_w_ref, log_b_ref,
                          logits_ref):
    f32 = jnp.float32
    B, Tin = inp_tok_ref.shape
    Tout = out_tok_ref.shape[1]
    Tm1 = Tout - 1
    Vi, E = emb_inp_ref.shape
    Vo = emb_out_ref.shape[0]
    H = enc_whh_ref.shape[0]

    # ---------------- encoder (nn.GRU, batch_first, h0 = 0) ----------------
    itok = inp_tok_ref[...]                                               # [B, Tin] int32
    # embedding lookup as one-hot matmul (exact; avoids XLA gather + transposes)
    oh_in = (itok[:, :, None] ==
             lax.broadcasted_iota(jnp.int32, (B, Tin, Vi), 2)).astype(f32)
    x_in = jnp.dot(oh_in.reshape(B * Tin, Vi), emb_inp_ref[...],
                   preferred_element_type=f32)                            # [B*Tin, E]
    # hoisted input projection for the whole sequence: ONE matmul (+ bias folded in)
    gi_enc = (jnp.dot(x_in, enc_wih_ref[...], preferred_element_type=f32)
              + enc_bih_ref[...]).reshape(B, Tin, 3 * H)                  # [B, Tin, 3H]

    whh_e = enc_whh_ref[...]
    bhh_e = jnp.broadcast_to(enc_bhh_ref[...], (B, 3 * H))                # hoisted broadcast

    # lengths = clamp(#non-EOS tokens, max=Tin-1), computed in-kernel
    lengths = jnp.minimum(
        jnp.sum((itok != EOS_IX).astype(jnp.int32), axis=1, keepdims=True),
        Tin - 1)                                                          # [B, 1]

    h = jnp.zeros((B, H), f32)
    last = jnp.zeros((B, H), f32)
    for t in range(Tin):                                                  # static unroll
        gi = gi_enc[:, t, :]                                              # [B, 3H]
        gh = jnp.dot(h, whh_e, preferred_element_type=f32) + bhh_e
        rz = jax.nn.sigmoid(gi[:, :2 * H] + gh[:, :2 * H])                # shared r/z slab
        r = rz[:, :H]
        z = rz[:, H:]
        n = jnp.tanh(gi[:, 2 * H:] + r * gh[:, 2 * H:])
        h = (1.0 - z) * n + z * h
        # in-kernel last-state selection: enc_seq[b, lengths[b]]
        last = jnp.where(lengths == t, h, last)

    # ---------------- dec_start (Linear) ----------------
    h = jnp.dot(last, ds_w_ref[...], preferred_element_type=f32) + ds_b_ref[...]

    # ---------------- decoder (GRUCell, teacher forcing over out[:, :-1]) ----------------
    otok = out_tok_ref[...]                                               # [B, Tout] int32
    oh_out = (otok[:, :, None] ==
              lax.broadcasted_iota(jnp.int32, (B, Tout, Vo), 2)).astype(f32)
    y = jnp.dot(oh_out.reshape(B * Tout, Vo), emb_out_ref[...],
                preferred_element_type=f32)                               # [B*Tout, E]
    # (compute all Tout positions in one matmul; only the first Tout-1 are used)
    gi_dec = (jnp.dot(y, dec_wih_ref[...], preferred_element_type=f32)
              + dec_bih_ref[...]).reshape(B, Tout, 3 * H)

    whh_d = dec_whh_ref[...]
    bhh_d = jnp.broadcast_to(dec_bhh_ref[...], (B, 3 * H))                # hoisted broadcast

    # register-resident stack of decoder hidden states; slot 0 is the forced-BOS slot
    t_iota_h = lax.broadcasted_iota(jnp.int32, (B, Tout, H), 1)
    hs = jnp.zeros((B, Tout, H), f32)
    for t in range(Tm1):                                                  # static unroll
        gi = gi_dec[:, t, :]
        gh = jnp.dot(h, whh_d, preferred_element_type=f32) + bhh_d
        rz = jax.nn.sigmoid(gi[:, :2 * H] + gh[:, :2 * H])
        r = rz[:, :H]
        z = rz[:, H:]
        n = jnp.tanh(gi[:, 2 * H:] + r * gh[:, 2 * H:])
        h = (1.0 - z) * n + z * h
        hs = jnp.where(t_iota_h == (t + 1), h[:, None, :], hs)

    # hoisted logits projection: ONE matmul over all steps
    logits_all = (jnp.dot(hs.reshape(B * Tout, H), log_w_ref[...],
                          preferred_element_type=f32)
                  + log_b_ref[...]).reshape(B, Tout, Vo)

    # forced BOS step: log(one_hot(bos) + 1e-9) written at position 0, then ONE bulk store
    oh_bos = (lax.broadcasted_iota(jnp.int32, (B, Vo), 1) == BOS_IX).astype(f32)
    first_logits = jnp.log(oh_bos + 1e-9)                                 # [B, Vo]
    t_iota_v = lax.broadcasted_iota(jnp.int32, (B, Tout, Vo), 1)
    logits_ref[...] = jnp.where(t_iota_v == 0, first_logits[:, None, :], logits_all)


def _vmem_spec():
    # whole-array block resident in VMEM (shapes here are tiny)
    return pl.BlockSpec(memory_space=pltpu.MemorySpace.VMEM)


@jax.jit
def forward(params, inp, out):
    """inp: [B, Tin] int tokens, out: [B, Tout] int tokens -> logits [B, Tout, OUT_VOCAB]."""
    B, _ = inp.shape
    Tout = out.shape[1]
    return pl.pallas_call(
        _fused_seq2seq_kernel,
        out_shape=jax.ShapeDtypeStruct((B, Tout, OUT_VOCAB), jnp.float32),
        in_specs=[_vmem_spec()] * 16,
        out_specs=_vmem_spec(),
    )(inp.astype(jnp.int32), out.astype(jnp.int32),
      params["emb_inp"], params["emb_out"],
      params["enc_wih"], params["enc_whh"], params["enc_bih"], params["enc_bhh"],
      params["ds_w"], params["ds_b"],
      params["dec_wih"], params["dec_whh"], params["dec_bih"], params["dec_bhh"],
      params["log_w"], params["log_b"])


# ---- deterministic parameter init (shapes follow the nn.Module __init__) -----
def init_params(key):
    H, E = HID_SIZE, EMB_SIZE
    ks = jax.random.split(key, 14)

    def w(k, shape, scale=0.1):
        return (scale * jax.random.normal(k, shape)).astype(jnp.float32)

    return {
        "emb_inp": w(ks[0], (INP_VOCAB, E)),
        "emb_out": w(ks[1], (OUT_VOCAB, E)),
        # nn.GRU(emb, hid): weights stored transposed, gate order (r, z, n)
        "enc_wih": w(ks[2], (E, 3 * H)),
        "enc_whh": w(ks[3], (H, 3 * H)),
        "enc_bih": w(ks[4], (1, 3 * H)),
        "enc_bhh": w(ks[5], (1, 3 * H)),
        # dec_start: Linear(hid, hid)
        "ds_w": w(ks[6], (H, H)),
        "ds_b": w(ks[7], (1, H)),
        # nn.GRUCell(emb, hid)
        "dec_wih": w(ks[8], (E, 3 * H)),
        "dec_whh": w(ks[9], (H, 3 * H)),
        "dec_bih": w(ks[10], (1, 3 * H)),
        "dec_bhh": w(ks[11], (1, 3 * H)),
        # logits: Linear(hid, len(out_voc))
        "log_w": w(ks[12], (H, OUT_VOCAB)),
        "log_b": w(ks[13], (1, OUT_VOCAB)),
    }


# TODO(synk): decode_inference / beam search are host-side greedy/beam loops (numpy + python lists);
#             they are not part of forward() and are not translated to Pallas.

if __name__ == "__main__":
    root = jax.random.PRNGKey(0)
    k_params, k_inp, k_out = jax.random.split(root, 3)

    params = init_params(k_params)

    B, T_IN, T_OUT = 2, 8, 8
    inp = jax.random.randint(k_inp, (B, T_IN), 0, INP_VOCAB, dtype=jnp.int32)
    out = jax.random.randint(k_out, (B, T_OUT), 0, OUT_VOCAB, dtype=jnp.int32)

    logits = forward(params, inp, out)
    logits = jax.block_until_ready(logits)

    assert logits.shape == (B, T_OUT, OUT_VOCAB), logits.shape
    assert bool(jnp.all(jnp.isfinite(logits)))
    print("KERNEL_OK")
</pallas_src>

<mosaic_0001>
module attributes {stable_mosaic.version = 11 : i64} {
  func.func @_fused_seq2seq_kernel(%arg0: memref<2x8xi32, #tpu.memory_space<vmem>>, %arg1: memref<2x8xi32, #tpu.memory_space<vmem>>, %arg2: memref<16x32xf32, #tpu.memory_space<vmem>>, %arg3: memref<16x32xf32, #tpu.memory_space<vmem>>, %arg4: memref<32x96xf32, #tpu.memory_space<vmem>>, %arg5: memref<32x96xf32, #tpu.memory_space<vmem>>, %arg6: memref<1x96xf32, #tpu.memory_space<vmem>>, %arg7: memref<1x96xf32, #tpu.memory_space<vmem>>, %arg8: memref<32x32xf32, #tpu.memory_space<vmem>>, %arg9: memref<1x32xf32, #tpu.memory_space<vmem>>, %arg10: memref<32x96xf32, #tpu.memory_space<vmem>>, %arg11: memref<32x96xf32, #tpu.memory_space<vmem>>, %arg12: memref<1x96xf32, #tpu.memory_space<vmem>>, %arg13: memref<1x96xf32, #tpu.memory_space<vmem>>, %arg14: memref<32x16xf32, #tpu.memory_space<vmem>>, %arg15: memref<1x16xf32, #tpu.memory_space<vmem>>, %arg16: memref<2x8x16xf32, #tpu.memory_space<vmem>>) attributes {dimension_semantics = [], scalar_prefetch = 0 : i64, scratch_operands = 0 : i64, tpu.core_type = #tpu.core_type<tc>} {
    %c0 = arith.constant 0 : index
    %c0_0 = arith.constant 0 : index
    %0 = vector.load %arg0[%c0, %c0_0] : memref<2x8xi32, #tpu.memory_space<vmem>>, vector<2x8xi32>
    %1 = vector.shape_cast %0 : vector<2x8xi32> to vector<2x8x1xi32>
    %2 = tpu.iota {dimensions = array<i32: 2>} : vector<2x8x16xi32>
    %3 = vector.broadcast %1 : vector<2x8x1xi32> to vector<2x8x16xi32>
    %4 = arith.cmpi eq, %3, %2 : vector<2x8x16xi32>
    %5 = arith.extui %4 : vector<2x8x16xi1> to vector<2x8x16xi32>
    %6 = arith.sitofp %5 : vector<2x8x16xi32> to vector<2x8x16xf32>
    %7 = vector.shape_cast %6 : vector<2x8x16xf32> to vector<16x16xf32>
    %c0_1 = arith.constant 0 : index
    %c0_2 = arith.constant 0 : index
    %8 = vector.load %arg2[%c0_1, %c0_2] : memref<16x32xf32, #tpu.memory_space<vmem>>, vector<16x32xf32>
    %cst = arith.constant dense<0.000000e+00> : vector<16x32xf32>
    %9 = tpu.matmul %7, %8, %cst {dimension_numbers = #tpu.dot_dimension_numbers<[1], [0], [0], [1], [0, 0, 1, 1], [], []>} : vector<16x16xf32>, vector<16x32xf32>, vector<16x32xf32> -> vector<16x32xf32>
    %c0_3 = arith.constant 0 : index
    %c0_4 = arith.constant 0 : index
    %10 = vector.load %arg4[%c0_3, %c0_4] : memref<32x96xf32, #tpu.memory_space<vmem>>, vector<32x96xf32>
    %cst_5 = arith.constant dense<0.000000e+00> : vector<16x96xf32>
    %11 = tpu.matmul %9, %10, %cst_5 {dimension_numbers = #tpu.dot_dimension_numbers<[1], [0], [0], [1], [0, 0, 1, 1], [], []>} : vector<16x32xf32>, vector<32x96xf32>, vector<16x96xf32> -> vector<16x96xf32>
    %c0_6 = arith.constant 0 : index
    %c0_7 = arith.constant 0 : index
    %12 = vector.load %arg6[%c0_6, %c0_7] : memref<1x96xf32, #tpu.memory_space<vmem>>, vector<1x96xf32>
    %13 = vector.broadcast %12 : vector<1x96xf32> to vector<16x96xf32>
    %14 = arith.addf %11, %13 : vector<16x96xf32>
    %15 = vector.shape_cast %14 : vector<16x96xf32> to vector<2x8x96xf32>
    %c0_8 = arith.constant 0 : index
    %c0_9 = arith.constant 0 : index
    %16 = vector.load %arg5[%c0_8, %c0_9] : memref<32x96xf32, #tpu.memory_space<vmem>>, vector<32x96xf32>
    %c0_10 = arith.constant 0 : index
    %c0_11 = arith.constant 0 : index
    %17 = vector.load %arg7[%c0_10, %c0_11] : memref<1x96xf32, #tpu.memory_space<vmem>>, vector<1x96xf32>
    %18 = vector.shape_cast %17 : vector<1x96xf32> to vector<1x96xf32>
    %19 = vector.broadcast %18 : vector<1x96xf32> to vector<2x96xf32>
    %c1_i32 = arith.constant 1 : i32
    %20 = vector.broadcast %c1_i32 : i32 to vector<2x8xi32>
    %21 = arith.cmpi ne, %0, %20 : vector<2x8xi32>
    %22 = arith.extui %21 : vector<2x8xi1> to vector<2x8xi32>
    %cst_12 = arith.constant dense<0> : vector<2xi32>
    %23 = vector.multi_reduction <add>, %22, %cst_12 [1] : vector<2x8xi32> to vector<2xi32>
    %24 = vector.shape_cast %23 : vector<2xi32> to vector<2x1xi32>
    %c7_i32 = arith.constant 7 : i32
    %25 = vector.broadcast %c7_i32 : i32 to vector<2x1xi32>
    %26 = arith.minsi %24, %25 : vector<2x1xi32>
    %cst_13 = arith.constant 0.000000e+00 : f32
    %27 = vector.broadcast %cst_13 : f32 to vector<2x32xf32>
    %cst_14 = arith.constant 0.000000e+00 : f32
    %28 = vector.broadcast %cst_14 : f32 to vector<2x32xf32>
    %29 = vector.extract_strided_slice %15 {offsets = [0, 0, 0], sizes = [2, 1, 96], strides = [1, 1, 1]} : vector<2x8x96xf32> to vector<2x1x96xf32>
    %30 = vector.shape_cast %29 : vector<2x1x96xf32> to vector<2x96xf32>
    %cst_15 = arith.constant dense<0.000000e+00> : vector<2x96xf32>
    %31 = tpu.matmul %27, %16, %cst_15 {dimension_numbers = #tpu.dot_dimension_numbers<[1], [0], [0], [1], [0, 0, 1, 1], [], []>} : vector<2x32xf32>, vector<32x96xf32>, vector<2x96xf32> -> vector<2x96xf32>
    %32 = arith.addf %31, %19 : vector<2x96xf32>
    %33 = vector.extract_strided_slice %30 {offsets = [0, 0], sizes = [2, 64], strides = [1, 1]} : vector<2x96xf32> to vector<2x64xf32>
    %34 = vector.extract_strided_slice %32 {offsets = [0, 0], sizes = [2, 64], strides = [1, 1]} : vector<2x96xf32> to vector<2x64xf32>
    %35 = arith.addf %33, %34 : vector<2x64xf32>
    %36 = arith.negf %35 : vector<2x64xf32>
    %37 = math.exp %36 : vector<2x64xf32>
    %cst_16 = arith.constant 1.000000e+00 : f32
    %38 = vector.broadcast %cst_16 : f32 to vector<2x64xf32>
    %39 = arith.addf %38, %37 : vector<2x64xf32>
    %40 = arith.divf %38, %39 : vector<2x64xf32>
    %41 = vector.extract_strided_slice %40 {offsets = [0, 0], sizes = [2, 32], strides = [1, 1]} : vector<2x64xf32> to vector<2x32xf32>
    %42 = vector.extract_strided_slice %40 {offsets = [0, 32], sizes = [2, 32], strides = [1, 1]} : vector<2x64xf32> to vector<2x32xf32>
    %43 = vector.extract_strided_slice %30 {offsets = [0, 64], sizes = [2, 32], strides = [1, 1]} : vector<2x96xf32> to vector<2x32xf32>
    %44 = vector.extract_strided_slice %32 {offsets = [0, 64], sizes = [2, 32], strides = [1, 1]} : vector<2x96xf32> to vector<2x32xf32>
    %45 = arith.mulf %41, %44 : vector<2x32xf32>
    %46 = arith.addf %43, %45 : vector<2x32xf32>
    %47 = math.tanh %46 : vector<2x32xf32>
    %cst_17 = arith.constant 1.000000e+00 : f32
    %48 = vector.broadcast %cst_17 : f32 to vector<2x32xf32>
    %49 = arith.subf %48, %42 : vector<2x32xf32>
    %50 = arith.mulf %49, %47 : vector<2x32xf32>
    %51 = arith.mulf %42, %27 : vector<2x32xf32>
    %52 = arith.addf %50, %51 : vector<2x32xf32>
    %c0_i32 = arith.constant 0 : i32
    %53 = vector.broadcast %c0_i32 : i32 to vector<2x1xi32>
    %54 = arith.cmpi eq, %26, %53 : vector<2x1xi32>
    %55 = vector.shape_cast %54 : vector<2x1xi1> to vector<2x1xi1>
    %56 = vector.broadcast %55 : vector<2x1xi1> to vector<2x32xi1>
    %57 = arith.select %56, %52, %28 : vector<2x32xi1>, vector<2x32xf32>
    %58 = vector.extract_strided_slice %15 {offsets = [0, 1, 0], sizes = [2, 1, 96], strides = [1, 1, 1]} : vector<2x8x96xf32> to vector<2x1x96xf32>
    %59 = vector.shape_cast %58 : vector<2x1x96xf32> to vector<2x96xf32>
    %cst_18 = arith.constant dense<0.000000e+00> : vector<2x96xf32>
    %60 = tpu.matmul %52, %16, %cst_18 {dimension_numbers = #tpu.dot_dimension_numbers<[1], [0], [0], [1], [0, 0, 1, 1], [], []>} : vector<2x32xf32>, vector<32x96xf32>, vector<2x96xf32> -> vector<2x96xf32>
    %61 = arith.addf %60, %19 : vector<2x96xf32>
    %62 = vector.extract_strided_slice %59 {offsets = [0, 0], sizes = [2, 64], strides = [1, 1]} : vector<2x96xf32> to vector<2x64xf32>
    %63 = vector.extract_strided_slice %61 {offsets = [0, 0], sizes = [2, 64], strides = [1, 1]} : vector<2x96xf32> to vector<2x64xf32>
    %64 = arith.addf %62, %63 : vector<2x64xf32>
    %65 = arith.negf %64 : vector<2x64xf32>
    %66 = math.exp %65 : vector<2x64xf32>
    %cst_19 = arith.constant 1.000000e+00 : f32
    %67 = vector.broadcast %cst_19 : f32 to vector<2x64xf32>
    %68 = arith.addf %67, %66 : vector<2x64xf32>
    %69 = arith.divf %67, %68 : vector<2x64xf32>
    %70 = vector.extract_strided_slice %69 {offsets = [0, 0], sizes = [2, 32], strides = [1, 1]} : vector<2x64xf32> to vector<2x32xf32>
    %71 = vector.extract_strided_slice %69 {offsets = [0, 32], sizes = [2, 32], strides = [1, 1]} : vector<2x64xf32> to vector<2x32xf32>
    %72 = vector.extract_strided_slice %59 {offsets = [0, 64], sizes = [2, 32], strides = [1, 1]} : vector<2x96xf32> to vector<2x32xf32>
    %73 = vector.extract_strided_slice %61 {offsets = [0, 64], sizes = [2, 32], strides = [1, 1]} : vector<2x96xf32> to vector<2x32xf32>
    %74 = arith.mulf %70, %73 : vector<2x32xf32>
    %75 = arith.addf %72, %74 : vector<2x32xf32>
    %76 = math.tanh %75 : vector<2x32xf32>
    %cst_20 = arith.constant 1.000000e+00 : f32
    %77 = vector.broadcast %cst_20 : f32 to vector<2x32xf32>
    %78 = arith.subf %77, %71 : vector<2x32xf32>
    %79 = arith.mulf %78, %76 : vector<2x32xf32>
    %80 = arith.mulf %71, %52 : vector<2x32xf32>
    %81 = arith.addf %79, %80 : vector<2x32xf32>
    %c1_i32_21 = arith.constant 1 : i32
    %82 = vector.broadcast %c1_i32_21 : i32 to vector<2x1xi32>
    %83 = arith.cmpi eq, %26, %82 : vector<2x1xi32>
    %84 = vector.shape_cast %83 : vector<2x1xi1> to vector<2x1xi1>
    %85 = vector.broadcast %84 : vector<2x1xi1> to vector<2x32xi1>
    %86 = arith.select %85, %81, %57 : vector<2x32xi1>, vector<2x32xf32>
    %87 = vector.extract_strided_slice %15 {offsets = [0, 2, 0], sizes = [2, 1, 96], strides = [1, 1, 1]} : vector<2x8x96xf32> to vector<2x1x96xf32>
    %88 = vector.shape_cast %87 : vector<2x1x96xf32> to vector<2x96xf32>
    %cst_22 = arith.constant dense<0.000000e+00> : vector<2x96xf32>
    %89 = tpu.matmul %81, %16, %cst_22 {dimension_numbers = #tpu.dot_dimension_numbers<[1], [0], [0], [1], [0, 0, 1, 1], [], []>} : vector<2x32xf32>, vector<32x96xf32>, vector<2x96xf32> -> vector<2x96xf32>
    %90 = arith.addf %89, %19 : vector<2x96xf32>
    %91 = vector.extract_strided_slice %88 {offsets = [0, 0], sizes = [2, 64], strides = [1, 1]} : vector<2x96xf32> to vector<2x64xf32>
    %92 = vector.extract_strided_slice %90 {offsets = [0, 0], sizes = [2, 64], strides = [1, 1]} : vector<2x96xf32> to vector<2x64xf32>
    %93 = arith.addf %91, %92 : vector<2x64xf32>
    %94 = arith.negf %93 : vector<2x64xf32>
    %95 = math.exp %94 : vector<2x64xf32>
    %cst_23 = arith.constant 1.000000e+00 : f32
    %96 = vector.broadcast %cst_23 : f32 to vector<2x64xf32>
    %97 = arith.addf %96, %95 : vector<2x64xf32>
    %98 = arith.divf %96, %97 : vector<2x64xf32>
    %99 = vector.extract_strided_slice %98 {offsets = [0, 0], sizes = [2, 32], strides = [1, 1]} : vector<2x64xf32> to vector<2x32xf32>
    %100 = vector.extract_strided_slice %98 {offsets = [0, 32], sizes = [2, 32], strides = [1, 1]} : vector<2x64xf32> to vector<2x32xf32>
    %101 = vector.extract_strided_slice %88 {offsets = [0, 64], sizes = [2, 32], strides = [1, 1]} : vector<2x96xf32> to vector<2x32xf32>
    %102 = vector.extract_strided_slice %90 {offsets = [0, 64], sizes = [2, 32], strides = [1, 1]} : vector<2x96xf32> to vector<2x32xf32>
    %103 = arith.mulf %99, %102 : vector<2x32xf32>
    %104 = arith.addf %101, %103 : vector<2x32xf32>
    %105 = math.tanh %104 : vector<2x32xf32>
    %cst_24 = arith.constant 1.000000e+00 : f32
    %106 = vector.broadcast %cst_24 : f32 to vector<2x32xf32>
    %107 = arith.subf %106, %100 : vector<2x32xf32>
    %108 = arith.mulf %107, %105 : vector<2x32xf32>
    %109 = arith.mulf %100, %81 : vector<2x32xf32>
    %110 = arith.addf %108, %109 : vector<2x32xf32>
    %c2_i32 = arith.constant 2 : i32
    %111 = vector.broadcast %c2_i32 : i32 to vector<2x1xi32>
    %112 = arith.cmpi eq, %26, %111 : vector<2x1xi32>
    %113 = vector.shape_cast %112 : vector<2x1xi1> to vector<2x1xi1>
    %114 = vector.broadcast %113 : vector<2x1xi1> to vector<2x32xi1>
    %115 = arith.select %114, %110, %86 : vector<2x32xi1>, vector<2x32xf32>
    %116 = vector.extract_strided_slice %15 {offsets = [0, 3, 0], sizes = [2, 1, 96], strides = [1, 1, 1]} : vector<2x8x96xf32> to vector<2x1x96xf32>
    %117 = vector.shape_cast %116 : vector<2x1x96xf32> to vector<2x96xf32>
    %cst_25 = arith.constant dense<0.000000e+00> : vector<2x96xf32>
    %118 = tpu.matmul %110, %16, %cst_25 {dimension_numbers = #tpu.dot_dimension_numbers<[1], [0], [0], [1], [0, 0, 1, 1], [], []>} : vector<2x32xf32>, vector<32x96xf32>, vector<2x96xf32> -> vector<2x96xf32>
    %119 = arith.addf %118, %19 : vector<2x96xf32>
    %120 = vector.extract_strided_slice %117 {offsets = [0, 0], sizes = [2, 64], strides = [1, 1]} : vector<2x96xf32> to vector<2x64xf32>
    %121 = vector.extract_strided_slice %119 {offsets = [0, 0], sizes = [2, 64], strides = [1, 1]} : vector<2x96xf32> to vector<2x64xf32>
    %122 = arith.addf %120, %121 : vector<2x64xf32>
    %123 = arith.negf %122 : vector<2x64xf32>
    %124 = math.exp %123 : vector<2x64xf32>
    %cst_26 = arith.constant 1.000000e+00 : f32
    %125 = vector.broadcast %cst_26 : f32 to vector<2x64xf32>
    %126 = arith.addf %125, %124 : vector<2x64xf32>
    %127 = arith.divf %125, %126 : vector<2x64xf32>
    %128 = vector.extract_strided_slice %127 {offsets = [0, 0], sizes = [2, 32], strides = [1, 1]} : vector<2x64xf32> to vector<2x32xf32>
    %129 = vector.extract_strided_slice %127 {offsets = [0, 32], sizes = [2, 32], strides = [1, 1]} : vector<2x64xf32> to vector<2x32xf32>
    %130 = vector.extract_strided_slice %117 {offsets = [0, 64], sizes = [2, 32], strides = [1, 1]} : vector<2x96xf32> to vector<2x32xf32>
    %131 = vector.extract_strided_slice %119 {offsets = [0, 64], sizes = [2, 32], strides = [1, 1]} : vector<2x96xf32> to vector<2x32xf32>
    %132 = arith.mulf %128, %131 : vector<2x32xf32>
    %133 = arith.addf %130, %132 : vector<2x32xf32>
    %134 = math.tanh %133 : vector<2x32xf32>
    %cst_27 = arith.constant 1.000000e+00 : f32
    %135 = vector.broadcast %cst_27 : f32 to vector<2x32xf32>
    %136 = arith.subf %135, %129 : vector<2x32xf32>
    %137 = arith.mulf %136, %134 : vector<2x32xf32>
    %138 = arith.mulf %129, %110 : vector<2x32xf32>
    %139 = arith.addf %137, %138 : vector<2x32xf32>
    %c3_i32 = arith.constant 3 : i32
    %140 = vector.broadcast %c3_i32 : i32 to vector<2x1xi32>
    %141 = arith.cmpi eq, %26, %140 : vector<2x1xi32>
    %142 = vector.shape_cast %141 : vector<2x1xi1> to vector<2x1xi1>
    %143 = vector.broadcast %142 : vector<2x1xi1> to vector<2x32xi1>
    %144 = arith.select %143, %139, %115 : vector<2x32xi1>, vector<2x32xf32>
    %145 = vector.extract_strided_slice %15 {offsets = [0, 4, 0], sizes = [2, 1, 96], strides = [1, 1, 1]} : vector<2x8x96xf32> to vector<2x1x96xf32>
    %146 = vector.shape_cast %145 : vector<2x1x96xf32> to vector<2x96xf32>
    %cst_28 = arith.constant dense<0.000000e+00> : vector<2x96xf32>
    %147 = tpu.matmul %139, %16, %cst_28 {dimension_numbers = #tpu.dot_dimension_numbers<[1], [0], [0], [1], [0, 0, 1, 1], [], []>} : vector<2x32xf32>, vector<32x96xf32>, vector<2x96xf32> -> vector<2x96xf32>
    %148 = arith.addf %147, %19 : vector<2x96xf32>
    %149 = vector.extract_strided_slice %146 {offsets = [0, 0], sizes = [2, 64], strides = [1, 1]} : vector<2x96xf32> to vector<2x64xf32>
    %150 = vector.extract_strided_slice %148 {offsets = [0, 0], sizes = [2, 64], strides = [1, 1]} : vector<2x96xf32> to vector<2x64xf32>
    %151 = arith.addf %149, %150 : vector<2x64xf32>
    %152 = arith.negf %151 : vector<2x64xf32>
    %153 = math.exp %152 : vector<2x64xf32>
    %cst_29 = arith.constant 1.000000e+00 : f32
    %154 = vector.broadcast %cst_29 : f32 to vector<2x64xf32>
    %155 = arith.addf %154, %153 : vector<2x64xf32>
    %156 = arith.divf %154, %155 : vector<2x64xf32>
    %157 = vector.extract_strided_slice %156 {offsets = [0, 0], sizes = [2, 32], strides = [1, 1]} : vector<2x64xf32> to vector<2x32xf32>
    %158 = vector.extract_strided_slice %156 {offsets = [0, 32], sizes = [2, 32], strides = [1, 1]} : vector<2x64xf32> to vector<2x32xf32>
    %159 = vector.extract_strided_slice %146 {offsets = [0, 64], sizes = [2, 32], strides = [1, 1]} : vector<2x96xf32> to vector<2x32xf32>
    %160 = vector.extract_strided_slice %148 {offsets = [0, 64], sizes = [2, 32], strides = [1, 1]} : vector<2x96xf32> to vector<2x32xf32>
    %161 = arith.mulf %157, %160 : vector<2x32xf32>
    %162 = arith.addf %159, %161 : vector<2x32xf32>
    %163 = math.tanh %162 : vector<2x32xf32>
    %cst_30 = arith.constant 1.000000e+00 : f32
    %164 = vector.broadcast %cst_30 : f32 to vector<2x32xf32>
    %165 = arith.subf %164, %158 : vector<2x32xf32>
    %166 = arith.mulf %165, %163 : vector<2x32xf32>
    %167 = arith.mulf %158, %139 : vector<2x32xf32>
    %168 = arith.addf %166, %167 : vector<2x32xf32>
    %c4_i32 = arith.constant 4 : i32
    %169 = vector.broadcast %c4_i32 : i32 to vector<2x1xi32>
    %170 = arith.cmpi eq, %26, %169 : vector<2x1xi32>
    %171 = vector.shape_cast %170 : vector<2x1xi1> to vector<2x1xi1>
    %172 = vector.broadcast %171 : vector<2x1xi1> to vector<2x32xi1>
    %173 = arith.select %172, %168, %144 : vector<2x32xi1>, vector<2x32xf32>
    %174 = vector.extract_strided_slice %15 {offsets = [0, 5, 0], sizes = [2, 1, 96], strides = [1, 1, 1]} : vector<2x8x96xf32> to vector<2x1x96xf32>
    %175 = vector.shape_cast %174 : vector<2x1x96xf32> to vector<2x96xf32>
    %cst_31 = arith.constant dense<0.000000e+00> : vector<2x96xf32>
    %176 = tpu.matmul %168, %16, %cst_31 {dimension_numbers = #tpu.dot_dimension_numbers<[1], [0], [0], [1], [0, 0, 1, 1], [], []>} : vector<2x32xf32>, vector<32x96xf32>, vector<2x96xf32> -> vector<2x96xf32>
    %177 = arith.addf %176, %19 : vector<2x96xf32>
    %178 = vector.extract_strided_slice %175 {offsets = [0, 0], sizes = [2, 64], strides = [1, 1]} : vector<2x96xf32> to vector<2x64xf32>
    %179 = vector.extract_strided_slice %177 {offsets = [0, 0], sizes = [2, 64], strides = [1, 1]} : vector<2x96xf32> to vector<2x64xf32>
    %180 = arith.addf %178, %179 : vector<2x64xf32>
    %181 = arith.negf %180 : vector<2x64xf32>
    %182 = math.exp %181 : vector<2x64xf32>
    %cst_32 = arith.constant 1.000000e+00 : f32
    %183 = vector.broadcast %cst_32 : f32 to vector<2x64xf32>
    %184 = arith.addf %183, %182 : vector<2x64xf32>
    %185 = arith.divf %183, %184 : vector<2x64xf32>
    %186 = vector.extract_strided_slice %185 {offsets = [0, 0], sizes = [2, 32], strides = [1, 1]} : vector<2x64xf32> to vector<2x32xf32>
    %187 = vector.extract_strided_slice %185 {offsets = [0, 32], sizes = [2, 32], strides = [1, 1]} : vector<2x64xf32> to vector<2x32xf32>
    %188 = vector.extract_strided_slice %175 {offsets = [0, 64], sizes = [2, 32], strides = [1, 1]} : vector<2x96xf32> to vector<2x32xf32>
    %189 = vector.extract_strided_slice %177 {offsets = [0, 64], sizes = [2, 32], strides = [1, 1]} : vector<2x96xf32> to vector<2x32xf32>
    %190 = arith.mulf %186, %189 : vector<2x32xf32>
    %191 = arith.addf %188, %190 : vector<2x32xf32>
    %192 = math.tanh %191 : vector<2x32xf32>
    %cst_33 = arith.constant 1.000000e+00 : f32
    %193 = vector.broadcast %cst_33 : f32 to vector<2x32xf32>
    %194 = arith.subf %193, %187 : vector<2x32xf32>
    %195 = arith.mulf %194, %192 : vector<2x32xf32>
    %196 = arith.mulf %187, %168 : vector<2x32xf32>
    %197 = arith.addf %195, %196 : vector<2x32xf32>
    %c5_i32 = arith.constant 5 : i32
    %198 = vector.broadcast %c5_i32 : i32 to vector<2x1xi32>
    %199 = arith.cmpi eq, %26, %198 : vector<2x1xi32>
    %200 = vector.shape_cast %199 : vector<2x1xi1> to vector<2x1xi1>
    %201 = vector.broadcast %200 : vector<2x1xi1> to vector<2x32xi1>
    %202 = arith.select %201, %197, %173 : vector<2x32xi1>, vector<2x32xf32>
    %203 = vector.extract_strided_slice %15 {offsets = [0, 6, 0], sizes = [2, 1, 96], strides = [1, 1, 1]} : vector<2x8x96xf32> to vector<2x1x96xf32>
    %204 = vector.shape_cast %203 : vector<2x1x96xf32> to vector<2x96xf32>
    %cst_34 = arith.constant dense<0.000000e+00> : vector<2x96xf32>
    %205 = tpu.matmul %197, %16, %cst_34 {dimension_numbers = #tpu.dot_dimension_numbers<[1], [0], [0], [1], [0, 0, 1, 1], [], []>} : vector<2x32xf32>, vector<32x96xf32>, vector<2x96xf32> -> vector<2x96xf32>
    %206 = arith.addf %205, %19 : vector<2x96xf32>
    %207 = vector.extract_strided_slice %204 {offsets = [0, 0], sizes = [2, 64], strides = [1, 1]} : vector<2x96xf32> to vector<2x64xf32>
    %208 = vector.extract_strided_slice %206 {offsets = [0, 0], sizes = [2, 64], strides = [1, 1]} : vector<2x96xf32> to vector<2x64xf32>
    %209 = arith.addf %207, %208 : vector<2x64xf32>
    %210 = arith.negf %209 : vector<2x64xf32>
    %211 = math.exp %210 : vector<2x64xf32>
    %cst_35 = arith.constant 1.000000e+00 : f32
    %212 = vector.broadcast %cst_35 : f32 to vector<2x64xf32>
    %213 = arith.addf %212, %211 : vector<2x64xf32>
    %214 = arith.divf %212, %213 : vector<2x64xf32>
    %215 = vector.extract_strided_slice %214 {offsets = [0, 0], sizes = [2, 32], strides = [1, 1]} : vector<2x64xf32> to vector<2x32xf32>
    %216 = vector.extract_strided_slice %214 {offsets = [0, 32], sizes = [2, 32], strides = [1, 1]} : vector<2x64xf32> to vector<2x32xf32>
    %217 = vector.extract_strided_slice %204 {offsets = [0, 64], sizes = [2, 32], strides = [1, 1]} : vector<2x96xf32> to vector<2x32xf32>
    %218 = vector.extract_strided_slice %206 {offsets = [0, 64], sizes = [2, 32], strides = [1, 1]} : vector<2x96xf32> to vector<2x32xf32>
    %219 = arith.mulf %215, %218 : vector<2x32xf32>
    %220 = arith.addf %217, %219 : vector<2x32xf32>
    %221 = math.tanh %220 : vector<2x32xf32>
    %cst_36 = arith.constant 1.000000e+00 : f32
    %222 = vector.broadcast %cst_36 : f32 to vector<2x32xf32>
    %223 = arith.subf %222, %216 : vector<2x32xf32>
    %224 = arith.mulf %223, %221 : vector<2x32xf32>
    %225 = arith.mulf %216, %197 : vector<2x32xf32>
    %226 = arith.addf %224, %225 : vector<2x32xf32>
    %c6_i32 = arith.constant 6 : i32
    %227 = vector.broadcast %c6_i32 : i32 to vector<2x1xi32>
    %228 = arith.cmpi eq, %26, %227 : vector<2x1xi32>
    %229 = vector.shape_cast %228 : vector<2x1xi1> to vector<2x1xi1>
    %230 = vector.broadcast %229 : vector<2x1xi1> to vector<2x32xi1>
    %231 = arith.select %230, %226, %202 : vector<2x32xi1>, vector<2x32xf32>
    %232 = vector.extract_strided_slice %15 {offsets = [0, 7, 0], sizes = [2, 1, 96], strides = [1, 1, 1]} : vector<2x8x96xf32> to vector<2x1x96xf32>
    %233 = vector.shape_cast %232 : vector<2x1x96xf32> to vector<2x96xf32>
    %cst_37 = arith.constant dense<0.000000e+00> : vector<2x96xf32>
    %234 = tpu.matmul %226, %16, %cst_37 {dimension_numbers = #tpu.dot_dimension_numbers<[1], [0], [0], [1], [0, 0, 1, 1], [], []>} : vector<2x32xf32>, vector<32x96xf32>, vector<2x96xf32> -> vector<2x96xf32>
    %235 = arith.addf %234, %19 : vector<2x96xf32>
    %236 = vector.extract_strided_slice %233 {offsets = [0, 0], sizes = [2, 64], strides = [1, 1]} : vector<2x96xf32> to vector<2x64xf32>
    %237 = vector.extract_strided_slice %235 {offsets = [0, 0], sizes = [2, 64], strides = [1, 1]} : vector<2x96xf32> to vector<2x64xf32>
    %238 = arith.addf %236, %237 : vector<2x64xf32>
    %239 = arith.negf %238 : vector<2x64xf32>
    %240 = math.exp %239 : vector<2x64xf32>
    %cst_38 = arith.constant 1.000000e+00 : f32
    %241 = vector.broadcast %cst_38 : f32 to vector<2x64xf32>
    %242 = arith.addf %241, %240 : vector<2x64xf32>
    %243 = arith.divf %241, %242 : vector<2x64xf32>
    %244 = vector.extract_strided_slice %243 {offsets = [0, 0], sizes = [2, 32], strides = [1, 1]} : vector<2x64xf32> to vector<2x32xf32>
    %245 = vector.extract_strided_slice %243 {offsets = [0, 32], sizes = [2, 32], strides = [1, 1]} : vector<2x64xf32> to vector<2x32xf32>
    %246 = vector.extract_strided_slice %233 {offsets = [0, 64], sizes = [2, 32], strides = [1, 1]} : vector<2x96xf32> to vector<2x32xf32>
    %247 = vector.extract_strided_slice %235 {offsets = [0, 64], sizes = [2, 32], strides = [1, 1]} : vector<2x96xf32> to vector<2x32xf32>
    %248 = arith.mulf %244, %247 : vector<2x32xf32>
    %249 = arith.addf %246, %248 : vector<2x32xf32>
    %250 = math.tanh %249 : vector<2x32xf32>
    %cst_39 = arith.constant 1.000000e+00 : f32
    %251 = vector.broadcast %cst_39 : f32 to vector<2x32xf32>
    %252 = arith.subf %251, %245 : vector<2x32xf32>
    %253 = arith.mulf %252, %250 : vector<2x32xf32>
    %254 = arith.mulf %245, %226 : vector<2x32xf32>
    %255 = arith.addf %253, %254 : vector<2x32xf32>
    %c7_i32_40 = arith.constant 7 : i32
    %256 = vector.broadcast %c7_i32_40 : i32 to vector<2x1xi32>
    %257 = arith.cmpi eq, %26, %256 : vector<2x1xi32>
    %258 = vector.shape_cast %257 : vector<2x1xi1> to vector<2x1xi1>
    %259 = vector.broadcast %258 : vector<2x1xi1> to vector<2x32xi1>
    %260 = arith.select %259, %255, %231 : vector<2x32xi1>, vector<2x32xf32>
    %c0_41 = arith.constant 0 : index
    %c0_42 = arith.constant 0 : index
    %261 = vector.load %arg8[%c0_41, %c0_42] : memref<32x32xf32, #tpu.memory_space<vmem>>, vector<32x32xf32>
    %cst_43 = arith.constant dense<0.000000e+00> : vector<2x32xf32>
    %262 = tpu.matmul %260, %261, %cst_43 {dimension_numbers = #tpu.dot_dimension_numbers<[1], [0], [0], [1], [0, 0, 1, 1], [], []>} : vector<2x32xf32>, vector<32x32xf32>, vector<2x32xf32> -> vector<2x32xf32>
    %c0_44 = arith.constant 0 : index
    %c0_45 = arith.constant 0 : index
    %263 = vector.load %arg9[%c0_44, %c0_45] : memref<1x32xf32, #tpu.memory_space<vmem>>, vector<1x32xf32>
    %264 = vector.broadcast %263 : vector<1x32xf32> to vector<2x32xf32>
    %265 = arith.addf %262, %264 : vector<2x32xf32>
    %c0_46 = arith.constant 0 : index
    %c0_47 = arith.constant 0 : index
    %266 = vector.load %arg1[%c0_46, %c0_47] : memref<2x8xi32, #tpu.memory_space<vmem>>, vector<2x8xi32>
    %267 = vector.shape_cast %266 : vector<2x8xi32> to vector<2x8x1xi32>
    %268 = tpu.iota {dimensions = array<i32: 2>} : vector<2x8x16xi32>
    %269 = vector.broadcast %267 : vector<2x8x1xi32> to vector<2x8x16xi32>
    %270 = arith.cmpi eq, %269, %268 : vector<2x8x16xi32>
    %271 = arith.extui %270 : vector<2x8x16xi1> to vector<2x8x16xi32>
    %272 = arith.sitofp %271 : vector<2x8x16xi32> to vector<2x8x16xf32>
    %273 = vector.shape_cast %272 : vector<2x8x16xf32> to vector<16x16xf32>
    %c0_48 = arith.constant 0 : index
    %c0_49 = arith.constant 0 : index
    %274 = vector.load %arg3[%c0_48, %c0_49] : memref<16x32xf32, #tpu.memory_space<vmem>>, vector<16x32xf32>
    %cst_50 = arith.constant dense<0.000000e+00> : vector<16x32xf32>
    %275 = tpu.matmul %273, %274, %cst_50 {dimension_numbers = #tpu.dot_dimension_numbers<[1], [0], [0], [1], [0, 0, 1, 1], [], []>} : vector<16x16xf32>, vector<16x32xf32>, vector<16x32xf32> -> vector<16x32xf32>
    %c0_51 = arith.constant 0 : index
    %c0_52 = arith.constant 0 : index
    %276 = vector.load %arg10[%c0_51, %c0_52] : memref<32x96xf32, #tpu.memory_space<vmem>>, vector<32x96xf32>
    %cst_53 = arith.constant dense<0.000000e+00> : vector<16x96xf32>
    %277 = tpu.matmul %275, %276, %cst_53 {dimension_numbers = #tpu.dot_dimension_numbers<[1], [0], [0], [1], [0, 0, 1, 1], [], []>} : vector<16x32xf32>, vector<32x96xf32>, vector<16x96xf32> -> vector<16x96xf32>
    %c0_54 = arith.constant 0 : index
    %c0_55 = arith.constant 0 : index
    %278 = vector.load %arg12[%c0_54, %c0_55] : memref<1x96xf32, #tpu.memory_space<vmem>>, vector<1x96xf32>
    %279 = vector.broadcast %278 : vector<1x96xf32> to vector<16x96xf32>
    %280 = arith.addf %277, %279 : vector<16x96xf32>
    %281 = vector.shape_cast %280 : vector<16x96xf32> to vector<2x8x96xf32>
    %c0_56 = arith.constant 0 : index
    %c0_57 = arith.constant 0 : index
    %282 = vector.load %arg11[%c0_56, %c0_57] : memref<32x96xf32, #tpu.memory_space<vmem>>, vector<32x96xf32>
    %c0_58 = arith.constant 0 : index
    %c0_59 = arith.constant 0 : index
    %283 = vector.load %arg13[%c0_58, %c0_59] : memref<1x96xf32, #tpu.memory_space<vmem>>, vector<1x96xf32>
    %284 = vector.shape_cast %283 : vector<1x96xf32> to vector<1x96xf32>
    %285 = vector.broadcast %284 : vector<1x96xf32> to vector<2x96xf32>
    %286 = tpu.iota {dimensions = array<i32: 1>} : vector<2x8x32xi32>
    %cst_60 = arith.constant 0.000000e+00 : f32
    %287 = vector.broadcast %cst_60 : f32 to vector<2x8x32xf32>
    %288 = vector.extract_strided_slice %281 {offsets = [0, 0, 0], sizes = [2, 1, 96], strides = [1, 1, 1]} : vector<2x8x96xf32> to vector<2x1x96xf32>
    %289 = vector.shape_cast %288 : vector<2x1x96xf32> to vector<2x96xf32>
    %cst_61 = arith.constant dense<0.000000e+00> : vector<2x96xf32>
    %290 = tpu.matmul %265, %282, %cst_61 {dimension_numbers = #tpu.dot_dimension_numbers<[1], [0], [0], [1], [0, 0, 1, 1], [], []>} : vector<2x32xf32>, vector<32x96xf32>, vector<2x96xf32> -> vector<2x96xf32>
    %291 = arith.addf %290, %285 : vector<2x96xf32>
    %292 = vector.extract_strided_slice %289 {offsets = [0, 0], sizes = [2, 64], strides = [1, 1]} : vector<2x96xf32> to vector<2x64xf32>
    %293 = vector.extract_strided_slice %291 {offsets = [0, 0], sizes = [2, 64], strides = [1, 1]} : vector<2x96xf32> to vector<2x64xf32>
    %294 = arith.addf %292, %293 : vector<2x64xf32>
    %295 = arith.negf %294 : vector<2x64xf32>
    %296 = math.exp %295 : vector<2x64xf32>
    %cst_62 = arith.constant 1.000000e+00 : f32
    %297 = vector.broadcast %cst_62 : f32 to vector<2x64xf32>
    %298 = arith.addf %297, %296 : vector<2x64xf32>
    %299 = arith.divf %297, %298 : vector<2x64xf32>
    %300 = vector.extract_strided_slice %299 {offsets = [0, 0], sizes = [2, 32], strides = [1, 1]} : vector<2x64xf32> to vector<2x32xf32>
    %301 = vector.extract_strided_slice %299 {offsets = [0, 32], sizes = [2, 32], strides = [1, 1]} : vector<2x64xf32> to vector<2x32xf32>
    %302 = vector.extract_strided_slice %289 {offsets = [0, 64], sizes = [2, 32], strides = [1, 1]} : vector<2x96xf32> to vector<2x32xf32>
    %303 = vector.extract_strided_slice %291 {offsets = [0, 64], sizes = [2, 32], strides = [1, 1]} : vector<2x96xf32> to vector<2x32xf32>
    %304 = arith.mulf %300, %303 : vector<2x32xf32>
    %305 = arith.addf %302, %304 : vector<2x32xf32>
    %306 = math.tanh %305 : vector<2x32xf32>
    %cst_63 = arith.constant 1.000000e+00 : f32
    %307 = vector.broadcast %cst_63 : f32 to vector<2x32xf32>
    %308 = arith.subf %307, %301 : vector<2x32xf32>
    %309 = arith.mulf %308, %306 : vector<2x32xf32>
    %310 = arith.mulf %301, %265 : vector<2x32xf32>
    %311 = arith.addf %309, %310 : vector<2x32xf32>
    %c1_i32_64 = arith.constant 1 : i32
    %312 = vector.broadcast %c1_i32_64 : i32 to vector<2x8x32xi32>
    %313 = arith.cmpi eq, %286, %312 : vector<2x8x32xi32>
    %314 = vector.shape_cast %311 : vector<2x32xf32> to vector<2x1x32xf32>
    %315 = vector.shape_cast %314 : vector<2x1x32xf32> to vector<2x1x32xf32>
    %316 = vector.broadcast %315 : vector<2x1x32xf32> to vector<2x8x32xf32>
    %317 = arith.select %313, %316, %287 : vector<2x8x32xi1>, vector<2x8x32xf32>
    %318 = vector.extract_strided_slice %281 {offsets = [0, 1, 0], sizes = [2, 1, 96], strides = [1, 1, 1]} : vector<2x8x96xf32> to vector<2x1x96xf32>
    %319 = vector.shape_cast %318 : vector<2x1x96xf32> to vector<2x96xf32>
    %cst_65 = arith.constant dense<0.000000e+00> : vector<2x96xf32>
    %320 = tpu.matmul %311, %282, %cst_65 {dimension_numbers = #tpu.dot_dimension_numbers<[1], [0], [0], [1], [0, 0, 1, 1], [], []>} : vector<2x32xf32>, vector<32x96xf32>, vector<2x96xf32> -> vector<2x96xf32>
    %321 = arith.addf %320, %285 : vector<2x96xf32>
    %322 = vector.extract_strided_slice %319 {offsets = [0, 0], sizes = [2, 64], strides = [1, 1]} : vector<2x96xf32> to vector<2x64xf32>
    %323 = vector.extract_strided_slice %321 {offsets = [0, 0], sizes = [2, 64], strides = [1, 1]} : vector<2x96xf32> to vector<2x64xf32>
    %324 = arith.addf %322, %323 : vector<2x64xf32>
    %325 = arith.negf %324 : vector<2x64xf32>
    %326 = math.exp %325 : vector<2x64xf32>
    %cst_66 = arith.constant 1.000000e+00 : f32
    %327 = vector.broadcast %cst_66 : f32 to vector<2x64xf32>
    %328 = arith.addf %327, %326 : vector<2x64xf32>
    %329 = arith.divf %327, %328 : vector<2x64xf32>
    %330 = vector.extract_strided_slice %329 {offsets = [0, 0], sizes = [2, 32], strides = [1, 1]} : vector<2x64xf32> to vector<2x32xf32>
    %331 = vector.extract_strided_slice %329 {offsets = [0, 32], sizes = [2, 32], strides = [1, 1]} : vector<2x64xf32> to vector<2x32xf32>
    %332 = vector.extract_strided_slice %319 {offsets = [0, 64], sizes = [2, 32], strides = [1, 1]} : vector<2x96xf32> to vector<2x32xf32>
    %333 = vector.extract_strided_slice %321 {offsets = [0, 64], sizes = [2, 32], strides = [1, 1]} : vector<2x96xf32> to vector<2x32xf32>
    %334 = arith.mulf %330, %333 : vector<2x32xf32>
    %335 = arith.addf %332, %334 : vector<2x32xf32>
    %336 = math.tanh %335 : vector<2x32xf32>
    %cst_67 = arith.constant 1.000000e+00 : f32
    %337 = vector.broadcast %cst_67 : f32 to vector<2x32xf32>
    %338 = arith.subf %337, %331 : vector<2x32xf32>
    %339 = arith.mulf %338, %336 : vector<2x32xf32>
    %340 = arith.mulf %331, %311 : vector<2x32xf32>
    %341 = arith.addf %339, %340 : vector<2x32xf32>
    %c2_i32_68 = arith.constant 2 : i32
    %342 = vector.broadcast %c2_i32_68 : i32 to vector<2x8x32xi32>
    %343 = arith.cmpi eq, %286, %342 : vector<2x8x32xi32>
    %344 = vector.shape_cast %341 : vector<2x32xf32> to vector<2x1x32xf32>
    %345 = vector.shape_cast %344 : vector<2x1x32xf32> to vector<2x1x32xf32>
    %346 = vector.broadcast %345 : vector<2x1x32xf32> to vector<2x8x32xf32>
    %347 = arith.select %343, %346, %317 : vector<2x8x32xi1>, vector<2x8x32xf32>
    %348 = vector.extract_strided_slice %281 {offsets = [0, 2, 0], sizes = [2, 1, 96], strides = [1, 1, 1]} : vector<2x8x96xf32> to vector<2x1x96xf32>
    %349 = vector.shape_cast %348 : vector<2x1x96xf32> to vector<2x96xf32>
    %cst_69 = arith.constant dense<0.000000e+00> : vector<2x96xf32>
    %350 = tpu.matmul %341, %282, %cst_69 {dimension_numbers = #tpu.dot_dimension_numbers<[1], [0], [0], [1], [0, 0, 1, 1], [], []>} : vector<2x32xf32>, vector<32x96xf32>, vector<2x96xf32> -> vector<2x96xf32>
    %351 = arith.addf %350, %285 : vector<2x96xf32>
    %352 = vector.extract_strided_slice %349 {offsets = [0, 0], sizes = [2, 64], strides = [1, 1]} : vector<2x96xf32> to vector<2x64xf32>
    %353 = vector.extract_strided_slice %351 {offsets = [0, 0], sizes = [2, 64], strides = [1, 1]} : vector<2x96xf32> to vector<2x64xf32>
    %354 = arith.addf %352, %353 : vector<2x64xf32>
    %355 = arith.negf %354 : vector<2x64xf32>
    %356 = math.exp %355 : vector<2x64xf32>
    %cst_70 = arith.constant 1.000000e+00 : f32
    %357 = vector.broadcast %cst_70 : f32 to vector<2x64xf32>
    %358 = arith.addf %357, %356 : vector<2x64xf32>
    %359 = arith.divf %357, %358 : vector<2x64xf32>
    %360 = vector.extract_strided_slice %359 {offsets = [0, 0], sizes = [2, 32], strides = [1, 1]} : vector<2x64xf32> to vector<2x32xf32>
    %361 = vector.extract_strided_slice %359 {offsets = [0, 32], sizes = [2, 32], strides = [1, 1]} : vector<2x64xf32> to vector<2x32xf32>
    %362 = vector.extract_strided_slice %349 {offsets = [0, 64], sizes = [2, 32], strides = [1, 1]} : vector<2x96xf32> to vector<2x32xf32>
    %363 = vector.extract_strided_slice %351 {offsets = [0, 64], sizes = [2, 32], strides = [1, 1]} : vector<2x96xf32> to vector<2x32xf32>
    %364 = arith.mulf %360, %363 : vector<2x32xf32>
    %365 = arith.addf %362, %364 : vector<2x32xf32>
    %366 = math.tanh %365 : vector<2x32xf32>
    %cst_71 = arith.constant 1.000000e+00 : f32
    %367 = vector.broadcast %cst_71 : f32 to vector<2x32xf32>
    %368 = arith.subf %367, %361 : vector<2x32xf32>
    %369 = arith.mulf %368, %366 : vector<2x32xf32>
    %370 = arith.mulf %361, %341 : vector<2x32xf32>
    %371 = arith.addf %369, %370 : vector<2x32xf32>
    %c3_i32_72 = arith.constant 3 : i32
    %372 = vector.broadcast %c3_i32_72 : i32 to vector<2x8x32xi32>
    %373 = arith.cmpi eq, %286, %372 : vector<2x8x32xi32>
    %374 = vector.shape_cast %371 : vector<2x32xf32> to vector<2x1x32xf32>
    %375 = vector.shape_cast %374 : vector<2x1x32xf32> to vector<2x1x32xf32>
    %376 = vector.broadcast %375 : vector<2x1x32xf32> to vector<2x8x32xf32>
    %377 = arith.select %373, %376, %347 : vector<2x8x32xi1>, vector<2x8x32xf32>
    %378 = vector.extract_strided_slice %281 {offsets = [0, 3, 0], sizes = [2, 1, 96], strides = [1, 1, 1]} : vector<2x8x96xf32> to vector<2x1x96xf32>
    %379 = vector.shape_cast %378 : vector<2x1x96xf32> to vector<2x96xf32>
    %cst_73 = arith.constant dense<0.000000e+00> : vector<2x96xf32>
    %380 = tpu.matmul %371, %282, %cst_73 {dimension_numbers = #tpu.dot_dimension_numbers<[1], [0], [0], [1], [0, 0, 1, 1], [], []>} : vector<2x32xf32>, vector<32x96xf32>, vector<2x96xf32> -> vector<2x96xf32>
    %381 = arith.addf %380, %285 : vector<2x96xf32>
    %382 = vector.extract_strided_slice %379 {offsets = [0, 0], sizes = [2, 64], strides = [1, 1]} : vector<2x96xf32> to vector<2x64xf32>
    %383 = vector.extract_strided_slice %381 {offsets = [0, 0], sizes = [2, 64], strides = [1, 1]} : vector<2x96xf32> to vector<2x64xf32>
    %384 = arith.addf %382, %383 : vector<2x64xf32>
    %385 = arith.negf %384 : vector<2x64xf32>
    %386 = math.exp %385 : vector<2x64xf32>
    %cst_74 = arith.constant 1.000000e+00 : f32
    %387 = vector.broadcast %cst_74 : f32 to vector<2x64xf32>
    %388 = arith.addf %387, %386 : vector<2x64xf32>
    %389 = arith.divf %387, %388 : vector<2x64xf32>
    %390 = vector.extract_strided_slice %389 {offsets = [0, 0], sizes = [2, 32], strides = [1, 1]} : vector<2x64xf32> to vector<2x32xf32>
    %391 = vector.extract_strided_slice %389 {offsets = [0, 32], sizes = [2, 32], strides = [1, 1]} : vector<2x64xf32> to vector<2x32xf32>
    %392 = vector.extract_strided_slice %379 {offsets = [0, 64], sizes = [2, 32], strides = [1, 1]} : vector<2x96xf32> to vector<2x32xf32>
    %393 = vector.extract_strided_slice %381 {offsets = [0, 64], sizes = [2, 32], strides = [1, 1]} : vector<2x96xf32> to vector<2x32xf32>
    %394 = arith.mulf %390, %393 : vector<2x32xf32>
    %395 = arith.addf %392, %394 : vector<2x32xf32>
    %396 = math.tanh %395 : vector<2x32xf32>
    %cst_75 = arith.constant 1.000000e+00 : f32
    %397 = vector.broadcast %cst_75 : f32 to vector<2x32xf32>
    %398 = arith.subf %397, %391 : vector<2x32xf32>
    %399 = arith.mulf %398, %396 : vector<2x32xf32>
    %400 = arith.mulf %391, %371 : vector<2x32xf32>
    %401 = arith.addf %399, %400 : vector<2x32xf32>
    %c4_i32_76 = arith.constant 4 : i32
    %402 = vector.broadcast %c4_i32_76 : i32 to vector<2x8x32xi32>
    %403 = arith.cmpi eq, %286, %402 : vector<2x8x32xi32>
    %404 = vector.shape_cast %401 : vector<2x32xf32> to vector<2x1x32xf32>
    %405 = vector.shape_cast %404 : vector<2x1x32xf32> to vector<2x1x32xf32>
    %406 = vector.broadcast %405 : vector<2x1x32xf32> to vector<2x8x32xf32>
    %407 = arith.select %403, %406, %377 : vector<2x8x32xi1>, vector<2x8x32xf32>
    %408 = vector.extract_strided_slice %281 {offsets = [0, 4, 0], sizes = [2, 1, 96], strides = [1, 1, 1]} : vector<2x8x96xf32> to vector<2x1x96xf32>
    %409 = vector.shape_cast %408 : vector<2x1x96xf32> to vector<2x96xf32>
    %cst_77 = arith.constant dense<0.000000e+00> : vector<2x96xf32>
    %410 = tpu.matmul %401, %282, %cst_77 {dimension_numbers = #tpu.dot_dimension_numbers<[1], [0], [0], [1], [0, 0, 1, 1], [], []>} : vector<2x32xf32>, vector<32x96xf32>, vector<2x96xf32> -> vector<2x96xf32>
    %411 = arith.addf %410, %285 : vector<2x96xf32>
    %412 = vector.extract_strided_slice %409 {offsets = [0, 0], sizes = [2, 64], strides = [1, 1]} : vector<2x96xf32> to vector<2x64xf32>
    %413 = vector.extract_strided_slice %411 {offsets = [0, 0], sizes = [2, 64], strides = [1, 1]} : vector<2x96xf32> to vector<2x64xf32>
    %414 = arith.addf %412, %413 : vector<2x64xf32>
    %415 = arith.negf %414 : vector<2x64xf32>
    %416 = math.exp %415 : vector<2x64xf32>
    %cst_78 = arith.constant 1.000000e+00 : f32
    %417 = vector.broadcast %cst_78 : f32 to vector<2x64xf32>
    %418 = arith.addf %417, %416 : vector<2x64xf32>
    %419 = arith.divf %417, %418 : vector<2x64xf32>
    %420 = vector.extract_strided_slice %419 {offsets = [0, 0], sizes = [2, 32], strides = [1, 1]} : vector<2x64xf32> to vector<2x32xf32>
    %421 = vector.extract_strided_slice %419 {offsets = [0, 32], sizes = [2, 32], strides = [1, 1]} : vector<2x64xf32> to vector<2x32xf32>
    %422 = vector.extract_strided_slice %409 {offsets = [0, 64], sizes = [2, 32], strides = [1, 1]} : vector<2x96xf32> to vector<2x32xf32>
    %423 = vector.extract_strided_slice %411 {offsets = [0, 64], sizes = [2, 32], strides = [1, 1]} : vector<2x96xf32> to vector<2x32xf32>
    %424 = arith.mulf %420, %423 : vector<2x32xf32>
    %425 = arith.addf %422, %424 : vector<2x32xf32>
    %426 = math.tanh %425 : vector<2x32xf32>
    %cst_79 = arith.constant 1.000000e+00 : f32
    %427 = vector.broadcast %cst_79 : f32 to vector<2x32xf32>
    %428 = arith.subf %427, %421 : vector<2x32xf32>
    %429 = arith.mulf %428, %426 : vector<2x32xf32>
    %430 = arith.mulf %421, %401 : vector<2x32xf32>
    %431 = arith.addf %429, %430 : vector<2x32xf32>
    %c5_i32_80 = arith.constant 5 : i32
    %432 = vector.broadcast %c5_i32_80 : i32 to vector<2x8x32xi32>
    %433 = arith.cmpi eq, %286, %432 : vector<2x8x32xi32>
    %434 = vector.shape_cast %431 : vector<2x32xf32> to vector<2x1x32xf32>
    %435 = vector.shape_cast %434 : vector<2x1x32xf32> to vector<2x1x32xf32>
    %436 = vector.broadcast %435 : vector<2x1x32xf32> to vector<2x8x32xf32>
    %437 = arith.select %433, %436, %407 : vector<2x8x32xi1>, vector<2x8x32xf32>
    %438 = vector.extract_strided_slice %281 {offsets = [0, 5, 0], sizes = [2, 1, 96], strides = [1, 1, 1]} : vector<2x8x96xf32> to vector<2x1x96xf32>
    %439 = vector.shape_cast %438 : vector<2x1x96xf32> to vector<2x96xf32>
    %cst_81 = arith.constant dense<0.000000e+00> : vector<2x96xf32>
    %440 = tpu.matmul %431, %282, %cst_81 {dimension_numbers = #tpu.dot_dimension_numbers<[1], [0], [0], [1], [0, 0, 1, 1], [], []>} : vector<2x32xf32>, vector<32x96xf32>, vector<2x96xf32> -> vector<2x96xf32>
    %441 = arith.addf %440, %285 : vector<2x96xf32>
    %442 = vector.extract_strided_slice %439 {offsets = [0, 0], sizes = [2, 64], strides = [1, 1]} : vector<2x96xf32> to vector<2x64xf32>
    %443 = vector.extract_strided_slice %441 {offsets = [0, 0], sizes = [2, 64], strides = [1, 1]} : vector<2x96xf32> to vector<2x64xf32>
    %444 = arith.addf %442, %443 : vector<2x64xf32>
    %445 = arith.negf %444 : vector<2x64xf32>
    %446 = math.exp %445 : vector<2x64xf32>
    %cst_82 = arith.constant 1.000000e+00 : f32
    %447 = vector.broadcast %cst_82 : f32 to vector<2x64xf32>
    %448 = arith.addf %447, %446 : vector<2x64xf32>
    %449 = arith.divf %447, %448 : vector<2x64xf32>
    %450 = vector.extract_strided_slice %449 {offsets = [0, 0], sizes = [2, 32], strides = [1, 1]} : vector<2x64xf32> to vector<2x32xf32>
    %451 = vector.extract_strided_slice %449 {offsets = [0, 32], sizes = [2, 32], strides = [1, 1]} : vector<2x64xf32> to vector<2x32xf32>
    %452 = vector.extract_strided_slice %439 {offsets = [0, 64], sizes = [2, 32], strides = [1, 1]} : vector<2x96xf32> to vector<2x32xf32>
    %453 = vector.extract_strided_slice %441 {offsets = [0, 64], sizes = [2, 32], strides = [1, 1]} : vector<2x96xf32> to vector<2x32xf32>
    %454 = arith.mulf %450, %453 : vector<2x32xf32>
    %455 = arith.addf %452, %454 : vector<2x32xf32>
    %456 = math.tanh %455 : vector<2x32xf32>
    %cst_83 = arith.constant 1.000000e+00 : f32
    %457 = vector.broadcast %cst_83 : f32 to vector<2x32xf32>
    %458 = arith.subf %457, %451 : vector<2x32xf32>
    %459 = arith.mulf %458, %456 : vector<2x32xf32>
    %460 = arith.mulf %451, %431 : vector<2x32xf32>
    %461 = arith.addf %459, %460 : vector<2x32xf32>
    %c6_i32_84 = arith.constant 6 : i32
    %462 = vector.broadcast %c6_i32_84 : i32 to vector<2x8x32xi32>
    %463 = arith.cmpi eq, %286, %462 : vector<2x8x32xi32>
    %464 = vector.shape_cast %461 : vector<2x32xf32> to vector<2x1x32xf32>
    %465 = vector.shape_cast %464 : vector<2x1x32xf32> to vector<2x1x32xf32>
    %466 = vector.broadcast %465 : vector<2x1x32xf32> to vector<2x8x32xf32>
    %467 = arith.select %463, %466, %437 : vector<2x8x32xi1>, vector<2x8x32xf32>
    %468 = vector.extract_strided_slice %281 {offsets = [0, 6, 0], sizes = [2, 1, 96], strides = [1, 1, 1]} : vector<2x8x96xf32> to vector<2x1x96xf32>
    %469 = vector.shape_cast %468 : vector<2x1x96xf32> to vector<2x96xf32>
    %cst_85 = arith.constant dense<0.000000e+00> : vector<2x96xf32>
    %470 = tpu.matmul %461, %282, %cst_85 {dimension_numbers = #tpu.dot_dimension_numbers<[1], [0], [0], [1], [0, 0, 1, 1], [], []>} : vector<2x32xf32>, vector<32x96xf32>, vector<2x96xf32> -> vector<2x96xf32>
    %471 = arith.addf %470, %285 : vector<2x96xf32>
    %472 = vector.extract_strided_slice %469 {offsets = [0, 0], sizes = [2, 64], strides = [1, 1]} : vector<2x96xf32> to vector<2x64xf32>
    %473 = vector.extract_strided_slice %471 {offsets = [0, 0], sizes = [2, 64], strides = [1, 1]} : vector<2x96xf32> to vector<2x64xf32>
    %474 = arith.addf %472, %473 : vector<2x64xf32>
    %475 = arith.negf %474 : vector<2x64xf32>
    %476 = math.exp %475 : vector<2x64xf32>
    %cst_86 = arith.constant 1.000000e+00 : f32
    %477 = vector.broadcast %cst_86 : f32 to vector<2x64xf32>
    %478 = arith.addf %477, %476 : vector<2x64xf32>
    %479 = arith.divf %477, %478 : vector<2x64xf32>
    %480 = vector.extract_strided_slice %479 {offsets = [0, 0], sizes = [2, 32], strides = [1, 1]} : vector<2x64xf32> to vector<2x32xf32>
    %481 = vector.extract_strided_slice %479 {offsets = [0, 32], sizes = [2, 32], strides = [1, 1]} : vector<2x64xf32> to vector<2x32xf32>
    %482 = vector.extract_strided_slice %469 {offsets = [0, 64], sizes = [2, 32], strides = [1, 1]} : vector<2x96xf32> to vector<2x32xf32>
    %483 = vector.extract_strided_slice %471 {offsets = [0, 64], sizes = [2, 32], strides = [1, 1]} : vector<2x96xf32> to vector<2x32xf32>
    %484 = arith.mulf %480, %483 : vector<2x32xf32>
    %485 = arith.addf %482, %484 : vector<2x32xf32>
    %486 = math.tanh %485 : vector<2x32xf32>
    %cst_87 = arith.constant 1.000000e+00 : f32
    %487 = vector.broadcast %cst_87 : f32 to vector<2x32xf32>
    %488 = arith.subf %487, %481 : vector<2x32xf32>
    %489 = arith.mulf %488, %486 : vector<2x32xf32>
    %490 = arith.mulf %481, %461 : vector<2x32xf32>
    %491 = arith.addf %489, %490 : vector<2x32xf32>
    %c7_i32_88 = arith.constant 7 : i32
    %492 = vector.broadcast %c7_i32_88 : i32 to vector<2x8x32xi32>
    %493 = arith.cmpi eq, %286, %492 : vector<2x8x32xi32>
    %494 = vector.shape_cast %491 : vector<2x32xf32> to vector<2x1x32xf32>
    %495 = vector.shape_cast %494 : vector<2x1x32xf32> to vector<2x1x32xf32>
    %496 = vector.broadcast %495 : vector<2x1x32xf32> to vector<2x8x32xf32>
    %497 = arith.select %493, %496, %467 : vector<2x8x32xi1>, vector<2x8x32xf32>
    %498 = vector.shape_cast %497 : vector<2x8x32xf32> to vector<16x32xf32>
    %c0_89 = arith.constant 0 : index
    %c0_90 = arith.constant 0 : index
    %499 = vector.load %arg14[%c0_89, %c0_90] : memref<32x16xf32, #tpu.memory_space<vmem>>, vector<32x16xf32>
    %cst_91 = arith.constant dense<0.000000e+00> : vector<16x16xf32>
    %500 = tpu.matmul %498, %499, %cst_91 {dimension_numbers = #tpu.dot_dimension_numbers<[1], [0], [0], [1], [0, 0, 1, 1], [], []>} : vector<16x32xf32>, vector<32x16xf32>, vector<16x16xf32> -> vector<16x16xf32>
    %c0_92 = arith.constant 0 : index
    %c0_93 = arith.constant 0 : index
    %501 = vector.load %arg15[%c0_92, %c0_93] : memref<1x16xf32, #tpu.memory_space<vmem>>, vector<1x16xf32>
    %502 = vector.broadcast %501 : vector<1x16xf32> to vector<16x16xf32>
    %503 = arith.addf %500, %502 : vector<16x16xf32>
    %504 = vector.shape_cast %503 : vector<16x16xf32> to vector<2x8x16xf32>
    %505 = tpu.iota {dimensions = array<i32: 1>} : vector<2x16xi32>
    %c0_i32_94 = arith.constant 0 : i32
    %506 = vector.broadcast %c0_i32_94 : i32 to vector<2x16xi32>
    %507 = arith.cmpi eq, %505, %506 : vector<2x16xi32>
    %508 = arith.extui %507 : vector<2x16xi1> to vector<2x16xi32>
    %509 = arith.sitofp %508 : vector<2x16xi32> to vector<2x16xf32>
    %cst_95 = arith.constant 9.99999971E-10 : f32
    %510 = vector.broadcast %cst_95 : f32 to vector<2x16xf32>
    %511 = arith.addf %509, %510 : vector<2x16xf32>
    %512 = math.log %511 : vector<2x16xf32>
    %513 = tpu.iota {dimensions = array<i32: 1>} : vector<2x8x16xi32>
    %c0_i32_96 = arith.constant 0 : i32
    %514 = vector.broadcast %c0_i32_96 : i32 to vector<2x8x16xi32>
    %515 = arith.cmpi eq, %513, %514 : vector<2x8x16xi32>
    %516 = vector.shape_cast %512 : vector<2x16xf32> to vector<2x1x16xf32>
    %517 = vector.shape_cast %516 : vector<2x1x16xf32> to vector<2x1x16xf32>
    %518 = vector.broadcast %517 : vector<2x1x16xf32> to vector<2x8x16xf32>
    %519 = arith.select %515, %518, %504 : vector<2x8x16xi1>, vector<2x8x16xf32>
    %c0_97 = arith.constant 0 : index
    %c0_98 = arith.constant 0 : index
    %c0_99 = arith.constant 0 : index
    %520 = vector.load %arg16[%c0_97, %c0_98, %c0_99] : memref<2x8x16xf32, #tpu.memory_space<vmem>>, vector<2x8x16xf32>
    tpu.vector_store %arg16[%c0_97, %c0_98, %c0_99], %519 {strides = array<i32>} : memref<2x8x16xf32, #tpu.memory_space<vmem>>, vector<2x8x16xf32>,
    return
  }
}

</mosaic_0001>

<llo_original>
// kernel: forward.1
$region0: #{forward.1}
  #allocation0 [shape = 'u32[]', space=smem, size = 0x4, offset = 0x4, fixed_abs, tag = 'smem constant byte address 0x4 - core index']
  #allocation1 [shape = 'u32[144,128]{1,0:T(1,128)}', space=vmem, size = 0x12000, scoped, tag = 'internal scratch']
  %s0 = inlined_call_operand.vmem [shape: s32[2,8], index: 0, kind: input, shape index: {}]
  %s1 = inlined_call_operand.vmem [shape: s32[2,8], index: 1, kind: input, shape index: {}]
  %s2 = inlined_call_operand.hbm [shape: f32[16,32], index: 2, kind: input, shape index: {}]
  %s3 = inlined_call_operand.hbm [shape: f32[16,32], index: 3, kind: input, shape index: {}]
  %s4 = inlined_call_operand.vmem [shape: f32[32,96], index: 4, kind: input, shape index: {}]
  %s5 = inlined_call_operand.vmem [shape: f32[32,96], index: 5, kind: input, shape index: {}]
  %s6 = inlined_call_operand.hbm [shape: f32[1,96], index: 6, kind: input, shape index: {}]
  %s7 = inlined_call_operand.hbm [shape: f32[1,96], index: 7, kind: input, shape index: {}]
  %s8 = inlined_call_operand.hbm [shape: f32[32,32], index: 8, kind: input, shape index: {}]
  %s9 = inlined_call_operand.hbm [shape: f32[1,32], index: 9, kind: input, shape index: {}]
  %s10 = inlined_call_operand.hbm [shape: f32[32,96], index: 10, kind: input, shape index: {}]
  %s11 = inlined_call_operand.hbm [shape: f32[32,96], index: 11, kind: input, shape index: {}]
  %s12 = inlined_call_operand.hbm [shape: f32[1,96], index: 12, kind: input, shape index: {}]
  %s13 = inlined_call_operand.hbm [shape: f32[1,96], index: 13, kind: input, shape index: {}]
  %s14 = inlined_call_operand.vmem [shape: f32[32,16], index: 14, kind: input, shape index: {}]
  %s15 = inlined_call_operand.vmem [shape: f32[1,16], index: 15, kind: input, shape index: {}]
  %s16 = inlined_call_operand.hbm [shape: f32[2,8,16], index: 16, kind: output, shape index: {}]
  %s17 = sld [smem:[#allocation0]]
  $region114: #{forward.1} parent=0
    _
  %s19 = ssub.s32 1, %s17
  %s20 = scalar_select 0, %s19, %s17
  $region1: #{forward.1} parent=0
    #allocation2 [shape = 'u8[8192]{0}', space=vmem, size = 0x2000, scoped, tag = 'input window, operand 2, single buffered']
    #allocation3 [shape = 's32[1]{0}', space=sflag, size = 0x4, scoped, tag = 'scoped memory for forward.1']
    #allocation4 [shape = 's32[1]{0}', space=sflag, size = 0x4, scoped, tag = 'scoped memory for forward.1']
    #allocation5 [shape = 'u8[8192]{0}', space=vmem, size = 0x2000, scoped, tag = 'input window, operand 3, single buffered']
    #allocation6 [shape = 's32[1]{0}', space=sflag, size = 0x4, scoped, tag = 'scoped memory for forward.1']
    #allocation7 [shape = 'u8[512]{0}', space=vmem, size = 0x400, scoped, tag = 'input window, operand 6, single buffered']
    #allocation8 [shape = 'u8[512]{0}', space=vmem, size = 0x400, scoped, tag = 'input window, operand 7, single buffered']
    #allocation9 [shape = 's32[1]{0}', space=sflag, size = 0x4, scoped, tag = 'scoped memory for forward.1']
    #allocation10 [shape = 'u8[16384]{0}', space=vmem, size = 0x4000, scoped, tag = 'input window, operand 8, single buffered']
    #allocation11 [shape = 'u8[512]{0}', space=vmem, size = 0x400, scoped, tag = 'input window, operand 9, single buffered']
    #allocation12 [shape = 's32[1]{0}', space=sflag, size = 0x4, scoped, tag = 'scoped memory for forward.1']
    #allocation13 [shape = 'u8[16384]{0}', space=vmem, size = 0x4000, scoped, tag = 'input window, operand 10, single buffered']
    #allocation14 [shape = 'u8[16384]{0}', space=vmem, size = 0x4000, scoped, tag = 'input window, operand 11, single buffered']
    #allocation15 [shape = 's32[1]{0}', space=sflag, size = 0x4, scoped, tag = 'scoped memory for forward.1']
    #allocation16 [shape = 'u8[512]{0}', space=vmem, size = 0x400, scoped, tag = 'input window, operand 12, single buffered']
    #allocation17 [shape = 'u8[512]{0}', space=vmem, size = 0x400, scoped, tag = 'input window, operand 13, single buffered']
    #allocation18 [shape = 's32[1]{0}', space=sflag, size = 0x4, scoped, tag = 'scoped memory for forward.1']
    #allocation19 [shape = 'u8[8192]{0}', space=vmem, size = 0x2000, scoped, tag = 'output window, operand 0, single buffered']
    %21 = vsyncpa [#allocation3], 0
    %22 = vsyncpa [#allocation6], 0
    %23 = vsyncpa [#allocation9], 0
    %24 = vsyncpa [#allocation12], 0
    %25 = vsyncpa [#allocation15], 0
    %26 = vsyncpa [#allocation18], 0
    %27 = vsyncpa [#allocation4], 0
    // Predicated region
    $region2: #{forward.1} parent=1 // pred_check
      _
    $region3: #{forward.1} parent=1 // pred_check_branch
      %29 = sbr.rel (0) target = $region5
    $region4: #{forward.1} parent=1 // pred_region
      _
    $region5: #{forward.1} parent=1 // pred_fallthru
      _
    // Predicated region
    $region6: #{forward.1} parent=1 // pred_check
      _
    $region7: #{forward.1} parent=1 // pred_check_branch
      %31 = sbr.rel (0) target = $region9
    $region8: #{forward.1} parent=1 // pred_region
      _
    $region9: #{forward.1} parent=1 // pred_fallthru
      _
    // Predicated region
    $region10: #{forward.1} parent=1 // pred_check
      _
    $region11: #{forward.1} parent=1 // pred_check_branch
      %33 = sbr.rel (0) target = $region13
    $region12: #{forward.1} parent=1 // pred_region
      %s35 = ssub.s32 256, 256
      %36 = vsyncadd [#allocation3], %s35
      %s37 = sshll.u32 [#allocation2], 4
      %s38 = int_to_ptr.vmem [resolvable:$true] %s37
      %43 = dma.hbm_to_vmem [thread:$0]  %s2, 256, %s38, [#allocation3], 128, 128, 8
    $region13: #{forward.1} parent=1 // pred_fallthru
      _
    // Predicated region
    $region14: #{forward.1} parent=1 // pred_check
      _
    $region15: #{forward.1} parent=1 // pred_check_branch
      %45 = sbr.rel (0) target = $region17
    $region16: #{forward.1} parent=1 // pred_region
      %s47 = ssub.s32 256, 256
      %48 = vsyncadd [#allocation6], %s47
      %s49 = sshll.u32 [#allocation5], 4
      %s50 = int_to_ptr.vmem [resolvable:$true] %s49
      %55 = dma.hbm_to_vmem [thread:$0]  %s3, 256, %s50, [#allocation6], 128, 128, 8
    $region17: #{forward.1} parent=1 // pred_fallthru
      _
    // Predicated region
    $region18: #{forward.1} parent=1 // pred_check
      _
    $region19: #{forward.1} parent=1 // pred_check_branch
      %57 = sbr.rel (0) target = $region21
    $region20: #{forward.1} parent=1 // pred_region
      _
    $region21: #{forward.1} parent=1 // pred_fallthru
      _
    // Predicated region
    $region22: #{forward.1} parent=1 // pred_check
      _
    $region23: #{forward.1} parent=1 // pred_check_branch
      %59 = sbr.rel (0) target = $region25
    $region24: #{forward.1} parent=1 // pred_region
      _
    $region25: #{forward.1} parent=1 // pred_fallthru
      _
    // Predicated region
    $region26: #{forward.1} parent=1 // pred_check
      _
    $region27: #{forward.1} parent=1 // pred_check_branch
      %61 = sbr.rel (0) target = $region29
    $region28: #{forward.1} parent=1 // pred_region
      %s63 = ssub.s32 16, 16
      %64 = vsyncadd [#allocation6], %s63
      %s66 = sshll.u32 [#allocation7], 4
      %s67 = int_to_ptr.vmem [resolvable:$true] %s66
      %69 = dma.hbm_to_vmem [thread:$0]  %s6, 16, %s67, [#allocation6]
    $region29: #{forward.1} parent=1 // pred_fallthru
      _
    // Predicated region
    $region30: #{forward.1} parent=1 // pred_check
      _
    $region31: #{forward.1} parent=1 // pred_check_branch
      %71 = sbr.rel (0) target = $region33
    $region32: #{forward.1} parent=1 // pred_region
      %s73 = ssub.s32 16, 16
      %74 = vsyncadd [#allocation9], %s73
      %s76 = sshll.u32 [#allocation8], 4
      %s77 = int_to_ptr.vmem [resolvable:$true] %s76
      %79 = dma.hbm_to_vmem [thread:$0]  %s7, 16, %s77, [#allocation9]
    $region33: #{forward.1} parent=1 // pred_fallthru
      _
    // Predicated region
    $region34: #{forward.1} parent=1 // pred_check
      _
    $region35: #{forward.1} parent=1 // pred_check_branch
      %81 = sbr.rel (0) target = $region37
    $region36: #{forward.1} parent=1 // pred_region
      %s83 = ssub.s32 512, 512
      %84 = vsyncadd [#allocation9], %s83
      %s85 = sshll.u32 [#allocation10], 4
      %s86 = int_to_ptr.vmem [resolvable:$true] %s85
      %91 = dma.hbm_to_vmem [thread:$0]  %s8, 512, %s86, [#allocation9], 128, 128, 8
    $region37: #{forward.1} parent=1 // pred_fallthru
      _
    // Predicated region
    $region38: #{forward.1} parent=1 // pred_check
      _
    $region39: #{forward.1} parent=1 // pred_check_branch
      %93 = sbr.rel (0) target = $region41
    $region40: #{forward.1} parent=1 // pred_region
      %s95 = ssub.s32 16, 16
      %96 = vsyncadd [#allocation12], %s95
      %s98 = sshll.u32 [#allocation11], 4
      %s99 = int_to_ptr.vmem [resolvable:$true] %s98
      %101 = dma.hbm_to_vmem [thread:$0]  %s9, 16, %s99, [#allocation12]
    $region41: #{forward.1} parent=1 // pred_fallthru
      _
    // Predicated region
    $region42: #{forward.1} parent=1 // pred_check
      _
    $region43: #{forward.1} parent=1 // pred_check_branch
      %103 = sbr.rel (0) target = $region45
    $region44: #{forward.1} parent=1 // pred_region
      %s105 = ssub.s32 512, 512
      %106 = vsyncadd [#allocation12], %s105
      %s107 = sshll.u32 [#allocation13], 4
      %s108 = int_to_ptr.vmem [resolvable:$true] %s107
      %113 = dma.hbm_to_vmem [thread:$0]  %s10, 512, %s108, [#allocation12], 128, 128, 8
    $region45: #{forward.1} parent=1 // pred_fallthru
      _
    // Predicated region
    $region46: #{forward.1} parent=1 // pred_check
      _
    $region47: #{forward.1} parent=1 // pred_check_branch
      %115 = sbr.rel (0) target = $region49
    $region48: #{forward.1} parent=1 // pred_region
      %s117 = ssub.s32 512, 512
      %118 = vsyncadd [#allocation15], %s117
      %s119 = sshll.u32 [#allocation14], 4
      %s120 = int_to_ptr.vmem [resolvable:$true] %s119
      %125 = dma.hbm_to_vmem [thread:$0]  %s11, 512, %s120, [#allocation15], 128, 128, 8
    $region49: #{forward.1} parent=1 // pred_fallthru
      _
    // Predicated region
    $region50: #{forward.1} parent=1 // pred_check
      _
    $region51: #{forward.1} parent=1 // pred_check_branch
      %127 = sbr.rel (0) target = $region53
    $region52: #{forward.1} parent=1 // pred_region
      %s129 = ssub.s32 16, 16
      %130 = vsyncadd [#allocation15], %s129
      %s132 = sshll.u32 [#allocation16], 4
      %s133 = int_to_ptr.vmem [resolvable:$true] %s132
      %135 = dma.hbm_to_vmem [thread:$0]  %s12, 16, %s133, [#allocation15]
    $region53: #{forward.1} parent=1 // pred_fallthru
      _
    // Predicated region
    $region54: #{forward.1} parent=1 // pred_check
      _
    $region55: #{forward.1} parent=1 // pred_check_branch
      %137 = sbr.rel (0) target = $region57
    $region56: #{forward.1} parent=1 // pred_region
      %s139 = ssub.s32 16, 16
      %140 = vsyncadd [#allocation18], %s139
      %s142 = sshll.u32 [#allocation17], 4
      %s143 = int_to_ptr.vmem [resolvable:$true] %s142
      %145 = dma.hbm_to_vmem [thread:$0]  %s13, 16, %s143, [#allocation18]
    $region57: #{forward.1} parent=1 // pred_fallthru
      _
    // Predicated region
    $region58: #{forward.1} parent=1 // pred_check
      _
    $region59: #{forward.1} parent=1 // pred_check_branch
      %147 = sbr.rel (0) target = $region61
    $region60: #{forward.1} parent=1 // pred_region
      _
    $region61: #{forward.1} parent=1 // pred_fallthru
      _
    // Predicated region
    $region62: #{forward.1} parent=1 // pred_check
      _
    $region63: #{forward.1} parent=1 // pred_check_branch
      %149 = sbr.rel (0) target = $region65
    $region64: #{forward.1} parent=1 // pred_region
      _
    $region65: #{forward.1} parent=1 // pred_fallthru
      _
    // Predicated region
    $region66: #{forward.1} parent=1 // pred_check
      _
    $region67: #{forward.1} parent=1 // pred_check_branch
      %151 = sbr.rel (0) target = $region69
    $region68: #{forward.1} parent=1 // pred_region
      %152 = dma.done [#allocation3], 256
    $region69: #{forward.1} parent=1 // pred_fallthru
      _
    // Predicated region
    $region70: #{forward.1} parent=1 // pred_check
      _
    $region71: #{forward.1} parent=1 // pred_check_branch
      %154 = sbr.rel (0) target = $region73
    $region72: #{forward.1} parent=1 // pred_region
      %155 = dma.done [#allocation6], 256
    $region73: #{forward.1} parent=1 // pred_fallthru
      _
    // Predicated region
    $region74: #{forward.1} parent=1 // pred_check
      _
    $region75: #{forward.1} parent=1 // pred_check_branch
      %157 = sbr.rel (0) target = $region77
    $region76: #{forward.1} parent=1 // pred_region
      %158 = dma.done [#allocation6], 16
    $region77: #{forward.1} parent=1 // pred_fallthru
      _
    // Predicated region
    $region78: #{forward.1} parent=1 // pred_check
      _
    $region79: #{forward.1} parent=1 // pred_check_branch
      %160 = sbr.rel (0) target = $region81
    $region80: #{forward.1} parent=1 // pred_region
      %161 = dma.done [#allocation9], 16
    $region81: #{forward.1} parent=1 // pred_fallthru
      _
    // Predicated region
    $region82: #{forward.1} parent=1 // pred_check
      _
    $region83: #{forward.1} parent=1 // pred_check_branch
      %163 = sbr.rel (0) target = $region85
    $region84: #{forward.1} parent=1 // pred_region
      %164 = dma.done [#allocation9], 512
    $region85: #{forward.1} parent=1 // pred_fallthru
      _
    // Predicated region
    $region86: #{forward.1} parent=1 // pred_check
      _
    $region87: #{forward.1} parent=1 // pred_check_branch
      %166 = sbr.rel (0) target = $region89
    $region88: #{forward.1} parent=1 // pred_region
      %167 = dma.done [#allocation12], 16
    $region89: #{forward.1} parent=1 // pred_fallthru
      _
    // Predicated region
    $region90: #{forward.1} parent=1 // pred_check
      _
    $region91: #{forward.1} parent=1 // pred_check_branch
      %169 = sbr.rel (0) target = $region93
    $region92: #{forward.1} parent=1 // pred_region
      %170 = dma.done [#allocation12], 512
    $region93: #{forward.1} parent=1 // pred_fallthru
      _
    // Predicated region
    $region94: #{forward.1} parent=1 // pred_check
      _
    $region95: #{forward.1} parent=1 // pred_check_branch
      %172 = sbr.rel (0) target = $region97
    $region96: #{forward.1} parent=1 // pred_region
      %173 = dma.done [#allocation15], 512
    $region97: #{forward.1} parent=1 // pred_fallthru
      _
    // Predicated region
    $region98: #{forward.1} parent=1 // pred_check
      _
    $region99: #{forward.1} parent=1 // pred_check_branch
      %175 = sbr.rel (0) target = $region101
    $region100: #{forward.1} parent=1 // pred_region
      %176 = dma.done [#allocation15], 16
    $region101: #{forward.1} parent=1 // pred_fallthru
      _
    // Predicated region
    $region102: #{forward.1} parent=1 // pred_check
      _
    $region103: #{forward.1} parent=1 // pred_check_branch
      %178 = sbr.rel (0) target = $region105
    $region104: #{forward.1} parent=1 // pred_region
      %179 = dma.done [#allocation18], 16
    $region105: #{forward.1} parent=1 // pred_fallthru
      _
    %v180 = vld [vmem:[%s0] sm:$0x3]
    %v181 = vlaneseq
    %v182 = vshrl.u32 %v181, 7
    %v183 = vsub.s32 0, %v182
    %v184 = vrot.slane %v180, %v183
    %186 = vbcast.lane.b32.xlu0 %v184, 256
    %v187 = vpop.permute.xlu0 %186
    %v188 = vlaneseq
    %v189 = vshrl.u32 %v188, 7
    %v190 = vsub.s32 1, %v189
    %v191 = vrot.slane %v180, %v190
    %193 = vbcast.lane.b32.xlu0 %v191, 256
    %v194 = vpop.permute.xlu0 %193
    %v195 = vlaneseq
    %v196 = vand.u32 %v195, 127
    %vm197 = vcmp.eq.s32.totalorder %v187, %v196
    %vm198 = vcmp.eq.s32.totalorder %v194, %v196
    %v199 = vsel %vm197, 1, 0
    %v200 = vsel %vm198, 1, 0
    %v201 = vcvt.s32.f32 %v199
    %v202 = vcvt.s32.f32 %v200
    %v203 = vld [vmem:[#allocation2] sm:$0xff]
    %v204 = vld [vmem:[#allocation2 + $0x8] sm:$0xff]
    %vm205 = vcmask 130048
    %v207 = vsel %vm205, %v201, 0
    %v210 = vsel %vm205, %v202, 0
    %212 = vmatprep.subr.mxu0 0.0
    %213 = vmatpush1.msra.mxu0 0.0
    %214 = vmatprep.subr.mxu0 0.0
    %215 = vmatpush1.msra.mxu0 0.0
    %216 = vmatprep.subr.mxu0 0.0
    %217 = vmatpush1.msra.mxu0 0.0
    %218 = vmatprep.subr.mxu0 0.0
    %219 = vmatpush1.msra.mxu0 0.0
    %220 = vmatprep.subr.mxu0 0.0
    %221 = vmatpush1.msra.mxu0 0.0
    %222 = vmatprep.subr.mxu0 0.0
    %223 = vmatpush1.msra.mxu0 0.0
    %224 = vmatprep.subr.mxu0 0.0
    %225 = vmatpush1.msra.mxu0 0.0
    %226 = vmatprep.subr.mxu0 0.0
    %227 = vmatpush1.msra.mxu0 0.0
    %228 = vmatprep.subr.mxu0 0.0
    %229 = vmatpush1.msra.mxu0 0.0
    %230 = vmatprep.subr.mxu0 0.0
    %231 = vmatpush1.msra.mxu0 0.0
    %232 = vmatprep.subr.mxu0 0.0
    %233 = vmatpush1.msra.mxu0 0.0
    %234 = vmatprep.subr.mxu0 0.0
    %235 = vmatpush1.msra.mxu0 0.0
    %236 = vmatprep.subr.mxu0 0.0
    %237 = vmatpush1.msra.mxu0 0.0
    %238 = vmatprep.subr.mxu0 0.0
    %239 = vmatpush1.msra.mxu0 0.0
    %240 = vmatprep.subr.mxu0 0.0
    %241 = vmatpush1.msra.mxu0 %v204
    %242 = vmatprep.subr.mxu0 0.0
    %243 = vmatpush1.msra.mxu0 %v203
    %244 = vmatprep.subr.mxu0 0.0
    %245 = vmatpush2.msra.mxu0 0.0
    %246 = vmatprep.subr.mxu0 0.0
    %247 = vmatpush2.msra.mxu0 0.0
    %248 = vmatprep.subr.mxu0 0.0
    %249 = vmatpush2.msra.mxu0 0.0
    %250 = vmatprep.subr.mxu0 0.0
    %251 = vmatpush2.msra.mxu0 0.0
    %252 = vmatprep.subr.mxu0 0.0
    %253 = vmatpush2.msra.mxu0 0.0
    %254 = vmatprep.subr.mxu0 0.0
    %255 = vmatpush2.msra.mxu0 0.0
    %256 = vmatprep.subr.mxu0 0.0
    %257 = vmatpush2.msra.mxu0 0.0
    %258 = vmatprep.subr.mxu0 0.0
    %259 = vmatpush2.msra.mxu0 0.0
    %260 = vmatprep.subr.mxu0 0.0
    %261 = vmatpush2.msra.mxu0 0.0
    %262 = vmatprep.subr.mxu0 0.0
    %263 = vmatpush2.msra.mxu0 0.0
    %264 = vmatprep.subr.mxu0 0.0
    %265 = vmatpush2.msra.mxu0 0.0
    %266 = vmatprep.subr.mxu0 0.0
    %267 = vmatpush2.msra.mxu0 0.0
    %268 = vmatprep.subr.mxu0 0.0
    %269 = vmatpush2.msra.mxu0 0.0
    %270 = vmatprep.subr.mxu0 0.0
    %271 = vmatpush2.msra.mxu0 0.0
    %272 = vmatprep.subr.mxu0 0.0
    %273 = vmatpush2.msra.mxu0 0.0
    %274 = vmatprep.subr.mxu0 0.0
    %275 = vmatpush2.msra.mxu0 0.0
    %276 = vmatprep.mubr.f32.mxu0 0.0
    %277 = vmatmul.mubr.f32.gmra.mxu0 %v207
    %v278 = vpop.f32.mrf.mxu0
    %v279 = vadd.f32 0.0, %v278
    %v280 = vpop.f32.mrf.mxu0
    %281 = vmatprep.mubr.f32.mxu0 0.0
    %282 = vmatmul.mubr.f32.gmra.mxu0 %v210
    %v283 = vpop.f32.mrf.mxu0
    %v284 = vadd.f32 0.0, %v283
    %v285 = vpop.f32.mrf.mxu0
    %286 = vdwg.mxu0
    %v287 = vld [vmem:[%s4] sm:$0xff]
    %v288 = vld [vmem:[%s4 + $0x8] sm:$0xff]
    %v289 = vld [vmem:[%s4 + $0x10] sm:$0xff]
    %v290 = vld [vmem:[%s4 + $0x18] sm:$0xff]
    %v291 = vld [vmem:[#allocation7] sm:$0x1]
    %v293 = vlaneseq
    %v294 = vshrl.u32 %v293, 7
    %v295 = vsub.s32 0, %v294
    %v296 = vrot.slane %v291, %v295
    %vm298 = vcmask 261120
    %v300 = vsel %vm298, %v279, 0
    %v303 = vsel %vm298, %v284, 0
    %305 = vmatprep.subr.mxu0 0.0
    %306 = vmatpush1.msra.mxu0 0.0
    %307 = vmatprep.subr.mxu0 0.0
    %308 = vmatpush1.msra.mxu0 0.0
    %309 = vmatprep.subr.mxu0 0.0
    %310 = vmatpush1.msra.mxu0 0.0
    %311 = vmatprep.subr.mxu0 0.0
    %312 = vmatpush1.msra.mxu0 0.0
    %313 = vmatprep.subr.mxu0 0.0
    %314 = vmatpush1.msra.mxu0 0.0
    %315 = vmatprep.subr.mxu0 0.0
    %316 = vmatpush1.msra.mxu0 0.0
    %317 = vmatprep.subr.mxu0 0.0
    %318 = vmatpush1.msra.mxu0 0.0
    %319 = vmatprep.subr.mxu0 0.0
    %320 = vmatpush1.msra.mxu0 0.0
    %321 = vmatprep.subr.mxu0 0.0
    %322 = vmatpush1.msra.mxu0 0.0
    %323 = vmatprep.subr.mxu0 0.0
    %324 = vmatpush1.msra.mxu0 0.0
    %325 = vmatprep.subr.mxu0 0.0
    %326 = vmatpush1.msra.mxu0 0.0
    %327 = vmatprep.subr.mxu0 0.0
    %328 = vmatpush1.msra.mxu0 0.0
    %329 = vmatprep.subr.mxu0 0.0
    %330 = vmatpush1.msra.mxu0 %v290
    %331 = vmatprep.subr.mxu0 0.0
    %332 = vmatpush1.msra.mxu0 %v289
    %333 = vmatprep.subr.mxu0 0.0
    %334 = vmatpush1.msra.mxu0 %v288
    %335 = vmatprep.subr.mxu0 0.0
    %336 = vmatpush1.msra.mxu0 %v287
    %337 = vmatprep.subr.mxu0 0.0
    %338 = vmatpush2.msra.mxu0 0.0
    %339 = vmatprep.subr.mxu0 0.0
    %340 = vmatpush2.msra.mxu0 0.0
    %341 = vmatprep.subr.mxu0 0.0
    %342 = vmatpush2.msra.mxu0 0.0
    %343 = vmatprep.subr.mxu0 0.0
    %344 = vmatpush2.msra.mxu0 0.0
    %345 = vmatprep.subr.mxu0 0.0
    %346 = vmatpush2.msra.mxu0 0.0
    %347 = vmatprep.subr.mxu0 0.0
    %348 = vmatpush2.msra.mxu0 0.0
    %349 = vmatprep.subr.mxu0 0.0
    %350 = vmatpush2.msra.mxu0 0.0
    %351 = vmatprep.subr.mxu0 0.0
    %352 = vmatpush2.msra.mxu0 0.0
    %353 = vmatprep.subr.mxu0 0.0
    %354 = vmatpush2.msra.mxu0 0.0
    %355 = vmatprep.subr.mxu0 0.0
    %356 = vmatpush2.msra.mxu0 0.0
    %357 = vmatprep.subr.mxu0 0.0
    %358 = vmatpush2.msra.mxu0 0.0
    %359 = vmatprep.subr.mxu0 0.0
    %360 = vmatpush2.msra.mxu0 0.0
    %361 = vmatprep.subr.mxu0 0.0
    %362 = vmatpush2.msra.mxu0 0.0
    %363 = vmatprep.subr.mxu0 0.0
    %364 = vmatpush2.msra.mxu0 0.0
    %365 = vmatprep.subr.mxu0 0.0
    %366 = vmatpush2.msra.mxu0 0.0
    %367 = vmatprep.subr.mxu0 0.0
    %368 = vmatpush2.msra.mxu0 0.0
    %369 = vmatprep.mubr.f32.mxu0 0.0
    %370 = vmatmul.mubr.f32.gmra.mxu0 %v300
    %v371 = vpop.f32.mrf.mxu0
    %v372 = vadd.f32 %v296, %v371
    %v373 = vpop.f32.mrf.mxu0
    %374 = vmatprep.mubr.f32.mxu0 0.0
    %375 = vmatmul.mubr.f32.gmra.mxu0 %v303
    %v376 = vpop.f32.mrf.mxu0
    %v377 = vadd.f32 %v296, %v376
    %v378 = vpop.f32.mrf.mxu0
    %379 = vdwg.mxu0
    %v380 = vld [vmem:[%s5] sm:$0xff]
    %v381 = vld [vmem:[%s5 + $0x8] sm:$0xff]
    %v382 = vld [vmem:[%s5 + $0x10] sm:$0xff]
    %v383 = vld [vmem:[%s5 + $0x18] sm:$0xff]
    %v384 = vld [vmem:[#allocation8] sm:$0x1]
    %v386 = vlaneseq
    %v387 = vshrl.u32 %v386, 7
    %v388 = vsub.s32 0, %v387
    %v389 = vrot.slane %v384, %v388
    %vm391 = vcmp.ne.s32.totalorder %v180, 1
    %v392 = vsel %vm391, 1, 0
    %vm393 = vcmask 58368
    %v394 = vsel %vm393, %v392, 0
    %v395 = vand.u32 %v394, 65535
    %v396 = vshrl.u32 %v394, 16
    %v397 = vcvt.s32.f32 %v395
    %v398 = vcvt.s32.f32 %v396
    %399 = vadd.xlane.f32.xlu0 %v397
    %v400 = vpop.xlane.xlu0 %399
    %401 = vadd.xlane.f32.xlu0 %v398
    %v402 = vpop.xlane.xlu0 %401
    %v403 = vcvt.f32.s32 %v400
    %v404 = vcvt.f32.s32 %v402
    %v405 = vshll.u32 %v404, 16
    %v406 = vadd.s32 %v405, %v403
    %vm407 = vcmp.lt.s32.totalorder %v406, 7
    %v408 = vsel %vm407, %v406, 7
    %v410 = vsel %vm298, 0.0, 0
    %412 = vmatprep.subr.mxu0 0.0
    %413 = vmatpush1.msra.mxu0 0.0
    %414 = vmatprep.subr.mxu0 0.0
    %415 = vmatpush1.msra.mxu0 0.0
    %416 = vmatprep.subr.mxu0 0.0
    %417 = vmatpush1.msra.mxu0 0.0
    %418 = vmatprep.subr.mxu0 0.0
    %419 = vmatpush1.msra.mxu0 0.0
    %420 = vmatprep.subr.mxu0 0.0
    %421 = vmatpush1.msra.mxu0 0.0
    %422 = vmatprep.subr.mxu0 0.0
    %423 = vmatpush1.msra.mxu0 0.0
    %424 = vmatprep.subr.mxu0 0.0
    %425 = vmatpush1.msra.mxu0 0.0
    %426 = vmatprep.subr.mxu0 0.0
    %427 = vmatpush1.msra.mxu0 0.0
    %428 = vmatprep.subr.mxu0 0.0
    %429 = vmatpush1.msra.mxu0 0.0
    %430 = vmatprep.subr.mxu0 0.0
    %431 = vmatpush1.msra.mxu0 0.0
    %432 = vmatprep.subr.mxu0 0.0
    %433 = vmatpush1.msra.mxu0 0.0
    %434 = vmatprep.subr.mxu0 0.0
    %435 = vmatpush1.msra.mxu0 0.0
    %436 = vmatprep.subr.mxu0 0.0
    %437 = vmatpush1.msra.mxu0 %v383
    %438 = vmatprep.subr.mxu0 0.0
    %439 = vmatpush1.msra.mxu0 %v382
    %440 = vmatprep.subr.mxu0 0.0
    %441 = vmatpush1.msra.mxu0 %v381
    %442 = vmatprep.subr.mxu0 0.0
    %443 = vmatpush1.msra.mxu0 %v380
    %444 = vmatprep.subr.mxu0 0.0
    %445 = vmatpush2.msra.mxu0 0.0
    %446 = vmatprep.subr.mxu0 0.0
    %447 = vmatpush2.msra.mxu0 0.0
    %448 = vmatprep.subr.mxu0 0.0
    %449 = vmatpush2.msra.mxu0 0.0
    %450 = vmatprep.subr.mxu0 0.0
    %451 = vmatpush2.msra.mxu0 0.0
    %452 = vmatprep.subr.mxu0 0.0
    %453 = vmatpush2.msra.mxu0 0.0
    %454 = vmatprep.subr.mxu0 0.0
    %455 = vmatpush2.msra.mxu0 0.0
    %456 = vmatprep.subr.mxu0 0.0
    %457 = vmatpush2.msra.mxu0 0.0
    %458 = vmatprep.subr.mxu0 0.0
    %459 = vmatpush2.msra.mxu0 0.0
    %460 = vmatprep.subr.mxu0 0.0
    %461 = vmatpush2.msra.mxu0 0.0
    %462 = vmatprep.subr.mxu0 0.0
    %463 = vmatpush2.msra.mxu0 0.0
    %464 = vmatprep.subr.mxu0 0.0
    %465 = vmatpush2.msra.mxu0 0.0
    %466 = vmatprep.subr.mxu0 0.0
    %467 = vmatpush2.msra.mxu0 0.0
    %468 = vmatprep.subr.mxu0 0.0
    %469 = vmatpush2.msra.mxu0 0.0
    %470 = vmatprep.subr.mxu0 0.0
    %471 = vmatpush2.msra.mxu0 0.0
    %472 = vmatprep.subr.mxu0 0.0
    %473 = vmatpush2.msra.mxu0 0.0
    %474 = vmatprep.subr.mxu0 0.0
    %475 = vmatpush2.msra.mxu0 0.0
    %476 = vmatprep.mubr.f32.mxu0 0.0
    %477 = vmatmul.mubr.f32.gmra.mxu0 %v410
    %v478 = vpop.f32.mrf.mxu0
    %v479 = vadd.f32 %v389, %v478
    %v480 = vpop.f32.mrf.mxu0
    %481 = vdwg.mxu0
    %v483 = vrot.slane %v479, 1
    %v486 = vadd.f32 %v372, %v479
    %v487 = vadd.f32 %v377, %v483
    %v488 = vxor.u32 %v486, 2147483648
    %v489 = vxor.u32 %v487, 2147483648
    %v490 = vmul.f32 %v488, 1.442695
    %v491 = vpow.pop %v490
    %v492 = vmul.f32 %v489, 1.442695
    %v493 = vpow.pop %v492
    %v494 = vadd.f32 %v491, 1.0
    %v495 = vadd.f32 %v493, 1.0
    %v496 = vrcp.pop %v494
    %v497 = vmul.f32 1.0, %v496
    %v498 = vrcp.pop %v495
    %v499 = vmul.f32 1.0, %v498
    %500 = vrot.lane.b32.xlu0 %v479, 64
    %v501 = vpop.permute.xlu0 %500
    %502 = vrot.lane.b32.xlu0 %v483, 64
    %v503 = vpop.permute.xlu0 %502
    %v506 = vmul.f32 %v497, %v501
    %v507 = vmul.f32 %v499, %v503
    %510 = vrot.lane.b32.xlu0 %v506, 64
    %v511 = vpop.permute.xlu0 %510
    %512 = vrot.lane.b32.xlu0 %v507, 64
    %v513 = vpop.permute.xlu0 %512
    %v516 = vadd.f32 %v372, %v511
    %v517 = vadd.f32 %v377, %v513
    %v518 = vtanh.pop %v516
    %v519 = vtanh.pop %v517
    %v520 = vsub.f32 1.0, %v497
    %v521 = vsub.f32 1.0, %v499
    %524 = vrot.lane.b32.xlu0 %v518, 96
    %v525 = vpop.permute.xlu0 %524
    %526 = vrot.lane.b32.xlu0 %v519, 96
    %v527 = vpop.permute.xlu0 %526
    %v530 = vmul.f32 %v520, %v525
    %v531 = vmul.f32 %v521, %v527
    %v532 = vmul.f32 %v497, 0.0
    %v533 = vmul.f32 %v499, 0.0
    %v534 = vadd.f32 %v530, %v532
    %v535 = vadd.f32 %v531, %v533
    %vm536 = vcmp.eq.s32.totalorder %v408, 0
    %v537 = vsel %vm536, 1, 0
    %vm538 = vcmp.eq.s32.totalorder %v537, 1
    %v541 = vrot.slane %v535, 7
    %vm542 = vcmask 1041409
    %v543 = vsel %vm542, %v541, %v534
    %544 = vrot.lane.b32.xlu0 %v543, 96
    %v545 = vpop.permute.xlu0 %544
    %v547 = vsel %vm538, %v545, 0.0
    %v548 = vsel %vm298, %v545, 0
    %550 = vmatprep.subr.mxu0 0.0
    %551 = vmatpush1.msra.mxu0 0.0
    %552 = vmatprep.subr.mxu0 0.0
    %553 = vmatpush1.msra.mxu0 0.0
    %554 = vmatprep.subr.mxu0 0.0
    %555 = vmatpush1.msra.mxu0 0.0
    %556 = vmatprep.subr.mxu0 0.0
    %557 = vmatpush1.msra.mxu0 0.0
    %558 = vmatprep.subr.mxu0 0.0
    %559 = vmatpush1.msra.mxu0 0.0
    %560 = vmatprep.subr.mxu0 0.0
    %561 = vmatpush1.msra.mxu0 0.0
    %562 = vmatprep.subr.mxu0 0.0
    %563 = vmatpush1.msra.mxu0 0.0
    %564 = vmatprep.subr.mxu0 0.0
    %565 = vmatpush1.msra.mxu0 0.0
    %566 = vmatprep.subr.mxu0 0.0
    %567 = vmatpush1.msra.mxu0 0.0
    %568 = vmatprep.subr.mxu0 0.0
    %569 = vmatpush1.msra.mxu0 0.0
    %570 = vmatprep.subr.mxu0 0.0
    %571 = vmatpush1.msra.mxu0 0.0
    %572 = vmatprep.subr.mxu0 0.0
    %573 = vmatpush1.msra.mxu0 0.0
    %574 = vmatprep.subr.mxu0 0.0
    %575 = vmatpush1.msra.mxu0 %v383
    %576 = vmatprep.subr.mxu0 0.0
    %577 = vmatpush1.msra.mxu0 %v382
    %578 = vmatprep.subr.mxu0 0.0
    %579 = vmatpush1.msra.mxu0 %v381
    %580 = vmatprep.subr.mxu0 0.0
    %581 = vmatpush1.msra.mxu0 %v380
    %582 = vmatprep.subr.mxu0 0.0
    %583 = vmatpush2.msra.mxu0 0.0
    %584 = vmatprep.subr.mxu0 0.0
    %585 = vmatpush2.msra.mxu0 0.0
    %586 = vmatprep.subr.mxu0 0.0
    %587 = vmatpush2.msra.mxu0 0.0
    %588 = vmatprep.subr.mxu0 0.0
    %589 = vmatpush2.msra.mxu0 0.0
    %590 = vmatprep.subr.mxu0 0.0
    %591 = vmatpush2.msra.mxu0 0.0
    %592 = vmatprep.subr.mxu0 0.0
    %593 = vmatpush2.msra.mxu0 0.0
    %594 = vmatprep.subr.mxu0 0.0
    %595 = vmatpush2.msra.mxu0 0.0
    %596 = vmatprep.subr.mxu0 0.0
    %597 = vmatpush2.msra.mxu0 0.0
    %598 = vmatprep.subr.mxu0 0.0
    %599 = vmatpush2.msra.mxu0 0.0
    %600 = vmatprep.subr.mxu0 0.0
    %601 = vmatpush2.msra.mxu0 0.0
    %602 = vmatprep.subr.mxu0 0.0
    %603 = vmatpush2.msra.mxu0 0.0
    %604 = vmatprep.subr.mxu0 0.0
    %605 = vmatpush2.msra.mxu0 0.0
    %606 = vmatprep.subr.mxu0 0.0
    %607 = vmatpush2.msra.mxu0 0.0
    %608 = vmatprep.subr.mxu0 0.0
    %609 = vmatpush2.msra.mxu0 0.0
    %610 = vmatprep.subr.mxu0 0.0
    %611 = vmatpush2.msra.mxu0 0.0
    %612 = vmatprep.subr.mxu0 0.0
    %613 = vmatpush2.msra.mxu0 0.0
    %614 = vmatprep.mubr.f32.mxu0 0.0
    %615 = vmatmul.mubr.f32.gmra.mxu0 %v548
    %v616 = vpop.f32.mrf.mxu0
    %v617 = vadd.f32 %v389, %v616
    %v618 = vpop.f32.mrf.mxu0
    %619 = vdwg.mxu0
    %v621 = vrot.slane %v617, 7
    %v624 = vadd.f32 %v372, %v621
    %v625 = vadd.f32 %v377, %v617
    %v626 = vxor.u32 %v624, 2147483648
    %v627 = vxor.u32 %v625, 2147483648
    %v628 = vmul.f32 %v626, 1.442695
    %v629 = vpow.pop %v628
    %v630 = vmul.f32 %v627, 1.442695
    %v631 = vpow.pop %v630
    %v632 = vadd.f32 %v629, 1.0
    %v633 = vadd.f32 %v631, 1.0
    %v634 = vrcp.pop %v632
    %v635 = vmul.f32 1.0, %v634
    %v636 = vrcp.pop %v633
    %v637 = vmul.f32 1.0, %v636
    %638 = vrot.lane.b32.xlu0 %v621, 64
    %v639 = vpop.permute.xlu0 %638
    %640 = vrot.lane.b32.xlu0 %v617, 64
    %v641 = vpop.permute.xlu0 %640
    %v644 = vmul.f32 %v635, %v639
    %v645 = vmul.f32 %v637, %v641
    %648 = vrot.lane.b32.xlu0 %v644, 64
    %v649 = vpop.permute.xlu0 %648
    %650 = vrot.lane.b32.xlu0 %v645, 64
    %v651 = vpop.permute.xlu0 %650
    %v654 = vadd.f32 %v372, %v649
    %v655 = vadd.f32 %v377, %v651
    %v656 = vtanh.pop %v654
    %v657 = vtanh.pop %v655
    %v658 = vsub.f32 1.0, %v635
    %v659 = vsub.f32 1.0, %v637
    %662 = vrot.lane.b32.xlu0 %v656, 96
    %v663 = vpop.permute.xlu0 %662
    %664 = vrot.lane.b32.xlu0 %v657, 96
    %v665 = vpop.permute.xlu0 %664
    %v668 = vmul.f32 %v658, %v663
    %v669 = vmul.f32 %v659, %v665
    %v670 = vrot.slane %v534, 7
    %v673 = vmul.f32 %v635, %v670
    %v674 = vmul.f32 %v637, %v541
    %v675 = vadd.f32 %v668, %v673
    %v676 = vadd.f32 %v669, %v674
    %vm677 = vcmp.eq.s32.totalorder %v408, 1
    %v678 = vsel %vm677, 1, 0
    %vm679 = vcmp.eq.s32.totalorder %v678, 1
    %v682 = vrot.slane %v675, 1
    %v683 = vsel %vm542, %v676, %v682
    %684 = vrot.lane.b32.xlu0 %v683, 96
    %v685 = vpop.permute.xlu0 %684
    %v687 = vsel %vm679, %v685, %v547
    %v688 = vsel %vm298, %v685, 0
    %690 = vmatprep.subr.mxu0 0.0
    %691 = vmatpush1.msra.mxu0 0.0
    %692 = vmatprep.subr.mxu0 0.0
    %693 = vmatpush1.msra.mxu0 0.0
    %694 = vmatprep.subr.mxu0 0.0
    %695 = vmatpush1.msra.mxu0 0.0
    %696 = vmatprep.subr.mxu0 0.0
    %697 = vmatpush1.msra.mxu0 0.0
    %698 = vmatprep.subr.mxu0 0.0
    %699 = vmatpush1.msra.mxu0 0.0
    %700 = vmatprep.subr.mxu0 0.0
    %701 = vmatpush1.msra.mxu0 0.0
    %702 = vmatprep.subr.mxu0 0.0
    %703 = vmatpush1.msra.mxu0 0.0
    %704 = vmatprep.subr.mxu0 0.0
    %705 = vmatpush1.msra.mxu0 0.0
    %706 = vmatprep.subr.mxu0 0.0
    %707 = vmatpush1.msra.mxu0 0.0
    %708 = vmatprep.subr.mxu0 0.0
    %709 = vmatpush1.msra.mxu0 0.0
    %710 = vmatprep.subr.mxu0 0.0
    %711 = vmatpush1.msra.mxu0 0.0
    %712 = vmatprep.subr.mxu0 0.0
    %713 = vmatpush1.msra.mxu0 0.0
    %714 = vmatprep.subr.mxu0 0.0
    %715 = vmatpush1.msra.mxu0 %v383
    %716 = vmatprep.subr.mxu0 0.0
    %717 = vmatpush1.msra.mxu0 %v382
    %718 = vmatprep.subr.mxu0 0.0
    %719 = vmatpush1.msra.mxu0 %v381
    %720 = vmatprep.subr.mxu0 0.0
    %721 = vmatpush1.msra.mxu0 %v380
    %722 = vmatprep.subr.mxu0 0.0
    %723 = vmatpush2.msra.mxu0 0.0
    %724 = vmatprep.subr.mxu0 0.0
    %725 = vmatpush2.msra.mxu0 0.0
    %726 = vmatprep.subr.mxu0 0.0
    %727 = vmatpush2.msra.mxu0 0.0
    %728 = vmatprep.subr.mxu0 0.0
    %729 = vmatpush2.msra.mxu0 0.0
    %730 = vmatprep.subr.mxu0 0.0
    %731 = vmatpush2.msra.mxu0 0.0
    %732 = vmatprep.subr.mxu0 0.0
    %733 = vmatpush2.msra.mxu0 0.0
    %734 = vmatprep.subr.mxu0 0.0
    %735 = vmatpush2.msra.mxu0 0.0
    %736 = vmatprep.subr.mxu0 0.0
    %737 = vmatpush2.msra.mxu0 0.0
    %738 = vmatprep.subr.mxu0 0.0
    %739 = vmatpush2.msra.mxu0 0.0
    %740 = vmatprep.subr.mxu0 0.0
    %741 = vmatpush2.msra.mxu0 0.0
    %742 = vmatprep.subr.mxu0 0.0
    %743 = vmatpush2.msra.mxu0 0.0
    %744 = vmatprep.subr.mxu0 0.0
    %745 = vmatpush2.msra.mxu0 0.0
    %746 = vmatprep.subr.mxu0 0.0
    %747 = vmatpush2.msra.mxu0 0.0
    %748 = vmatprep.subr.mxu0 0.0
    %749 = vmatpush2.msra.mxu0 0.0
    %750 = vmatprep.subr.mxu0 0.0
    %751 = vmatpush2.msra.mxu0 0.0
    %752 = vmatprep.subr.mxu0 0.0
    %753 = vmatpush2.msra.mxu0 0.0
    %754 = vmatprep.mubr.f32.mxu0 0.0
    %755 = vmatmul.mubr.f32.gmra.mxu0 %v688
    %v756 = vpop.f32.mrf.mxu0
    %v757 = vadd.f32 %v389, %v756
    %v758 = vpop.f32.mrf.mxu0
    %759 = vdwg.mxu0
    %v761 = vrot.slane %v757, 6
    %v762 = vrot.slane %v757, 7
    %v765 = vadd.f32 %v372, %v761
    %v766 = vadd.f32 %v377, %v762
    %v767 = vxor.u32 %v765, 2147483648
    %v768 = vxor.u32 %v766, 2147483648
    %v769 = vmul.f32 %v767, 1.442695
    %v770 = vpow.pop %v769
    %v771 = vmul.f32 %v768, 1.442695
    %v772 = vpow.pop %v771
    %v773 = vadd.f32 %v770, 1.0
    %v774 = vadd.f32 %v772, 1.0
    %v775 = vrcp.pop %v773
    %v776 = vmul.f32 1.0, %v775
    %v777 = vrcp.pop %v774
    %v778 = vmul.f32 1.0, %v777
    %779 = vrot.lane.b32.xlu0 %v761, 64
    %v780 = vpop.permute.xlu0 %779
    %781 = vrot.lane.b32.xlu0 %v762, 64
    %v782 = vpop.permute.xlu0 %781
    %v785 = vmul.f32 %v776, %v780
    %v786 = vmul.f32 %v778, %v782
    %789 = vrot.lane.b32.xlu0 %v785, 64
    %v790 = vpop.permute.xlu0 %789
    %791 = vrot.lane.b32.xlu0 %v786, 64
    %v792 = vpop.permute.xlu0 %791
    %v795 = vadd.f32 %v372, %v790
    %v796 = vadd.f32 %v377, %v792
    %v797 = vtanh.pop %v795
    %v798 = vtanh.pop %v796
    %v799 = vsub.f32 1.0, %v776
    %v800 = vsub.f32 1.0, %v778
    %803 = vrot.lane.b32.xlu0 %v797, 96
    %v804 = vpop.permute.xlu0 %803
    %805 = vrot.lane.b32.xlu0 %v798, 96
    %v806 = vpop.permute.xlu0 %805
    %v809 = vmul.f32 %v799, %v804
    %v810 = vmul.f32 %v800, %v806
    %v811 = vrot.slane %v675, 7
    %v812 = vrot.slane %v676, 7
    %v815 = vmul.f32 %v776, %v811
    %v816 = vmul.f32 %v778, %v812
    %v817 = vadd.f32 %v809, %v815
    %v818 = vadd.f32 %v810, %v816
    %vm819 = vcmp.eq.s32.totalorder %v408, 2
    %v820 = vsel %vm819, 1, 0
    %vm821 = vcmp.eq.s32.totalorder %v820, 1
    %v824 = vrot.slane %v817, 2
    %v825 = vrot.slane %v818, 1
    %v826 = vsel %vm542, %v825, %v824
    %827 = vrot.lane.b32.xlu0 %v826, 96
    %v828 = vpop.permute.xlu0 %827
    %v830 = vsel %vm821, %v828, %v687
    %v831 = vsel %vm298, %v828, 0
    %833 = vmatprep.subr.mxu0 0.0
    %834 = vmatpush1.msra.mxu0 0.0
    %835 = vmatprep.subr.mxu0 0.0
    %836 = vmatpush1.msra.mxu0 0.0
    %837 = vmatprep.subr.mxu0 0.0
    %838 = vmatpush1.msra.mxu0 0.0
    %839 = vmatprep.subr.mxu0 0.0
    %840 = vmatpush1.msra.mxu0 0.0
    %841 = vmatprep.subr.mxu0 0.0
    %842 = vmatpush1.msra.mxu0 0.0
    %843 = vmatprep.subr.mxu0 0.0
    %844 = vmatpush1.msra.mxu0 0.0
    %845 = vmatprep.subr.mxu0 0.0
    %846 = vmatpush1.msra.mxu0 0.0
    %847 = vmatprep.subr.mxu0 0.0
    %848 = vmatpush1.msra.mxu0 0.0
    %849 = vmatprep.subr.mxu0 0.0
    %850 = vmatpush1.msra.mxu0 0.0
    %851 = vmatprep.subr.mxu0 0.0
    %852 = vmatpush1.msra.mxu0 0.0
    %853 = vmatprep.subr.mxu0 0.0
    %854 = vmatpush1.msra.mxu0 0.0
    %855 = vmatprep.subr.mxu0 0.0
    %856 = vmatpush1.msra.mxu0 0.0
    %857 = vmatprep.subr.mxu0 0.0
    %858 = vmatpush1.msra.mxu0 %v383
    %859 = vmatprep.subr.mxu0 0.0
    %860 = vmatpush1.msra.mxu0 %v382
    %861 = vmatprep.subr.mxu0 0.0
    %862 = vmatpush1.msra.mxu0 %v381
    %863 = vmatprep.subr.mxu0 0.0
    %864 = vmatpush1.msra.mxu0 %v380
    %865 = vmatprep.subr.mxu0 0.0
    %866 = vmatpush2.msra.mxu0 0.0
    %867 = vmatprep.subr.mxu0 0.0
    %868 = vmatpush2.msra.mxu0 0.0
    %869 = vmatprep.subr.mxu0 0.0
    %870 = vmatpush2.msra.mxu0 0.0
    %871 = vmatprep.subr.mxu0 0.0
    %872 = vmatpush2.msra.mxu0 0.0
    %873 = vmatprep.subr.mxu0 0.0
    %874 = vmatpush2.msra.mxu0 0.0
    %875 = vmatprep.subr.mxu0 0.0
    %876 = vmatpush2.msra.mxu0 0.0
    %877 = vmatprep.subr.mxu0 0.0
    %878 = vmatpush2.msra.mxu0 0.0
    %879 = vmatprep.subr.mxu0 0.0
    %880 = vmatpush2.msra.mxu0 0.0
    %881 = vmatprep.subr.mxu0 0.0
    %882 = vmatpush2.msra.mxu0 0.0
    %883 = vmatprep.subr.mxu0 0.0
    %884 = vmatpush2.msra.mxu0 0.0
    %885 = vmatprep.subr.mxu0 0.0
    %886 = vmatpush2.msra.mxu0 0.0
    %887 = vmatprep.subr.mxu0 0.0
    %888 = vmatpush2.msra.mxu0 0.0
    %889 = vmatprep.subr.mxu0 0.0
    %890 = vmatpush2.msra.mxu0 0.0
    %891 = vmatprep.subr.mxu0 0.0
    %892 = vmatpush2.msra.mxu0 0.0
    %893 = vmatprep.subr.mxu0 0.0
    %894 = vmatpush2.msra.mxu0 0.0
    %895 = vmatprep.subr.mxu0 0.0
    %896 = vmatpush2.msra.mxu0 0.0
    %897 = vmatprep.mubr.f32.mxu0 0.0
    %898 = vmatmul.mubr.f32.gmra.mxu0 %v831
    %v899 = vpop.f32.mrf.mxu0
    %v900 = vadd.f32 %v389, %v899
    %v901 = vpop.f32.mrf.mxu0
    %902 = vdwg.mxu0
    %v904 = vrot.slane %v900, 5
    %v905 = vrot.slane %v900, 6
    %v908 = vadd.f32 %v372, %v904
    %v909 = vadd.f32 %v377, %v905
    %v910 = vxor.u32 %v908, 2147483648
    %v911 = vxor.u32 %v909, 2147483648
    %v912 = vmul.f32 %v910, 1.442695
    %v913 = vpow.pop %v912
    %v914 = vmul.f32 %v911, 1.442695
    %v915 = vpow.pop %v914
    %v916 = vadd.f32 %v913, 1.0
    %v917 = vadd.f32 %v915, 1.0
    %v918 = vrcp.pop %v916
    %v919 = vmul.f32 1.0, %v918
    %v920 = vrcp.pop %v917
    %v921 = vmul.f32 1.0, %v920
    %922 = vrot.lane.b32.xlu0 %v904, 64
    %v923 = vpop.permute.xlu0 %922
    %924 = vrot.lane.b32.xlu0 %v905, 64
    %v925 = vpop.permute.xlu0 %924
    %v928 = vmul.f32 %v919, %v923
    %v929 = vmul.f32 %v921, %v925
    %932 = vrot.lane.b32.xlu0 %v928, 64
    %v933 = vpop.permute.xlu0 %932
    %934 = vrot.lane.b32.xlu0 %v929, 64
    %v935 = vpop.permute.xlu0 %934
    %v938 = vadd.f32 %v372, %v933
    %v939 = vadd.f32 %v377, %v935
    %v940 = vtanh.pop %v938
    %v941 = vtanh.pop %v939
    %v942 = vsub.f32 1.0, %v919
    %v943 = vsub.f32 1.0, %v921
    %946 = vrot.lane.b32.xlu0 %v940, 96
    %v947 = vpop.permute.xlu0 %946
    %948 = vrot.lane.b32.xlu0 %v941, 96
    %v949 = vpop.permute.xlu0 %948
    %v952 = vmul.f32 %v942, %v947
    %v953 = vmul.f32 %v943, %v949
    %v954 = vrot.slane %v817, 7
    %v955 = vrot.slane %v818, 7
    %v958 = vmul.f32 %v919, %v954
    %v959 = vmul.f32 %v921, %v955
    %v960 = vadd.f32 %v952, %v958
    %v961 = vadd.f32 %v953, %v959
    %vm962 = vcmp.eq.s32.totalorder %v408, 3
    %v963 = vsel %vm962, 1, 0
    %vm964 = vcmp.eq.s32.totalorder %v963, 1
    %v967 = vrot.slane %v960, 3
    %v968 = vrot.slane %v961, 2
    %v969 = vsel %vm542, %v968, %v967
    %970 = vrot.lane.b32.xlu0 %v969, 96
    %v971 = vpop.permute.xlu0 %970
    %v973 = vsel %vm964, %v971, %v830
    %v974 = vsel %vm298, %v971, 0
    %976 = vmatprep.subr.mxu0 0.0
    %977 = vmatpush1.msra.mxu0 0.0
    %978 = vmatprep.subr.mxu0 0.0
    %979 = vmatpush1.msra.mxu0 0.0
    %980 = vmatprep.subr.mxu0 0.0
    %981 = vmatpush1.msra.mxu0 0.0
    %982 = vmatprep.subr.mxu0 0.0
    %983 = vmatpush1.msra.mxu0 0.0
    %984 = vmatprep.subr.mxu0 0.0
    %985 = vmatpush1.msra.mxu0 0.0
    %986 = vmatprep.subr.mxu0 0.0
    %987 = vmatpush1.msra.mxu0 0.0
    %988 = vmatprep.subr.mxu0 0.0
    %989 = vmatpush1.msra.mxu0 0.0
    %990 = vmatprep.subr.mxu0 0.0
    %991 = vmatpush1.msra.mxu0 0.0
    %992 = vmatprep.subr.mxu0 0.0
    %993 = vmatpush1.msra.mxu0 0.0
    %994 = vmatprep.subr.mxu0 0.0
    %995 = vmatpush1.msra.mxu0 0.0
    %996 = vmatprep.subr.mxu0 0.0
    %997 = vmatpush1.msra.mxu0 0.0
    %998 = vmatprep.subr.mxu0 0.0
    %999 = vmatpush1.msra.mxu0 0.0
    %1000 = vmatprep.subr.mxu0 0.0
    %1001 = vmatpush1.msra.mxu0 %v383
    %1002 = vmatprep.subr.mxu0 0.0
    %1003 = vmatpush1.msra.mxu0 %v382
    %1004 = vmatprep.subr.mxu0 0.0
    %1005 = vmatpush1.msra.mxu0 %v381
    %1006 = vmatprep.subr.mxu0 0.0
    %1007 = vmatpush1.msra.mxu0 %v380
    %1008 = vmatprep.subr.mxu0 0.0
    %1009 = vmatpush2.msra.mxu0 0.0
    %1010 = vmatprep.subr.mxu0 0.0
    %1011 = vmatpush2.msra.mxu0 0.0
    %1012 = vmatprep.subr.mxu0 0.0
    %1013 = vmatpush2.msra.mxu0 0.0
    %1014 = vmatprep.subr.mxu0 0.0
    %1015 = vmatpush2.msra.mxu0 0.0
    %1016 = vmatprep.subr.mxu0 0.0
    %1017 = vmatpush2.msra.mxu0 0.0
    %1018 = vmatprep.subr.mxu0 0.0
    %1019 = vmatpush2.msra.mxu0 0.0
    %1020 = vmatprep.subr.mxu0 0.0
    %1021 = vmatpush2.msra.mxu0 0.0
    %1022 = vmatprep.subr.mxu0 0.0
    %1023 = vmatpush2.msra.mxu0 0.0
    %1024 = vmatprep.subr.mxu0 0.0
    %1025 = vmatpush2.msra.mxu0 0.0
    %1026 = vmatprep.subr.mxu0 0.0
    %1027 = vmatpush2.msra.mxu0 0.0
    %1028 = vmatprep.subr.mxu0 0.0
    %1029 = vmatpush2.msra.mxu0 0.0
    %1030 = vmatprep.subr.mxu0 0.0
    %1031 = vmatpush2.msra.mxu0 0.0
    %1032 = vmatprep.subr.mxu0 0.0
    %1033 = vmatpush2.msra.mxu0 0.0
    %1034 = vmatprep.subr.mxu0 0.0
    %1035 = vmatpush2.msra.mxu0 0.0
    %1036 = vmatprep.subr.mxu0 0.0
    %1037 = vmatpush2.msra.mxu0 0.0
    %1038 = vmatprep.subr.mxu0 0.0
    %1039 = vmatpush2.msra.mxu0 0.0
    %1040 = vmatprep.mubr.f32.mxu0 0.0
    %1041 = vmatmul.mubr.f32.gmra.mxu0 %v974
    %v1042 = vpop.f32.mrf.mxu0
    %v1043 = vadd.f32 %v389, %v1042
    %v1044 = vpop.f32.mrf.mxu0
    %1045 = vdwg.mxu0
    %v1047 = vrot.slane %v1043, 4
    %v1048 = vrot.slane %v1043, 5
    %v1051 = vadd.f32 %v372, %v1047
    %v1052 = vadd.f32 %v377, %v1048
    %v1053 = vxor.u32 %v1051, 2147483648
    %v1054 = vxor.u32 %v1052, 2147483648
    %v1055 = vmul.f32 %v1053, 1.442695
    %v1056 = vpow.pop %v1055
    %v1057 = vmul.f32 %v1054, 1.442695
    %v1058 = vpow.pop %v1057
    %v1059 = vadd.f32 %v1056, 1.0
    %v1060 = vadd.f32 %v1058, 1.0
    %v1061 = vrcp.pop %v1059
    %v1062 = vmul.f32 1.0, %v1061
    %v1063 = vrcp.pop %v1060
    %v1064 = vmul.f32 1.0, %v1063
    %1065 = vrot.lane.b32.xlu0 %v1047, 64
    %v1066 = vpop.permute.xlu0 %1065
    %1067 = vrot.lane.b32.xlu0 %v1048, 64
    %v1068 = vpop.permute.xlu0 %1067
    %v1071 = vmul.f32 %v1062, %v1066
    %v1072 = vmul.f32 %v1064, %v1068
    %1075 = vrot.lane.b32.xlu0 %v1071, 64
    %v1076 = vpop.permute.xlu0 %1075
    %1077 = vrot.lane.b32.xlu0 %v1072, 64
    %v1078 = vpop.permute.xlu0 %1077
    %v1081 = vadd.f32 %v372, %v1076
    %v1082 = vadd.f32 %v377, %v1078
    %v1083 = vtanh.pop %v1081
    %v1084 = vtanh.pop %v1082
    %v1085 = vsub.f32 1.0, %v1062
    %v1086 = vsub.f32 1.0, %v1064
    %1089 = vrot.lane.b32.xlu0 %v1083, 96
    %v1090 = vpop.permute.xlu0 %1089
    %1091 = vrot.lane.b32.xlu0 %v1084, 96
    %v1092 = vpop.permute.xlu0 %1091
    %v1095 = vmul.f32 %v1085, %v1090
    %v1096 = vmul.f32 %v1086, %v1092
    %v1097 = vrot.slane %v960, 7
    %v1098 = vrot.slane %v961, 7
    %v1101 = vmul.f32 %v1062, %v1097
    %v1102 = vmul.f32 %v1064, %v1098
    %v1103 = vadd.f32 %v1095, %v1101
    %v1104 = vadd.f32 %v1096, %v1102
    %vm1105 = vcmp.eq.s32.totalorder %v408, 4
    %v1106 = vsel %vm1105, 1, 0
    %vm1107 = vcmp.eq.s32.totalorder %v1106, 1
    %v1110 = vrot.slane %v1103, 4
    %v1111 = vrot.slane %v1104, 3
    %v1112 = vsel %vm542, %v1111, %v1110
    %1113 = vrot.lane.b32.xlu0 %v1112, 96
    %v1114 = vpop.permute.xlu0 %1113
    %v1116 = vsel %vm1107, %v1114, %v973
    %v1117 = vsel %vm298, %v1114, 0
    %1119 = vmatprep.subr.mxu0 0.0
    %1120 = vmatpush1.msra.mxu0 0.0
    %1121 = vmatprep.subr.mxu0 0.0
    %1122 = vmatpush1.msra.mxu0 0.0
    %1123 = vmatprep.subr.mxu0 0.0
    %1124 = vmatpush1.msra.mxu0 0.0
    %1125 = vmatprep.subr.mxu0 0.0
    %1126 = vmatpush1.msra.mxu0 0.0
    %1127 = vmatprep.subr.mxu0 0.0
    %1128 = vmatpush1.msra.mxu0 0.0
    %1129 = vmatprep.subr.mxu0 0.0
    %1130 = vmatpush1.msra.mxu0 0.0
    %1131 = vmatprep.subr.mxu0 0.0
    %1132 = vmatpush1.msra.mxu0 0.0
    %1133 = vmatprep.subr.mxu0 0.0
    %1134 = vmatpush1.msra.mxu0 0.0
    %1135 = vmatprep.subr.mxu0 0.0
    %1136 = vmatpush1.msra.mxu0 0.0
    %1137 = vmatprep.subr.mxu0 0.0
    %1138 = vmatpush1.msra.mxu0 0.0
    %1139 = vmatprep.subr.mxu0 0.0
    %1140 = vmatpush1.msra.mxu0 0.0
    %1141 = vmatprep.subr.mxu0 0.0
    %1142 = vmatpush1.msra.mxu0 0.0
    %1143 = vmatprep.subr.mxu0 0.0
    %1144 = vmatpush1.msra.mxu0 %v383
    %1145 = vmatprep.subr.mxu0 0.0
    %1146 = vmatpush1.msra.mxu0 %v382
    %1147 = vmatprep.subr.mxu0 0.0
    %1148 = vmatpush1.msra.mxu0 %v381
    %1149 = vmatprep.subr.mxu0 0.0
    %1150 = vmatpush1.msra.mxu0 %v380
    %1151 = vmatprep.subr.mxu0 0.0
    %1152 = vmatpush2.msra.mxu0 0.0
    %1153 = vmatprep.subr.mxu0 0.0
    %1154 = vmatpush2.msra.mxu0 0.0
    %1155 = vmatprep.subr.mxu0 0.0
    %1156 = vmatpush2.msra.mxu0 0.0
    %1157 = vmatprep.subr.mxu0 0.0
    %1158 = vmatpush2.msra.mxu0 0.0
    %1159 = vmatprep.subr.mxu0 0.0
    %1160 = vmatpush2.msra.mxu0 0.0
    %1161 = vmatprep.subr.mxu0 0.0
    %1162 = vmatpush2.msra.mxu0 0.0
    %1163 = vmatprep.subr.mxu0 0.0
    %1164 = vmatpush2.msra.mxu0 0.0
    %1165 = vmatprep.subr.mxu0 0.0
    %1166 = vmatpush2.msra.mxu0 0.0
    %1167 = vmatprep.subr.mxu0 0.0
    %1168 = vmatpush2.msra.mxu0 0.0
    %1169 = vmatprep.subr.mxu0 0.0
    %1170 = vmatpush2.msra.mxu0 0.0
    %1171 = vmatprep.subr.mxu0 0.0
    %1172 = vmatpush2.msra.mxu0 0.0
    %1173 = vmatprep.subr.mxu0 0.0
    %1174 = vmatpush2.msra.mxu0 0.0
    %1175 = vmatprep.subr.mxu0 0.0
    %1176 = vmatpush2.msra.mxu0 0.0
    %1177 = vmatprep.subr.mxu0 0.0
    %1178 = vmatpush2.msra.mxu0 0.0
    %1179 = vmatprep.subr.mxu0 0.0
    %1180 = vmatpush2.msra.mxu0 0.0
    %1181 = vmatprep.subr.mxu0 0.0
    %1182 = vmatpush2.msra.mxu0 0.0
    %1183 = vmatprep.mubr.f32.mxu0 0.0
    %1184 = vmatmul.mubr.f32.gmra.mxu0 %v1117
    %v1185 = vpop.f32.mrf.mxu0
    %v1186 = vadd.f32 %v389, %v1185
    %v1187 = vpop.f32.mrf.mxu0
    %1188 = vdwg.mxu0
    %v1190 = vrot.slane %v1186, 3
    %v1191 = vrot.slane %v1186, 4
    %v1194 = vadd.f32 %v372, %v1190
    %v1195 = vadd.f32 %v377, %v1191
    %v1196 = vxor.u32 %v1194, 2147483648
    %v1197 = vxor.u32 %v1195, 2147483648
    %v1198 = vmul.f32 %v1196, 1.442695
    %v1199 = vpow.pop %v1198
    %v1200 = vmul.f32 %v1197, 1.442695
    %v1201 = vpow.pop %v1200
    %v1202 = vadd.f32 %v1199, 1.0
    %v1203 = vadd.f32 %v1201, 1.0
    %v1204 = vrcp.pop %v1202
    %v1205 = vmul.f32 1.0, %v1204
    %v1206 = vrcp.pop %v1203
    %v1207 = vmul.f32 1.0, %v1206
    %1208 = vrot.lane.b32.xlu0 %v1190, 64
    %v1209 = vpop.permute.xlu0 %1208
    %1210 = vrot.lane.b32.xlu0 %v1191, 64
    %v1211 = vpop.permute.xlu0 %1210
    %v1214 = vmul.f32 %v1205, %v1209
    %v1215 = vmul.f32 %v1207, %v1211
    %1218 = vrot.lane.b32.xlu0 %v1214, 64
    %v1219 = vpop.permute.xlu0 %1218
    %1220 = vrot.lane.b32.xlu0 %v1215, 64
    %v1221 = vpop.permute.xlu0 %1220
    %v1224 = vadd.f32 %v372, %v1219
    %v1225 = vadd.f32 %v377, %v1221
    %v1226 = vtanh.pop %v1224
    %v1227 = vtanh.pop %v1225
    %v1228 = vsub.f32 1.0, %v1205
    %v1229 = vsub.f32 1.0, %v1207
    %1232 = vrot.lane.b32.xlu0 %v1226, 96
    %v1233 = vpop.permute.xlu0 %1232
    %1234 = vrot.lane.b32.xlu0 %v1227, 96
    %v1235 = vpop.permute.xlu0 %1234
    %v1238 = vmul.f32 %v1228, %v1233
    %v1239 = vmul.f32 %v1229, %v1235
    %v1240 = vrot.slane %v1103, 7
    %v1241 = vrot.slane %v1104, 7
    %v1244 = vmul.f32 %v1205, %v1240
    %v1245 = vmul.f32 %v1207, %v1241
    %v1246 = vadd.f32 %v1238, %v1244
    %v1247 = vadd.f32 %v1239, %v1245
    %vm1248 = vcmp.eq.s32.totalorder %v408, 5
    %v1249 = vsel %vm1248, 1, 0
    %vm1250 = vcmp.eq.s32.totalorder %v1249, 1
    %v1253 = vrot.slane %v1246, 5
    %v1254 = vrot.slane %v1247, 4
    %v1255 = vsel %vm542, %v1254, %v1253
    %1256 = vrot.lane.b32.xlu0 %v1255, 96
    %v1257 = vpop.permute.xlu0 %1256
    %v1259 = vsel %vm1250, %v1257, %v1116
    %v1260 = vsel %vm298, %v1257, 0
    %1262 = vmatprep.subr.mxu0 0.0
    %1263 = vmatpush1.msra.mxu0 0.0
    %1264 = vmatprep.subr.mxu0 0.0
    %1265 = vmatpush1.msra.mxu0 0.0
    %1266 = vmatprep.subr.mxu0 0.0
    %1267 = vmatpush1.msra.mxu0 0.0
    %1268 = vmatprep.subr.mxu0 0.0
    %1269 = vmatpush1.msra.mxu0 0.0
    %1270 = vmatprep.subr.mxu0 0.0
    %1271 = vmatpush1.msra.mxu0 0.0
    %1272 = vmatprep.subr.mxu0 0.0
    %1273 = vmatpush1.msra.mxu0 0.0
    %1274 = vmatprep.subr.mxu0 0.0
    %1275 = vmatpush1.msra.mxu0 0.0
    %1276 = vmatprep.subr.mxu0 0.0
    %1277 = vmatpush1.msra.mxu0 0.0
    %1278 = vmatprep.subr.mxu0 0.0
    %1279 = vmatpush1.msra.mxu0 0.0
    %1280 = vmatprep.subr.mxu0 0.0
    %1281 = vmatpush1.msra.mxu0 0.0
    %1282 = vmatprep.subr.mxu0 0.0
    %1283 = vmatpush1.msra.mxu0 0.0
    %1284 = vmatprep.subr.mxu0 0.0
    %1285 = vmatpush1.msra.mxu0 0.0
    %1286 = vmatprep.subr.mxu0 0.0
    %1287 = vmatpush1.msra.mxu0 %v383
    %1288 = vmatprep.subr.mxu0 0.0
    %1289 = vmatpush1.msra.mxu0 %v382
    %1290 = vmatprep.subr.mxu0 0.0
    %1291 = vmatpush1.msra.mxu0 %v381
    %1292 = vmatprep.subr.mxu0 0.0
    %1293 = vmatpush1.msra.mxu0 %v380
    %1294 = vmatprep.subr.mxu0 0.0
    %1295 = vmatpush2.msra.mxu0 0.0
    %1296 = vmatprep.subr.mxu0 0.0
    %1297 = vmatpush2.msra.mxu0 0.0
    %1298 = vmatprep.subr.mxu0 0.0
    %1299 = vmatpush2.msra.mxu0 0.0
    %1300 = vmatprep.subr.mxu0 0.0
    %1301 = vmatpush2.msra.mxu0 0.0
    %1302 = vmatprep.subr.mxu0 0.0
    %1303 = vmatpush2.msra.mxu0 0.0
    %1304 = vmatprep.subr.mxu0 0.0
    %1305 = vmatpush2.msra.mxu0 0.0
    %1306 = vmatprep.subr.mxu0 0.0
    %1307 = vmatpush2.msra.mxu0 0.0
    %1308 = vmatprep.subr.mxu0 0.0
    %1309 = vmatpush2.msra.mxu0 0.0
    %1310 = vmatprep.subr.mxu0 0.0
    %1311 = vmatpush2.msra.mxu0 0.0
    %1312 = vmatprep.subr.mxu0 0.0
    %1313 = vmatpush2.msra.mxu0 0.0
    %1314 = vmatprep.subr.mxu0 0.0
    %1315 = vmatpush2.msra.mxu0 0.0
    %1316 = vmatprep.subr.mxu0 0.0
    %1317 = vmatpush2.msra.mxu0 0.0
    %1318 = vmatprep.subr.mxu0 0.0
    %1319 = vmatpush2.msra.mxu0 0.0
    %1320 = vmatprep.subr.mxu0 0.0
    %1321 = vmatpush2.msra.mxu0 0.0
    %1322 = vmatprep.subr.mxu0 0.0
    %1323 = vmatpush2.msra.mxu0 0.0
    %1324 = vmatprep.subr.mxu0 0.0
    %1325 = vmatpush2.msra.mxu0 0.0
    %1326 = vmatprep.mubr.f32.mxu0 0.0
    %1327 = vmatmul.mubr.f32.gmra.mxu0 %v1260
    %v1328 = vpop.f32.mrf.mxu0
    %v1329 = vadd.f32 %v389, %v1328
    %v1330 = vpop.f32.mrf.mxu0
    %1331 = vdwg.mxu0
    %v1333 = vrot.slane %v1329, 2
    %v1334 = vrot.slane %v1329, 3
    %v1337 = vadd.f32 %v372, %v1333
    %v1338 = vadd.f32 %v377, %v1334
    %v1339 = vxor.u32 %v1337, 2147483648
    %v1340 = vxor.u32 %v1338, 2147483648
    %v1341 = vmul.f32 %v1339, 1.442695
    %v1342 = vpow.pop %v1341
    %v1343 = vmul.f32 %v1340, 1.442695
    %v1344 = vpow.pop %v1343
    %v1345 = vadd.f32 %v1342, 1.0
    %v1346 = vadd.f32 %v1344, 1.0
    %v1347 = vrcp.pop %v1345
    %v1348 = vmul.f32 1.0, %v1347
    %v1349 = vrcp.pop %v1346
    %v1350 = vmul.f32 1.0, %v1349
    %1351 = vrot.lane.b32.xlu0 %v1333, 64
    %v1352 = vpop.permute.xlu0 %1351
    %1353 = vrot.lane.b32.xlu0 %v1334, 64
    %v1354 = vpop.permute.xlu0 %1353
    %v1357 = vmul.f32 %v1348, %v1352
    %v1358 = vmul.f32 %v1350, %v1354
    %1361 = vrot.lane.b32.xlu0 %v1357, 64
    %v1362 = vpop.permute.xlu0 %1361
    %1363 = vrot.lane.b32.xlu0 %v1358, 64
    %v1364 = vpop.permute.xlu0 %1363
    %v1367 = vadd.f32 %v372, %v1362
    %v1368 = vadd.f32 %v377, %v1364
    %v1369 = vtanh.pop %v1367
    %v1370 = vtanh.pop %v1368
    %v1371 = vsub.f32 1.0, %v1348
    %v1372 = vsub.f32 1.0, %v1350
    %1375 = vrot.lane.b32.xlu0 %v1369, 96
    %v1376 = vpop.permute.xlu0 %1375
    %1377 = vrot.lane.b32.xlu0 %v1370, 96
    %v1378 = vpop.permute.xlu0 %1377
    %v1381 = vmul.f32 %v1371, %v1376
    %v1382 = vmul.f32 %v1372, %v1378
    %v1383 = vrot.slane %v1246, 7
    %v1384 = vrot.slane %v1247, 7
    %v1387 = vmul.f32 %v1348, %v1383
    %v1388 = vmul.f32 %v1350, %v1384
    %v1389 = vadd.f32 %v1381, %v1387
    %v1390 = vadd.f32 %v1382, %v1388
    %vm1391 = vcmp.eq.s32.totalorder %v408, 6
    %v1392 = vsel %vm1391, 1, 0
    %vm1393 = vcmp.eq.s32.totalorder %v1392, 1
    %v1396 = vrot.slane %v1389, 6
    %v1397 = vrot.slane %v1390, 5
    %v1398 = vsel %vm542, %v1397, %v1396
    %1399 = vrot.lane.b32.xlu0 %v1398, 96
    %v1400 = vpop.permute.xlu0 %1399
    %v1402 = vsel %vm1393, %v1400, %v1259
    %v1403 = vsel %vm298, %v1400, 0
    %1405 = vmatprep.subr.mxu0 0.0
    %1406 = vmatpush1.msra.mxu0 0.0
    %1407 = vmatprep.subr.mxu0 0.0
    %1408 = vmatpush1.msra.mxu0 0.0
    %1409 = vmatprep.subr.mxu0 0.0
    %1410 = vmatpush1.msra.mxu0 0.0
    %1411 = vmatprep.subr.mxu0 0.0
    %1412 = vmatpush1.msra.mxu0 0.0
    %1413 = vmatprep.subr.mxu0 0.0
    %1414 = vmatpush1.msra.mxu0 0.0
    %1415 = vmatprep.subr.mxu0 0.0
    %1416 = vmatpush1.msra.mxu0 0.0
    %1417 = vmatprep.subr.mxu0 0.0
    %1418 = vmatpush1.msra.mxu0 0.0
    %1419 = vmatprep.subr.mxu0 0.0
    %1420 = vmatpush1.msra.mxu0 0.0
    %1421 = vmatprep.subr.mxu0 0.0
    %1422 = vmatpush1.msra.mxu0 0.0
    %1423 = vmatprep.subr.mxu0 0.0
    %1424 = vmatpush1.msra.mxu0 0.0
    %1425 = vmatprep.subr.mxu0 0.0
    %1426 = vmatpush1.msra.mxu0 0.0
    %1427 = vmatprep.subr.mxu0 0.0
    %1428 = vmatpush1.msra.mxu0 0.0
    %1429 = vmatprep.subr.mxu0 0.0
    %1430 = vmatpush1.msra.mxu0 %v383
    %1431 = vmatprep.subr.mxu0 0.0
    %1432 = vmatpush1.msra.mxu0 %v382
    %1433 = vmatprep.subr.mxu0 0.0
    %1434 = vmatpush1.msra.mxu0 %v381
    %1435 = vmatprep.subr.mxu0 0.0
    %1436 = vmatpush1.msra.mxu0 %v380
    %1437 = vmatprep.subr.mxu0 0.0
    %1438 = vmatpush2.msra.mxu0 0.0
    %1439 = vmatprep.subr.mxu0 0.0
    %1440 = vmatpush2.msra.mxu0 0.0
    %1441 = vmatprep.subr.mxu0 0.0
    %1442 = vmatpush2.msra.mxu0 0.0
    %1443 = vmatprep.subr.mxu0 0.0
    %1444 = vmatpush2.msra.mxu0 0.0
    %1445 = vmatprep.subr.mxu0 0.0
    %1446 = vmatpush2.msra.mxu0 0.0
    %1447 = vmatprep.subr.mxu0 0.0
    %1448 = vmatpush2.msra.mxu0 0.0
    %1449 = vmatprep.subr.mxu0 0.0
    %1450 = vmatpush2.msra.mxu0 0.0
    %1451 = vmatprep.subr.mxu0 0.0
    %1452 = vmatpush2.msra.mxu0 0.0
    %1453 = vmatprep.subr.mxu0 0.0
    %1454 = vmatpush2.msra.mxu0 0.0
    %1455 = vmatprep.subr.mxu0 0.0
    %1456 = vmatpush2.msra.mxu0 0.0
    %1457 = vmatprep.subr.mxu0 0.0
    %1458 = vmatpush2.msra.mxu0 0.0
    %1459 = vmatprep.subr.mxu0 0.0
    %1460 = vmatpush2.msra.mxu0 0.0
    %1461 = vmatprep.subr.mxu0 0.0
    %1462 = vmatpush2.msra.mxu0 0.0
    %1463 = vmatprep.subr.mxu0 0.0
    %1464 = vmatpush2.msra.mxu0 0.0
    %1465 = vmatprep.subr.mxu0 0.0
    %1466 = vmatpush2.msra.mxu0 0.0
    %1467 = vmatprep.subr.mxu0 0.0
    %1468 = vmatpush2.msra.mxu0 0.0
    %1469 = vmatprep.mubr.f32.mxu0 0.0
    %1470 = vmatmul.mubr.f32.gmra.mxu0 %v1403
    %v1471 = vpop.f32.mrf.mxu0
    %v1472 = vadd.f32 %v389, %v1471
    %v1473 = vpop.f32.mrf.mxu0
    %1474 = vdwg.mxu0
    %v1476 = vrot.slane %v1472, 1
    %v1477 = vrot.slane %v1472, 2
    %v1480 = vadd.f32 %v372, %v1476
    %v1481 = vadd.f32 %v377, %v1477
    %v1482 = vxor.u32 %v1480, 2147483648
    %v1483 = vxor.u32 %v1481, 2147483648
    %v1484 = vmul.f32 %v1482, 1.442695
    %v1485 = vpow.pop %v1484
    %v1486 = vmul.f32 %v1483, 1.442695
    %v1487 = vpow.pop %v1486
    %v1488 = vadd.f32 %v1485, 1.0
    %v1489 = vadd.f32 %v1487, 1.0
    %v1490 = vrcp.pop %v1488
    %v1491 = vmul.f32 1.0, %v1490
    %v1492 = vrcp.pop %v1489
    %v1493 = vmul.f32 1.0, %v1492
    %1494 = vrot.lane.b32.xlu0 %v1476, 64
    %v1495 = vpop.permute.xlu0 %1494
    %1496 = vrot.lane.b32.xlu0 %v1477, 64
    %v1497 = vpop.permute.xlu0 %1496
    %v1500 = vmul.f32 %v1491, %v1495
    %v1501 = vmul.f32 %v1493, %v1497
    %1504 = vrot.lane.b32.xlu0 %v1500, 64
    %v1505 = vpop.permute.xlu0 %1504
    %1506 = vrot.lane.b32.xlu0 %v1501, 64
    %v1507 = vpop.permute.xlu0 %1506
    %v1510 = vadd.f32 %v372, %v1505
    %v1511 = vadd.f32 %v377, %v1507
    %v1512 = vtanh.pop %v1510
    %v1513 = vtanh.pop %v1511
    %v1514 = vsub.f32 1.0, %v1491
    %v1515 = vsub.f32 1.0, %v1493
    %1518 = vrot.lane.b32.xlu0 %v1512, 96
    %v1519 = vpop.permute.xlu0 %1518
    %1520 = vrot.lane.b32.xlu0 %v1513, 96
    %v1521 = vpop.permute.xlu0 %1520
    %v1524 = vmul.f32 %v1514, %v1519
    %v1525 = vmul.f32 %v1515, %v1521
    %v1526 = vrot.slane %v1389, 7
    %v1527 = vrot.slane %v1390, 7
    %v1530 = vmul.f32 %v1491, %v1526
    %v1531 = vmul.f32 %v1493, %v1527
    %v1532 = vadd.f32 %v1524, %v1530
    %v1533 = vadd.f32 %v1525, %v1531
    %vm1534 = vcmp.eq.s32.totalorder %v408, 7
    %v1535 = vsel %vm1534, 1, 0
    %vm1536 = vcmp.eq.s32.totalorder %v1535, 1
    %v1539 = vrot.slane %v1532, 7
    %v1540 = vrot.slane %v1533, 6
    %v1541 = vsel %vm542, %v1540, %v1539
    %1542 = vrot.lane.b32.xlu0 %v1541, 96
    %v1543 = vpop.permute.xlu0 %1542
    %v1545 = vsel %vm1536, %v1543, %v1402
    %v1546 = vld [vmem:[#allocation10] sm:$0xff]
    %v1547 = vld [vmem:[#allocation10 + $0x8] sm:$0xff]
    %v1548 = vld [vmem:[#allocation10 + $0x10] sm:$0xff]
    %v1549 = vld [vmem:[#allocation10 + $0x18] sm:$0xff]
    %v1550 = vld [vmem:[#allocation11] sm:$0x1]
    %v1552 = vlaneseq
    %v1553 = vshrl.u32 %v1552, 7
    %v1554 = vsub.s32 0, %v1553
    %v1555 = vrot.slane %v1550, %v1554
    %v1558 = vsel %vm298, %v1545, 0
    %1560 = vmatprep.subr.mxu0 0.0
    %1561 = vmatpush1.msra.mxu0 0.0
    %1562 = vmatprep.subr.mxu0 0.0
    %1563 = vmatpush1.msra.mxu0 0.0
    %1564 = vmatprep.subr.mxu0 0.0
    %1565 = vmatpush1.msra.mxu0 0.0
    %1566 = vmatprep.subr.mxu0 0.0
    %1567 = vmatpush1.msra.mxu0 0.0
    %1568 = vmatprep.subr.mxu0 0.0
    %1569 = vmatpush1.msra.mxu0 0.0
    %1570 = vmatprep.subr.mxu0 0.0
    %1571 = vmatpush1.msra.mxu0 0.0
    %1572 = vmatprep.subr.mxu0 0.0
    %1573 = vmatpush1.msra.mxu0 0.0
    %1574 = vmatprep.subr.mxu0 0.0
    %1575 = vmatpush1.msra.mxu0 0.0
    %1576 = vmatprep.subr.mxu0 0.0
    %1577 = vmatpush1.msra.mxu0 0.0
    %1578 = vmatprep.subr.mxu0 0.0
    %1579 = vmatpush1.msra.mxu0 0.0
    %1580 = vmatprep.subr.mxu0 0.0
    %1581 = vmatpush1.msra.mxu0 0.0
    %1582 = vmatprep.subr.mxu0 0.0
    %1583 = vmatpush1.msra.mxu0 0.0
    %1584 = vmatprep.subr.mxu0 0.0
    %1585 = vmatpush1.msra.mxu0 %v1549
    %1586 = vmatprep.subr.mxu0 0.0
    %1587 = vmatpush1.msra.mxu0 %v1548
    %1588 = vmatprep.subr.mxu0 0.0
    %1589 = vmatpush1.msra.mxu0 %v1547
    %1590 = vmatprep.subr.mxu0 0.0
    %1591 = vmatpush1.msra.mxu0 %v1546
    %1592 = vmatprep.subr.mxu0 0.0
    %1593 = vmatpush2.msra.mxu0 0.0
    %1594 = vmatprep.subr.mxu0 0.0
    %1595 = vmatpush2.msra.mxu0 0.0
    %1596 = vmatprep.subr.mxu0 0.0
    %1597 = vmatpush2.msra.mxu0 0.0
    %1598 = vmatprep.subr.mxu0 0.0
    %1599 = vmatpush2.msra.mxu0 0.0
    %1600 = vmatprep.subr.mxu0 0.0
    %1601 = vmatpush2.msra.mxu0 0.0
    %1602 = vmatprep.subr.mxu0 0.0
    %1603 = vmatpush2.msra.mxu0 0.0
    %1604 = vmatprep.subr.mxu0 0.0
    %1605 = vmatpush2.msra.mxu0 0.0
    %1606 = vmatprep.subr.mxu0 0.0
    %1607 = vmatpush2.msra.mxu0 0.0
    %1608 = vmatprep.subr.mxu0 0.0
    %1609 = vmatpush2.msra.mxu0 0.0
    %1610 = vmatprep.subr.mxu0 0.0
    %1611 = vmatpush2.msra.mxu0 0.0
    %1612 = vmatprep.subr.mxu0 0.0
    %1613 = vmatpush2.msra.mxu0 0.0
    %1614 = vmatprep.subr.mxu0 0.0
    %1615 = vmatpush2.msra.mxu0 0.0
    %1616 = vmatprep.subr.mxu0 0.0
    %1617 = vmatpush2.msra.mxu0 0.0
    %1618 = vmatprep.subr.mxu0 0.0
    %1619 = vmatpush2.msra.mxu0 0.0
    %1620 = vmatprep.subr.mxu0 0.0
    %1621 = vmatpush2.msra.mxu0 0.0
    %1622 = vmatprep.subr.mxu0 0.0
    %1623 = vmatpush2.msra.mxu0 0.0
    %1624 = vmatprep.mubr.f32.mxu0 0.0
    %1625 = vmatmul.mubr.f32.gmra.mxu0 %v1558
    %v1626 = vpop.f32.mrf.mxu0
    %v1627 = vadd.f32 %v1555, %v1626
    %v1628 = vpop.f32.mrf.mxu0
    %1629 = vdwg.mxu0
    %v1630 = vld [vmem:[%s1] sm:$0x3]
    %v1631 = vlaneseq
    %v1632 = vshrl.u32 %v1631, 7
    %v1633 = vsub.s32 0, %v1632
    %v1634 = vrot.slane %v1630, %v1633
    %1636 = vbcast.lane.b32.xlu0 %v1634, 256
    %v1637 = vpop.permute.xlu0 %1636
    %v1638 = vlaneseq
    %v1639 = vshrl.u32 %v1638, 7
    %v1640 = vsub.s32 1, %v1639
    %v1641 = vrot.slane %v1630, %v1640
    %1643 = vbcast.lane.b32.xlu0 %v1641, 256
    %v1644 = vpop.permute.xlu0 %1643
    %vm1645 = vcmp.eq.s32.totalorder %v1637, %v196
    %vm1646 = vcmp.eq.s32.totalorder %v1644, %v196
    %v1647 = vsel %vm1645, 1, 0
    %v1648 = vsel %vm1646, 1, 0
    %v1649 = vcvt.s32.f32 %v1647
    %v1650 = vcvt.s32.f32 %v1648
    %v1651 = vld [vmem:[#allocation5] sm:$0xff]
    %v1652 = vld [vmem:[#allocation5 + $0x8] sm:$0xff]
    %v1654 = vsel %vm205, %v1649, 0
    %v1657 = vsel %vm205, %v1650, 0
    %1659 = vmatprep.subr.mxu0 0.0
    %1660 = vmatpush1.msra.mxu0 0.0
    %1661 = vmatprep.subr.mxu0 0.0
    %1662 = vmatpush1.msra.mxu0 0.0
    %1663 = vmatprep.subr.mxu0 0.0
    %1664 = vmatpush1.msra.mxu0 0.0
    %1665 = vmatprep.subr.mxu0 0.0
    %1666 = vmatpush1.msra.mxu0 0.0
    %1667 = vmatprep.subr.mxu0 0.0
    %1668 = vmatpush1.msra.mxu0 0.0
    %1669 = vmatprep.subr.mxu0 0.0
    %1670 = vmatpush1.msra.mxu0 0.0
    %1671 = vmatprep.subr.mxu0 0.0
    %1672 = vmatpush1.msra.mxu0 0.0
    %1673 = vmatprep.subr.mxu0 0.0
    %1674 = vmatpush1.msra.mxu0 0.0
    %1675 = vmatprep.subr.mxu0 0.0
    %1676 = vmatpush1.msra.mxu0 0.0
    %1677 = vmatprep.subr.mxu0 0.0
    %1678 = vmatpush1.msra.mxu0 0.0
    %1679 = vmatprep.subr.mxu0 0.0
    %1680 = vmatpush1.msra.mxu0 0.0
    %1681 = vmatprep.subr.mxu0 0.0
    %1682 = vmatpush1.msra.mxu0 0.0
    %1683 = vmatprep.subr.mxu0 0.0
    %1684 = vmatpush1.msra.mxu0 0.0
    %1685 = vmatprep.subr.mxu0 0.0
    %1686 = vmatpush1.msra.mxu0 0.0
    %1687 = vmatprep.subr.mxu0 0.0
    %1688 = vmatpush1.msra.mxu0 %v1652
    %1689 = vmatprep.subr.mxu0 0.0
    %1690 = vmatpush1.msra.mxu0 %v1651
    %1691 = vmatprep.subr.mxu0 0.0
    %1692 = vmatpush2.msra.mxu0 0.0
    %1693 = vmatprep.subr.mxu0 0.0
    %1694 = vmatpush2.msra.mxu0 0.0
    %1695 = vmatprep.subr.mxu0 0.0
    %1696 = vmatpush2.msra.mxu0 0.0
    %1697 = vmatprep.subr.mxu0 0.0
    %1698 = vmatpush2.msra.mxu0 0.0
    %1699 = vmatprep.subr.mxu0 0.0
    %1700 = vmatpush2.msra.mxu0 0.0
    %1701 = vmatprep.subr.mxu0 0.0
    %1702 = vmatpush2.msra.mxu0 0.0
    %1703 = vmatprep.subr.mxu0 0.0
    %1704 = vmatpush2.msra.mxu0 0.0
    %1705 = vmatprep.subr.mxu0 0.0
    %1706 = vmatpush2.msra.mxu0 0.0
    %1707 = vmatprep.subr.mxu0 0.0
    %1708 = vmatpush2.msra.mxu0 0.0
    %1709 = vmatprep.subr.mxu0 0.0
    %1710 = vmatpush2.msra.mxu0 0.0
    %1711 = vmatprep.subr.mxu0 0.0
    %1712 = vmatpush2.msra.mxu0 0.0
    %1713 = vmatprep.subr.mxu0 0.0
    %1714 = vmatpush2.msra.mxu0 0.0
    %1715 = vmatprep.subr.mxu0 0.0
    %1716 = vmatpush2.msra.mxu0 0.0
    %1717 = vmatprep.subr.mxu0 0.0
    %1718 = vmatpush2.msra.mxu0 0.0
    %1719 = vmatprep.subr.mxu0 0.0
    %1720 = vmatpush2.msra.mxu0 0.0
    %1721 = vmatprep.subr.mxu0 0.0
    %1722 = vmatpush2.msra.mxu0 0.0
    %1723 = vmatprep.mubr.f32.mxu0 0.0
    %1724 = vmatmul.mubr.f32.gmra.mxu0 %v1654
    %v1725 = vpop.f32.mrf.mxu0
    %v1726 = vadd.f32 0.0, %v1725
    %v1727 = vpop.f32.mrf.mxu0
    %1728 = vmatprep.mubr.f32.mxu0 0.0
    %1729 = vmatmul.mubr.f32.gmra.mxu0 %v1657
    %v1730 = vpop.f32.mrf.mxu0
    %v1731 = vadd.f32 0.0, %v1730
    %v1732 = vpop.f32.mrf.mxu0
    %1733 = vdwg.mxu0
    %v1734 = vld [vmem:[#allocation13] sm:$0xff]
    %v1735 = vld [vmem:[#allocation13 + $0x8] sm:$0xff]
    %v1736 = vld [vmem:[#allocation13 + $0x10] sm:$0xff]
    %v1737 = vld [vmem:[#allocation13 + $0x18] sm:$0xff]
    %v1738 = vld [vmem:[#allocation16] sm:$0x1]
    %v1740 = vlaneseq
    %v1741 = vshrl.u32 %v1740, 7
    %v1742 = vsub.s32 0, %v1741
    %v1743 = vrot.slane %v1738, %v1742
    %v1746 = vsel %vm298, %v1726, 0
    %v1749 = vsel %vm298, %v1731, 0
    %1751 = vmatprep.subr.mxu0 0.0
    %1752 = vmatpush1.msra.mxu0 0.0
    %1753 = vmatprep.subr.mxu0 0.0
    %1754 = vmatpush1.msra.mxu0 0.0
    %1755 = vmatprep.subr.mxu0 0.0
    %1756 = vmatpush1.msra.mxu0 0.0
    %1757 = vmatprep.subr.mxu0 0.0
    %1758 = vmatpush1.msra.mxu0 0.0
    %1759 = vmatprep.subr.mxu0 0.0
    %1760 = vmatpush1.msra.mxu0 0.0
    %1761 = vmatprep.subr.mxu0 0.0
    %1762 = vmatpush1.msra.mxu0 0.0
    %1763 = vmatprep.subr.mxu0 0.0
    %1764 = vmatpush1.msra.mxu0 0.0
    %1765 = vmatprep.subr.mxu0 0.0
    %1766 = vmatpush1.msra.mxu0 0.0
    %1767 = vmatprep.subr.mxu0 0.0
    %1768 = vmatpush1.msra.mxu0 0.0
    %1769 = vmatprep.subr.mxu0 0.0
    %1770 = vmatpush1.msra.mxu0 0.0
    %1771 = vmatprep.subr.mxu0 0.0
    %1772 = vmatpush1.msra.mxu0 0.0
    %1773 = vmatprep.subr.mxu0 0.0
    %1774 = vmatpush1.msra.mxu0 0.0
    %1775 = vmatprep.subr.mxu0 0.0
    %1776 = vmatpush1.msra.mxu0 %v1737
    %1777 = vmatprep.subr.mxu0 0.0
    %1778 = vmatpush1.msra.mxu0 %v1736
    %1779 = vmatprep.subr.mxu0 0.0
    %1780 = vmatpush1.msra.mxu0 %v1735
    %1781 = vmatprep.subr.mxu0 0.0
    %1782 = vmatpush1.msra.mxu0 %v1734
    %1783 = vmatprep.subr.mxu0 0.0
    %1784 = vmatpush2.msra.mxu0 0.0
    %1785 = vmatprep.subr.mxu0 0.0
    %1786 = vmatpush2.msra.mxu0 0.0
    %1787 = vmatprep.subr.mxu0 0.0
    %1788 = vmatpush2.msra.mxu0 0.0
    %1789 = vmatprep.subr.mxu0 0.0
    %1790 = vmatpush2.msra.mxu0 0.0
    %1791 = vmatprep.subr.mxu0 0.0
    %1792 = vmatpush2.msra.mxu0 0.0
    %1793 = vmatprep.subr.mxu0 0.0
    %1794 = vmatpush2.msra.mxu0 0.0
    %1795 = vmatprep.subr.mxu0 0.0
    %1796 = vmatpush2.msra.mxu0 0.0
    %1797 = vmatprep.subr.mxu0 0.0
    %1798 = vmatpush2.msra.mxu0 0.0
    %1799 = vmatprep.subr.mxu0 0.0
    %1800 = vmatpush2.msra.mxu0 0.0
    %1801 = vmatprep.subr.mxu0 0.0
    %1802 = vmatpush2.msra.mxu0 0.0
    %1803 = vmatprep.subr.mxu0 0.0
    %1804 = vmatpush2.msra.mxu0 0.0
    %1805 = vmatprep.subr.mxu0 0.0
    %1806 = vmatpush2.msra.mxu0 0.0
    %1807 = vmatprep.subr.mxu0 0.0
    %1808 = vmatpush2.msra.mxu0 0.0
    %1809 = vmatprep.subr.mxu0 0.0
    %1810 = vmatpush2.msra.mxu0 0.0
    %1811 = vmatprep.subr.mxu0 0.0
    %1812 = vmatpush2.msra.mxu0 0.0
    %1813 = vmatprep.subr.mxu0 0.0
    %1814 = vmatpush2.msra.mxu0 0.0
    %1815 = vmatprep.mubr.f32.mxu0 0.0
    %1816 = vmatmul.mubr.f32.gmra.mxu0 %v1746
    %v1817 = vpop.f32.mrf.mxu0
    %v1818 = vadd.f32 %v1743, %v1817
    %v1819 = vpop.f32.mrf.mxu0
    %1820 = vmatprep.mubr.f32.mxu0 0.0
    %1821 = vmatmul.mubr.f32.gmra.mxu0 %v1749
    %v1822 = vpop.f32.mrf.mxu0
    %v1823 = vadd.f32 %v1743, %v1822
    %v1824 = vpop.f32.mrf.mxu0
    %1825 = vdwg.mxu0
    %v1826 = vld [vmem:[#allocation14] sm:$0xff]
    %v1827 = vld [vmem:[#allocation14 + $0x8] sm:$0xff]
    %v1828 = vld [vmem:[#allocation14 + $0x10] sm:$0xff]
    %v1829 = vld [vmem:[#allocation14 + $0x18] sm:$0xff]
    %v1830 = vld [vmem:[#allocation17] sm:$0x1]
    %v1832 = vlaneseq
    %v1833 = vshrl.u32 %v1832, 7
    %v1834 = vsub.s32 0, %v1833
    %v1835 = vrot.slane %v1830, %v1834
    %v1837 = vlaneseq
    %v1838 = vshrl.u32 %v1837, 7
    %v1840 = vsel %vm298, %v1627, 0
    %1842 = vmatprep.subr.mxu0 0.0
    %1843 = vmatpush1.msra.mxu0 0.0
    %1844 = vmatprep.subr.mxu0 0.0
    %1845 = vmatpush1.msra.mxu0 0.0
    %1846 = vmatprep.subr.mxu0 0.0
    %1847 = vmatpush1.msra.mxu0 0.0
    %1848 = vmatprep.subr.mxu0 0.0
    %1849 = vmatpush1.msra.mxu0 0.0
    %1850 = vmatprep.subr.mxu0 0.0
    %1851 = vmatpush1.msra.mxu0 0.0
    %1852 = vmatprep.subr.mxu0 0.0
    %1853 = vmatpush1.msra.mxu0 0.0
    %1854 = vmatprep.subr.mxu0 0.0
    %1855 = vmatpush1.msra.mxu0 0.0
    %1856 = vmatprep.subr.mxu0 0.0
    %1857 = vmatpush1.msra.mxu0 0.0
    %1858 = vmatprep.subr.mxu0 0.0
    %1859 = vmatpush1.msra.mxu0 0.0
    %1860 = vmatprep.subr.mxu0 0.0
    %1861 = vmatpush1.msra.mxu0 0.0
    %1862 = vmatprep.subr.mxu0 0.0
    %1863 = vmatpush1.msra.mxu0 0.0
    %1864 = vmatprep.subr.mxu0 0.0
    %1865 = vmatpush1.msra.mxu0 0.0
    %1866 = vmatprep.subr.mxu0 0.0
    %1867 = vmatpush1.msra.mxu0 %v1829
    %1868 = vmatprep.subr.mxu0 0.0
    %1869 = vmatpush1.msra.mxu0 %v1828
    %1870 = vmatprep.subr.mxu0 0.0
    %1871 = vmatpush1.msra.mxu0 %v1827
    %1872 = vmatprep.subr.mxu0 0.0
    %1873 = vmatpush1.msra.mxu0 %v1826
    %1874 = vmatprep.subr.mxu0 0.0
    %1875 = vmatpush2.msra.mxu0 0.0
    %1876 = vmatprep.subr.mxu0 0.0
    %1877 = vmatpush2.msra.mxu0 0.0
    %1878 = vmatprep.subr.mxu0 0.0
    %1879 = vmatpush2.msra.mxu0 0.0
    %1880 = vmatprep.subr.mxu0 0.0
    %1881 = vmatpush2.msra.mxu0 0.0
    %1882 = vmatprep.subr.mxu0 0.0
    %1883 = vmatpush2.msra.mxu0 0.0
    %1884 = vmatprep.subr.mxu0 0.0
    %1885 = vmatpush2.msra.mxu0 0.0
    %1886 = vmatprep.subr.mxu0 0.0
    %1887 = vmatpush2.msra.mxu0 0.0
    %1888 = vmatprep.subr.mxu0 0.0
    %1889 = vmatpush2.msra.mxu0 0.0
    %1890 = vmatprep.subr.mxu0 0.0
    %1891 = vmatpush2.msra.mxu0 0.0
    %1892 = vmatprep.subr.mxu0 0.0
    %1893 = vmatpush2.msra.mxu0 0.0
    %1894 = vmatprep.subr.mxu0 0.0
    %1895 = vmatpush2.msra.mxu0 0.0
    %1896 = vmatprep.subr.mxu0 0.0
    %1897 = vmatpush2.msra.mxu0 0.0
    %1898 = vmatprep.subr.mxu0 0.0
    %1899 = vmatpush2.msra.mxu0 0.0
    %1900 = vmatprep.subr.mxu0 0.0
    %1901 = vmatpush2.msra.mxu0 0.0
    %1902 = vmatprep.subr.mxu0 0.0
    %1903 = vmatpush2.msra.mxu0 0.0
    %1904 = vmatprep.subr.mxu0 0.0
    %1905 = vmatpush2.msra.mxu0 0.0
    %1906 = vmatprep.mubr.f32.mxu0 0.0
    %1907 = vmatmul.mubr.f32.gmra.mxu0 %v1840
    %v1908 = vpop.f32.mrf.mxu0
    %v1909 = vadd.f32 %v1835, %v1908
    %v1910 = vpop.f32.mrf.mxu0
    %1911 = vdwg.mxu0
    %v1913 = vrot.slane %v1909, 1
    %v1916 = vadd.f32 %v1818, %v1909
    %v1917 = vadd.f32 %v1823, %v1913
    %v1918 = vxor.u32 %v1916, 2147483648
    %v1919 = vxor.u32 %v1917, 2147483648
    %v1920 = vmul.f32 %v1918, 1.442695
    %v1921 = vpow.pop %v1920
    %v1922 = vmul.f32 %v1919, 1.442695
    %v1923 = vpow.pop %v1922
    %v1924 = vadd.f32 %v1921, 1.0
    %v1925 = vadd.f32 %v1923, 1.0
    %v1926 = vrcp.pop %v1924
    %v1927 = vmul.f32 1.0, %v1926
    %v1928 = vrcp.pop %v1925
    %v1929 = vmul.f32 1.0, %v1928
    %1930 = vrot.lane.b32.xlu0 %v1909, 64
    %v1931 = vpop.permute.xlu0 %1930
    %1932 = vrot.lane.b32.xlu0 %v1913, 64
    %v1933 = vpop.permute.xlu0 %1932
    %v1936 = vmul.f32 %v1927, %v1931
    %v1937 = vmul.f32 %v1929, %v1933
    %1940 = vrot.lane.b32.xlu0 %v1936, 64
    %v1941 = vpop.permute.xlu0 %1940
    %1942 = vrot.lane.b32.xlu0 %v1937, 64
    %v1943 = vpop.permute.xlu0 %1942
    %v1946 = vadd.f32 %v1818, %v1941
    %v1947 = vadd.f32 %v1823, %v1943
    %v1948 = vtanh.pop %v1946
    %v1949 = vtanh.pop %v1947
    %v1950 = vsub.f32 1.0, %v1927
    %v1951 = vsub.f32 1.0, %v1929
    %1954 = vrot.lane.b32.xlu0 %v1948, 96
    %v1955 = vpop.permute.xlu0 %1954
    %1956 = vrot.lane.b32.xlu0 %v1949, 96
    %v1957 = vpop.permute.xlu0 %1956
    %v1960 = vmul.f32 %v1950, %v1955
    %v1961 = vmul.f32 %v1951, %v1957
    %v1962 = vrot.slane %v1627, 1
    %1963 = vrot.lane.b32.xlu0 %v1627, 32
    %v1964 = vpop.permute.xlu0 %1963
    %1965 = vrot.lane.b32.xlu0 %v1962, 32
    %v1966 = vpop.permute.xlu0 %1965
    %v1969 = vmul.f32 %v1927, %v1964
    %v1970 = vmul.f32 %v1929, %v1966
    %v1971 = vadd.f32 %v1960, %v1969
    %v1972 = vadd.f32 %v1961, %v1970
    %vm1973 = vcmp.eq.s32.totalorder %v1838, 1
    %v1974 = vlaneseq
    %v1975 = vshrl.u32 %v1974, 7
    %v1976 = vsub.s32 0, %v1975
    %v1977 = vrot.slane %v1971, %v1976
    %v1978 = vlaneseq
    %v1979 = vshrl.u32 %v1978, 7
    %v1980 = vsub.s32 0, %v1979
    %v1981 = vrot.slane %v1972, %v1980
    %v1982 = vsel %vm1973, %v1977, 0.0
    %v1983 = vsel %vm1973, %v1981, 0.0
    %v1986 = vrot.slane %v1972, 7
    %v1987 = vsel %vm542, %v1986, %v1971
    %1988 = vrot.lane.b32.xlu0 %v1987, 96
    %v1989 = vpop.permute.xlu0 %1988
    %v1990 = vsel %vm298, %v1989, 0
    %1992 = vmatprep.subr.mxu0 0.0
    %1993 = vmatpush1.msra.mxu0 0.0
    %1994 = vmatprep.subr.mxu0 0.0
    %1995 = vmatpush1.msra.mxu0 0.0
    %1996 = vmatprep.subr.mxu0 0.0
    %1997 = vmatpush1.msra.mxu0 0.0
    %1998 = vmatprep.subr.mxu0 0.0
    %1999 = vmatpush1.msra.mxu0 0.0
    %2000 = vmatprep.subr.mxu0 0.0
    %2001 = vmatpush1.msra.mxu0 0.0
    %2002 = vmatprep.subr.mxu0 0.0
    %2003 = vmatpush1.msra.mxu0 0.0
    %2004 = vmatprep.subr.mxu0 0.0
    %2005 = vmatpush1.msra.mxu0 0.0
    %2006 = vmatprep.subr.mxu0 0.0
    %2007 = vmatpush1.msra.mxu0 0.0
    %2008 = vmatprep.subr.mxu0 0.0
    %2009 = vmatpush1.msra.mxu0 0.0
    %2010 = vmatprep.subr.mxu0 0.0
    %2011 = vmatpush1.msra.mxu0 0.0
    %2012 = vmatprep.subr.mxu0 0.0
    %2013 = vmatpush1.msra.mxu0 0.0
    %2014 = vmatprep.subr.mxu0 0.0
    %2015 = vmatpush1.msra.mxu0 0.0
    %2016 = vmatprep.subr.mxu0 0.0
    %2017 = vmatpush1.msra.mxu0 %v1829
    %2018 = vmatprep.subr.mxu0 0.0
    %2019 = vmatpush1.msra.mxu0 %v1828
    %2020 = vmatprep.subr.mxu0 0.0
    %2021 = vmatpush1.msra.mxu0 %v1827
    %2022 = vmatprep.subr.mxu0 0.0
    %2023 = vmatpush1.msra.mxu0 %v1826
    %2024 = vmatprep.subr.mxu0 0.0
    %2025 = vmatpush2.msra.mxu0 0.0
    %2026 = vmatprep.subr.mxu0 0.0
    %2027 = vmatpush2.msra.mxu0 0.0
    %2028 = vmatprep.subr.mxu0 0.0
    %2029 = vmatpush2.msra.mxu0 0.0
    %2030 = vmatprep.subr.mxu0 0.0
    %2031 = vmatpush2.msra.mxu0 0.0
    %2032 = vmatprep.subr.mxu0 0.0
    %2033 = vmatpush2.msra.mxu0 0.0
    %2034 = vmatprep.subr.mxu0 0.0
    %2035 = vmatpush2.msra.mxu0 0.0
    %2036 = vmatprep.subr.mxu0 0.0
    %2037 = vmatpush2.msra.mxu0 0.0
    %2038 = vmatprep.subr.mxu0 0.0
    %2039 = vmatpush2.msra.mxu0 0.0
    %2040 = vmatprep.subr.mxu0 0.0
    %2041 = vmatpush2.msra.mxu0 0.0
    %2042 = vmatprep.subr.mxu0 0.0
    %2043 = vmatpush2.msra.mxu0 0.0
    %2044 = vmatprep.subr.mxu0 0.0
    %2045 = vmatpush2.msra.mxu0 0.0
    %2046 = vmatprep.subr.mxu0 0.0
    %2047 = vmatpush2.msra.mxu0 0.0
    %2048 = vmatprep.subr.mxu0 0.0
    %2049 = vmatpush2.msra.mxu0 0.0
    %2050 = vmatprep.subr.mxu0 0.0
    %2051 = vmatpush2.msra.mxu0 0.0
    %2052 = vmatprep.subr.mxu0 0.0
    %2053 = vmatpush2.msra.mxu0 0.0
    %2054 = vmatprep.subr.mxu0 0.0
    %2055 = vmatpush2.msra.mxu0 0.0
    %2056 = vmatprep.mubr.f32.mxu0 0.0
    %2057 = vmatmul.mubr.f32.gmra.mxu0 %v1990
    %v2058 = vpop.f32.mrf.mxu0
    %v2059 = vadd.f32 %v1835, %v2058
    %v2060 = vpop.f32.mrf.mxu0
    %2061 = vdwg.mxu0
    %v2063 = vrot.slane %v2059, 7
    %v2066 = vadd.f32 %v1818, %v2063
    %v2067 = vadd.f32 %v1823, %v2059
    %v2068 = vxor.u32 %v2066, 2147483648
    %v2069 = vxor.u32 %v2067, 2147483648
    %v2070 = vmul.f32 %v2068, 1.442695
    %v2071 = vpow.pop %v2070
    %v2072 = vmul.f32 %v2069, 1.442695
    %v2073 = vpow.pop %v2072
    %v2074 = vadd.f32 %v2071, 1.0
    %v2075 = vadd.f32 %v2073, 1.0
    %v2076 = vrcp.pop %v2074
    %v2077 = vmul.f32 1.0, %v2076
    %v2078 = vrcp.pop %v2075
    %v2079 = vmul.f32 1.0, %v2078
    %2080 = vrot.lane.b32.xlu0 %v2063, 64
    %v2081 = vpop.permute.xlu0 %2080
    %2082 = vrot.lane.b32.xlu0 %v2059, 64
    %v2083 = vpop.permute.xlu0 %2082
    %v2086 = vmul.f32 %v2077, %v2081
    %v2087 = vmul.f32 %v2079, %v2083
    %2090 = vrot.lane.b32.xlu0 %v2086, 64
    %v2091 = vpop.permute.xlu0 %2090
    %2092 = vrot.lane.b32.xlu0 %v2087, 64
    %v2093 = vpop.permute.xlu0 %2092
    %v2096 = vadd.f32 %v1818, %v2091
    %v2097 = vadd.f32 %v1823, %v2093
    %v2098 = vtanh.pop %v2096
    %v2099 = vtanh.pop %v2097
    %v2100 = vsub.f32 1.0, %v2077
    %v2101 = vsub.f32 1.0, %v2079
    %2104 = vrot.lane.b32.xlu0 %v2098, 96
    %v2105 = vpop.permute.xlu0 %2104
    %2106 = vrot.lane.b32.xlu0 %v2099, 96
    %v2107 = vpop.permute.xlu0 %2106
    %v2110 = vmul.f32 %v2100, %v2105
    %v2111 = vmul.f32 %v2101, %v2107
    %v2112 = vrot.slane %v1971, 7
    %v2115 = vmul.f32 %v2077, %v2112
    %v2116 = vmul.f32 %v2079, %v1986
    %v2117 = vadd.f32 %v2110, %v2115
    %v2118 = vadd.f32 %v2111, %v2116
    %vm2119 = vcmp.eq.s32.totalorder %v1838, 2
    %v2120 = vlaneseq
    %v2121 = vshrl.u32 %v2120, 7
    %v2122 = vsub.s32 1, %v2121
    %v2123 = vrot.slane %v2117, %v2122
    %v2124 = vlaneseq
    %v2125 = vshrl.u32 %v2124, 7
    %v2126 = vsub.s32 1, %v2125
    %v2127 = vrot.slane %v2118, %v2126
    %v2128 = vsel %vm2119, %v2123, %v1982
    %v2129 = vsel %vm2119, %v2127, %v1983
    %v2132 = vrot.slane %v2117, 1
    %v2133 = vsel %vm542, %v2118, %v2132
    %2134 = vrot.lane.b32.xlu0 %v2133, 96
    %v2135 = vpop.permute.xlu0 %2134
    %v2136 = vsel %vm298, %v2135, 0
    %2138 = vmatprep.subr.mxu0 0.0
    %2139 = vmatpush1.msra.mxu0 0.0
    %2140 = vmatprep.subr.mxu0 0.0
    %2141 = vmatpush1.msra.mxu0 0.0
    %2142 = vmatprep.subr.mxu0 0.0
    %2143 = vmatpush1.msra.mxu0 0.0
    %2144 = vmatprep.subr.mxu0 0.0
    %2145 = vmatpush1.msra.mxu0 0.0
    %2146 = vmatprep.subr.mxu0 0.0
    %2147 = vmatpush1.msra.mxu0 0.0
    %2148 = vmatprep.subr.mxu0 0.0
    %2149 = vmatpush1.msra.mxu0 0.0
    %2150 = vmatprep.subr.mxu0 0.0
    %2151 = vmatpush1.msra.mxu0 0.0
    %2152 = vmatprep.subr.mxu0 0.0
    %2153 = vmatpush1.msra.mxu0 0.0
    %2154 = vmatprep.subr.mxu0 0.0
    %2155 = vmatpush1.msra.mxu0 0.0
    %2156 = vmatprep.subr.mxu0 0.0
    %2157 = vmatpush1.msra.mxu0 0.0
    %2158 = vmatprep.subr.mxu0 0.0
    %2159 = vmatpush1.msra.mxu0 0.0
    %2160 = vmatprep.subr.mxu0 0.0
    %2161 = vmatpush1.msra.mxu0 0.0
    %2162 = vmatprep.subr.mxu0 0.0
    %2163 = vmatpush1.msra.mxu0 %v1829
    %2164 = vmatprep.subr.mxu0 0.0
    %2165 = vmatpush1.msra.mxu0 %v1828
    %2166 = vmatprep.subr.mxu0 0.0
    %2167 = vmatpush1.msra.mxu0 %v1827
    %2168 = vmatprep.subr.mxu0 0.0
    %2169 = vmatpush1.msra.mxu0 %v1826
    %2170 = vmatprep.subr.mxu0 0.0
    %2171 = vmatpush2.msra.mxu0 0.0
    %2172 = vmatprep.subr.mxu0 0.0
    %2173 = vmatpush2.msra.mxu0 0.0
    %2174 = vmatprep.subr.mxu0 0.0
    %2175 = vmatpush2.msra.mxu0 0.0
    %2176 = vmatprep.subr.mxu0 0.0
    %2177 = vmatpush2.msra.mxu0 0.0
    %2178 = vmatprep.subr.mxu0 0.0
    %2179 = vmatpush2.msra.mxu0 0.0
    %2180 = vmatprep.subr.mxu0 0.0
    %2181 = vmatpush2.msra.mxu0 0.0
    %2182 = vmatprep.subr.mxu0 0.0
    %2183 = vmatpush2.msra.mxu0 0.0
    %2184 = vmatprep.subr.mxu0 0.0
    %2185 = vmatpush2.msra.mxu0 0.0
    %2186 = vmatprep.subr.mxu0 0.0
    %2187 = vmatpush2.msra.mxu0 0.0
    %2188 = vmatprep.subr.mxu0 0.0
    %2189 = vmatpush2.msra.mxu0 0.0
    %2190 = vmatprep.subr.mxu0 0.0
    %2191 = vmatpush2.msra.mxu0 0.0
    %2192 = vmatprep.subr.mxu0 0.0
    %2193 = vmatpush2.msra.mxu0 0.0
    %2194 = vmatprep.subr.mxu0 0.0
    %2195 = vmatpush2.msra.mxu0 0.0
    %2196 = vmatprep.subr.mxu0 0.0
    %2197 = vmatpush2.msra.mxu0 0.0
    %2198 = vmatprep.subr.mxu0 0.0
    %2199 = vmatpush2.msra.mxu0 0.0
    %2200 = vmatprep.subr.mxu0 0.0
    %2201 = vmatpush2.msra.mxu0 0.0
    %2202 = vmatprep.mubr.f32.mxu0 0.0
    %2203 = vmatmul.mubr.f32.gmra.mxu0 %v2136
    %v2204 = vpop.f32.mrf.mxu0
    %v2205 = vadd.f32 %v1835, %v2204
    %v2206 = vpop.f32.mrf.mxu0
    %2207 = vdwg.mxu0
    %v2209 = vrot.slane %v2205, 6
    %v2210 = vrot.slane %v2205, 7
    %v2213 = vadd.f32 %v1818, %v2209
    %v2214 = vadd.f32 %v1823, %v2210
    %v2215 = vxor.u32 %v2213, 2147483648
    %v2216 = vxor.u32 %v2214, 2147483648
    %v2217 = vmul.f32 %v2215, 1.442695
    %v2218 = vpow.pop %v2217
    %v2219 = vmul.f32 %v2216, 1.442695
    %v2220 = vpow.pop %v2219
    %v2221 = vadd.f32 %v2218, 1.0
    %v2222 = vadd.f32 %v2220, 1.0
    %v2223 = vrcp.pop %v2221
    %v2224 = vmul.f32 1.0, %v2223
    %v2225 = vrcp.pop %v2222
    %v2226 = vmul.f32 1.0, %v2225
    %2227 = vrot.lane.b32.xlu0 %v2209, 64
    %v2228 = vpop.permute.xlu0 %2227
    %2229 = vrot.lane.b32.xlu0 %v2210, 64
    %v2230 = vpop.permute.xlu0 %2229
    %v2233 = vmul.f32 %v2224, %v2228
    %v2234 = vmul.f32 %v2226, %v2230
    %2237 = vrot.lane.b32.xlu0 %v2233, 64
    %v2238 = vpop.permute.xlu0 %2237
    %2239 = vrot.lane.b32.xlu0 %v2234, 64
    %v2240 = vpop.permute.xlu0 %2239
    %v2243 = vadd.f32 %v1818, %v2238
    %v2244 = vadd.f32 %v1823, %v2240
    %v2245 = vtanh.pop %v2243
    %v2246 = vtanh.pop %v2244
    %v2247 = vsub.f32 1.0, %v2224
    %v2248 = vsub.f32 1.0, %v2226
    %2251 = vrot.lane.b32.xlu0 %v2245, 96
    %v2252 = vpop.permute.xlu0 %2251
    %2253 = vrot.lane.b32.xlu0 %v2246, 96
    %v2254 = vpop.permute.xlu0 %2253
    %v2257 = vmul.f32 %v2247, %v2252
    %v2258 = vmul.f32 %v2248, %v2254
    %v2259 = vrot.slane %v2117, 7
    %v2260 = vrot.slane %v2118, 7
    %v2263 = vmul.f32 %v2224, %v2259
    %v2264 = vmul.f32 %v2226, %v2260
    %v2265 = vadd.f32 %v2257, %v2263
    %v2266 = vadd.f32 %v2258, %v2264
    %vm2267 = vcmp.eq.s32.totalorder %v1838, 3
    %v2268 = vlaneseq
    %v2269 = vshrl.u32 %v2268, 7
    %v2270 = vsub.s32 2, %v2269
    %v2271 = vrot.slane %v2265, %v2270
    %v2272 = vlaneseq
    %v2273 = vshrl.u32 %v2272, 7
    %v2274 = vsub.s32 2, %v2273
    %v2275 = vrot.slane %v2266, %v2274
    %v2276 = vsel %vm2267, %v2271, %v2128
    %v2277 = vsel %vm2267, %v2275, %v2129
    %v2280 = vrot.slane %v2265, 2
    %v2281 = vrot.slane %v2266, 1
    %v2282 = vsel %vm542, %v2281, %v2280
    %2283 = vrot.lane.b32.xlu0 %v2282, 96
    %v2284 = vpop.permute.xlu0 %2283
    %v2285 = vsel %vm298, %v2284, 0
    %2287 = vmatprep.subr.mxu0 0.0
    %2288 = vmatpush1.msra.mxu0 0.0
    %2289 = vmatprep.subr.mxu0 0.0
    %2290 = vmatpush1.msra.mxu0 0.0
    %2291 = vmatprep.subr.mxu0 0.0
    %2292 = vmatpush1.msra.mxu0 0.0
    %2293 = vmatprep.subr.mxu0 0.0
    %2294 = vmatpush1.msra.mxu0 0.0
    %2295 = vmatprep.subr.mxu0 0.0
    %2296 = vmatpush1.msra.mxu0 0.0
    %2297 = vmatprep.subr.mxu0 0.0
    %2298 = vmatpush1.msra.mxu0 0.0
    %2299 = vmatprep.subr.mxu0 0.0
    %2300 = vmatpush1.msra.mxu0 0.0
    %2301 = vmatprep.subr.mxu0 0.0
    %2302 = vmatpush1.msra.mxu0 0.0
    %2303 = vmatprep.subr.mxu0 0.0
    %2304 = vmatpush1.msra.mxu0 0.0
    %2305 = vmatprep.subr.mxu0 0.0
    %2306 = vmatpush1.msra.mxu0 0.0
    %2307 = vmatprep.subr.mxu0 0.0
    %2308 = vmatpush1.msra.mxu0 0.0
    %2309 = vmatprep.subr.mxu0 0.0
    %2310 = vmatpush1.msra.mxu0 0.0
    %2311 = vmatprep.subr.mxu0 0.0
    %2312 = vmatpush1.msra.mxu0 %v1829
    %2313 = vmatprep.subr.mxu0 0.0
    %2314 = vmatpush1.msra.mxu0 %v1828
    %2315 = vmatprep.subr.mxu0 0.0
    %2316 = vmatpush1.msra.mxu0 %v1827
    %2317 = vmatprep.subr.mxu0 0.0
    %2318 = vmatpush1.msra.mxu0 %v1826
    %2319 = vmatprep.subr.mxu0 0.0
    %2320 = vmatpush2.msra.mxu0 0.0
    %2321 = vmatprep.subr.mxu0 0.0
    %2322 = vmatpush2.msra.mxu0 0.0
    %2323 = vmatprep.subr.mxu0 0.0
    %2324 = vmatpush2.msra.mxu0 0.0
    %2325 = vmatprep.subr.mxu0 0.0
    %2326 = vmatpush2.msra.mxu0 0.0
    %2327 = vmatprep.subr.mxu0 0.0
    %2328 = vmatpush2.msra.mxu0 0.0
    %2329 = vmatprep.subr.mxu0 0.0
    %2330 = vmatpush2.msra.mxu0 0.0
    %2331 = vmatprep.subr.mxu0 0.0
    %2332 = vmatpush2.msra.mxu0 0.0
    %2333 = vmatprep.subr.mxu0 0.0
    %2334 = vmatpush2.msra.mxu0 0.0
    %2335 = vmatprep.subr.mxu0 0.0
    %2336 = vmatpush2.msra.mxu0 0.0
    %2337 = vmatprep.subr.mxu0 0.0
    %2338 = vmatpush2.msra.mxu0 0.0
    %2339 = vmatprep.subr.mxu0 0.0
    %2340 = vmatpush2.msra.mxu0 0.0
    %2341 = vmatprep.subr.mxu0 0.0
    %2342 = vmatpush2.msra.mxu0 0.0
    %2343 = vmatprep.subr.mxu0 0.0
    %2344 = vmatpush2.msra.mxu0 0.0
    %2345 = vmatprep.subr.mxu0 0.0
    %2346 = vmatpush2.msra.mxu0 0.0
    %2347 = vmatprep.subr.mxu0 0.0
    %2348 = vmatpush2.msra.mxu0 0.0
    %2349 = vmatprep.subr.mxu0 0.0
    %2350 = vmatpush2.msra.mxu0 0.0
    %2351 = vmatprep.mubr.f32.mxu0 0.0
    %2352 = vmatmul.mubr.f32.gmra.mxu0 %v2285
    %v2353 = vpop.f32.mrf.mxu0
    %v2354 = vadd.f32 %v1835, %v2353
    %v2355 = vpop.f32.mrf.mxu0
    %2356 = vdwg.mxu0
    %v2358 = vrot.slane %v2354, 5
    %v2359 = vrot.slane %v2354, 6
    %v2362 = vadd.f32 %v1818, %v2358
    %v2363 = vadd.f32 %v1823, %v2359
    %v2364 = vxor.u32 %v2362, 2147483648
    %v2365 = vxor.u32 %v2363, 2147483648
    %v2366 = vmul.f32 %v2364, 1.442695
    %v2367 = vpow.pop %v2366
    %v2368 = vmul.f32 %v2365, 1.442695
    %v2369 = vpow.pop %v2368
    %v2370 = vadd.f32 %v2367, 1.0
    %v2371 = vadd.f32 %v2369, 1.0
    %v2372 = vrcp.pop %v2370
    %v2373 = vmul.f32 1.0, %v2372
    %v2374 = vrcp.pop %v2371
    %v2375 = vmul.f32 1.0, %v2374
    %2376 = vrot.lane.b32.xlu0 %v2358, 64
    %v2377 = vpop.permute.xlu0 %2376
    %2378 = vrot.lane.b32.xlu0 %v2359, 64
    %v2379 = vpop.permute.xlu0 %2378
    %v2382 = vmul.f32 %v2373, %v2377
    %v2383 = vmul.f32 %v2375, %v2379
    %2386 = vrot.lane.b32.xlu0 %v2382, 64
    %v2387 = vpop.permute.xlu0 %2386
    %2388 = vrot.lane.b32.xlu0 %v2383, 64
    %v2389 = vpop.permute.xlu0 %2388
    %v2392 = vadd.f32 %v1818, %v2387
    %v2393 = vadd.f32 %v1823, %v2389
    %v2394 = vtanh.pop %v2392
    %v2395 = vtanh.pop %v2393
    %v2396 = vsub.f32 1.0, %v2373
    %v2397 = vsub.f32 1.0, %v2375
    %2400 = vrot.lane.b32.xlu0 %v2394, 96
    %v2401 = vpop.permute.xlu0 %2400
    %2402 = vrot.lane.b32.xlu0 %v2395, 96
    %v2403 = vpop.permute.xlu0 %2402
    %v2406 = vmul.f32 %v2396, %v2401
    %v2407 = vmul.f32 %v2397, %v2403
    %v2408 = vrot.slane %v2265, 7
    %v2409 = vrot.slane %v2266, 7
    %v2412 = vmul.f32 %v2373, %v2408
    %v2413 = vmul.f32 %v2375, %v2409
    %v2414 = vadd.f32 %v2406, %v2412
    %v2415 = vadd.f32 %v2407, %v2413
    %vm2416 = vcmp.eq.s32.totalorder %v1838, 4
    %v2417 = vlaneseq
    %v2418 = vshrl.u32 %v2417, 7
    %v2419 = vsub.s32 3, %v2418
    %v2420 = vrot.slane %v2414, %v2419
    %v2421 = vlaneseq
    %v2422 = vshrl.u32 %v2421, 7
    %v2423 = vsub.s32 3, %v2422
    %v2424 = vrot.slane %v2415, %v2423
    %v2425 = vsel %vm2416, %v2420, %v2276
    %v2426 = vsel %vm2416, %v2424, %v2277
    %v2429 = vrot.slane %v2414, 3
    %v2430 = vrot.slane %v2415, 2
    %v2431 = vsel %vm542, %v2430, %v2429
    %2432 = vrot.lane.b32.xlu0 %v2431, 96
    %v2433 = vpop.permute.xlu0 %2432
    %v2434 = vsel %vm298, %v2433, 0
    %2436 = vmatprep.subr.mxu0 0.0
    %2437 = vmatpush1.msra.mxu0 0.0
    %2438 = vmatprep.subr.mxu0 0.0
    %2439 = vmatpush1.msra.mxu0 0.0
    %2440 = vmatprep.subr.mxu0 0.0
    %2441 = vmatpush1.msra.mxu0 0.0
    %2442 = vmatprep.subr.mxu0 0.0
    %2443 = vmatpush1.msra.mxu0 0.0
    %2444 = vmatprep.subr.mxu0 0.0
    %2445 = vmatpush1.msra.mxu0 0.0
    %2446 = vmatprep.subr.mxu0 0.0
    %2447 = vmatpush1.msra.mxu0 0.0
    %2448 = vmatprep.subr.mxu0 0.0
    %2449 = vmatpush1.msra.mxu0 0.0
    %2450 = vmatprep.subr.mxu0 0.0
    %2451 = vmatpush1.msra.mxu0 0.0
    %2452 = vmatprep.subr.mxu0 0.0
    %2453 = vmatpush1.msra.mxu0 0.0
    %2454 = vmatprep.subr.mxu0 0.0
    %2455 = vmatpush1.msra.mxu0 0.0
    %2456 = vmatprep.subr.mxu0 0.0
    %2457 = vmatpush1.msra.mxu0 0.0
    %2458 = vmatprep.subr.mxu0 0.0
    %2459 = vmatpush1.msra.mxu0 0.0
    %2460 = vmatprep.subr.mxu0 0.0
    %2461 = vmatpush1.msra.mxu0 %v1829
    %2462 = vmatprep.subr.mxu0 0.0
    %2463 = vmatpush1.msra.mxu0 %v1828
    %2464 = vmatprep.subr.mxu0 0.0
    %2465 = vmatpush1.msra.mxu0 %v1827
    %2466 = vmatprep.subr.mxu0 0.0
    %2467 = vmatpush1.msra.mxu0 %v1826
    %2468 = vmatprep.subr.mxu0 0.0
    %2469 = vmatpush2.msra.mxu0 0.0
    %2470 = vmatprep.subr.mxu0 0.0
    %2471 = vmatpush2.msra.mxu0 0.0
    %2472 = vmatprep.subr.mxu0 0.0
    %2473 = vmatpush2.msra.mxu0 0.0
    %2474 = vmatprep.subr.mxu0 0.0
    %2475 = vmatpush2.msra.mxu0 0.0
    %2476 = vmatprep.subr.mxu0 0.0
    %2477 = vmatpush2.msra.mxu0 0.0
    %2478 = vmatprep.subr.mxu0 0.0
    %2479 = vmatpush2.msra.mxu0 0.0
    %2480 = vmatprep.subr.mxu0 0.0
    %2481 = vmatpush2.msra.mxu0 0.0
    %2482 = vmatprep.subr.mxu0 0.0
    %2483 = vmatpush2.msra.mxu0 0.0
    %2484 = vmatprep.subr.mxu0 0.0
    %2485 = vmatpush2.msra.mxu0 0.0
    %2486 = vmatprep.subr.mxu0 0.0
    %2487 = vmatpush2.msra.mxu0 0.0
    %2488 = vmatprep.subr.mxu0 0.0
    %2489 = vmatpush2.msra.mxu0 0.0
    %2490 = vmatprep.subr.mxu0 0.0
    %2491 = vmatpush2.msra.mxu0 0.0
    %2492 = vmatprep.subr.mxu0 0.0
    %2493 = vmatpush2.msra.mxu0 0.0
    %2494 = vmatprep.subr.mxu0 0.0
    %2495 = vmatpush2.msra.mxu0 0.0
    %2496 = vmatprep.subr.mxu0 0.0
    %2497 = vmatpush2.msra.mxu0 0.0
    %2498 = vmatprep.subr.mxu0 0.0
    %2499 = vmatpush2.msra.mxu0 0.0
    %2500 = vmatprep.mubr.f32.mxu0 0.0
    %2501 = vmatmul.mubr.f32.gmra.mxu0 %v2434
    %v2502 = vpop.f32.mrf.mxu0
    %v2503 = vadd.f32 %v1835, %v2502
    %v2504 = vpop.f32.mrf.mxu0
    %2505 = vdwg.mxu0
    %v2507 = vrot.slane %v2503, 4
    %v2508 = vrot.slane %v2503, 5
    %v2511 = vadd.f32 %v1818, %v2507
    %v2512 = vadd.f32 %v1823, %v2508
    %v2513 = vxor.u32 %v2511, 2147483648
    %v2514 = vxor.u32 %v2512, 2147483648
    %v2515 = vmul.f32 %v2513, 1.442695
    %v2516 = vpow.pop %v2515
    %v2517 = vmul.f32 %v2514, 1.442695
    %v2518 = vpow.pop %v2517
    %v2519 = vadd.f32 %v2516, 1.0
    %v2520 = vadd.f32 %v2518, 1.0
    %v2521 = vrcp.pop %v2519
    %v2522 = vmul.f32 1.0, %v2521
    %v2523 = vrcp.pop %v2520
    %v2524 = vmul.f32 1.0, %v2523
    %2525 = vrot.lane.b32.xlu0 %v2507, 64
    %v2526 = vpop.permute.xlu0 %2525
    %2527 = vrot.lane.b32.xlu0 %v2508, 64
    %v2528 = vpop.permute.xlu0 %2527
    %v2531 = vmul.f32 %v2522, %v2526
    %v2532 = vmul.f32 %v2524, %v2528
    %2535 = vrot.lane.b32.xlu0 %v2531, 64
    %v2536 = vpop.permute.xlu0 %2535
    %2537 = vrot.lane.b32.xlu0 %v2532, 64
    %v2538 = vpop.permute.xlu0 %2537
    %v2541 = vadd.f32 %v1818, %v2536
    %v2542 = vadd.f32 %v1823, %v2538
    %v2543 = vtanh.pop %v2541
    %v2544 = vtanh.pop %v2542
    %v2545 = vsub.f32 1.0, %v2522
    %v2546 = vsub.f32 1.0, %v2524
    %2549 = vrot.lane.b32.xlu0 %v2543, 96
    %v2550 = vpop.permute.xlu0 %2549
    %2551 = vrot.lane.b32.xlu0 %v2544, 96
    %v2552 = vpop.permute.xlu0 %2551
    %v2555 = vmul.f32 %v2545, %v2550
    %v2556 = vmul.f32 %v2546, %v2552
    %v2557 = vrot.slane %v2414, 7
    %v2558 = vrot.slane %v2415, 7
    %v2561 = vmul.f32 %v2522, %v2557
    %v2562 = vmul.f32 %v2524, %v2558
    %v2563 = vadd.f32 %v2555, %v2561
    %v2564 = vadd.f32 %v2556, %v2562
    %vm2565 = vcmp.eq.s32.totalorder %v1838, 5
    %v2566 = vlaneseq
    %v2567 = vshrl.u32 %v2566, 7
    %v2568 = vsub.s32 4, %v2567
    %v2569 = vrot.slane %v2563, %v2568
    %v2570 = vlaneseq
    %v2571 = vshrl.u32 %v2570, 7
    %v2572 = vsub.s32 4, %v2571
    %v2573 = vrot.slane %v2564, %v2572
    %v2574 = vsel %vm2565, %v2569, %v2425
    %v2575 = vsel %vm2565, %v2573, %v2426
    %v2578 = vrot.slane %v2563, 4
    %v2579 = vrot.slane %v2564, 3
    %v2580 = vsel %vm542, %v2579, %v2578
    %2581 = vrot.lane.b32.xlu0 %v2580, 96
    %v2582 = vpop.permute.xlu0 %2581
    %v2583 = vsel %vm298, %v2582, 0
    %2585 = vmatprep.subr.mxu0 0.0
    %2586 = vmatpush1.msra.mxu0 0.0
    %2587 = vmatprep.subr.mxu0 0.0
    %2588 = vmatpush1.msra.mxu0 0.0
    %2589 = vmatprep.subr.mxu0 0.0
    %2590 = vmatpush1.msra.mxu0 0.0
    %2591 = vmatprep.subr.mxu0 0.0
    %2592 = vmatpush1.msra.mxu0 0.0
    %2593 = vmatprep.subr.mxu0 0.0
    %2594 = vmatpush1.msra.mxu0 0.0
    %2595 = vmatprep.subr.mxu0 0.0
    %2596 = vmatpush1.msra.mxu0 0.0
    %2597 = vmatprep.subr.mxu0 0.0
    %2598 = vmatpush1.msra.mxu0 0.0
    %2599 = vmatprep.subr.mxu0 0.0
    %2600 = vmatpush1.msra.mxu0 0.0
    %2601 = vmatprep.subr.mxu0 0.0
    %2602 = vmatpush1.msra.mxu0 0.0
    %2603 = vmatprep.subr.mxu0 0.0
    %2604 = vmatpush1.msra.mxu0 0.0
    %2605 = vmatprep.subr.mxu0 0.0
    %2606 = vmatpush1.msra.mxu0 0.0
    %2607 = vmatprep.subr.mxu0 0.0
    %2608 = vmatpush1.msra.mxu0 0.0
    %2609 = vmatprep.subr.mxu0 0.0
    %2610 = vmatpush1.msra.mxu0 %v1829
    %2611 = vmatprep.subr.mxu0 0.0
    %2612 = vmatpush1.msra.mxu0 %v1828
    %2613 = vmatprep.subr.mxu0 0.0
    %2614 = vmatpush1.msra.mxu0 %v1827
    %2615 = vmatprep.subr.mxu0 0.0
    %2616 = vmatpush1.msra.mxu0 %v1826
    %2617 = vmatprep.subr.mxu0 0.0
    %2618 = vmatpush2.msra.mxu0 0.0
    %2619 = vmatprep.subr.mxu0 0.0
    %2620 = vmatpush2.msra.mxu0 0.0
    %2621 = vmatprep.subr.mxu0 0.0
    %2622 = vmatpush2.msra.mxu0 0.0
    %2623 = vmatprep.subr.mxu0 0.0
    %2624 = vmatpush2.msra.mxu0 0.0
    %2625 = vmatprep.subr.mxu0 0.0
    %2626 = vmatpush2.msra.mxu0 0.0
    %2627 = vmatprep.subr.mxu0 0.0
    %2628 = vmatpush2.msra.mxu0 0.0
    %2629 = vmatprep.subr.mxu0 0.0
    %2630 = vmatpush2.msra.mxu0 0.0
    %2631 = vmatprep.subr.mxu0 0.0
    %2632 = vmatpush2.msra.mxu0 0.0
    %2633 = vmatprep.subr.mxu0 0.0
    %2634 = vmatpush2.msra.mxu0 0.0
    %2635 = vmatprep.subr.mxu0 0.0
    %2636 = vmatpush2.msra.mxu0 0.0
    %2637 = vmatprep.subr.mxu0 0.0
    %2638 = vmatpush2.msra.mxu0 0.0
    %2639 = vmatprep.subr.mxu0 0.0
    %2640 = vmatpush2.msra.mxu0 0.0
    %2641 = vmatprep.subr.mxu0 0.0
    %2642 = vmatpush2.msra.mxu0 0.0
    %2643 = vmatprep.subr.mxu0 0.0
    %2644 = vmatpush2.msra.mxu0 0.0
    %2645 = vmatprep.subr.mxu0 0.0
    %2646 = vmatpush2.msra.mxu0 0.0
    %2647 = vmatprep.subr.mxu0 0.0
    %2648 = vmatpush2.msra.mxu0 0.0
    %2649 = vmatprep.mubr.f32.mxu0 0.0
    %2650 = vmatmul.mubr.f32.gmra.mxu0 %v2583
    %v2651 = vpop.f32.mrf.mxu0
    %v2652 = vadd.f32 %v1835, %v2651
    %v2653 = vpop.f32.mrf.mxu0
    %2654 = vdwg.mxu0
    %v2656 = vrot.slane %v2652, 3
    %v2657 = vrot.slane %v2652, 4
    %v2660 = vadd.f32 %v1818, %v2656
    %v2661 = vadd.f32 %v1823, %v2657
    %v2662 = vxor.u32 %v2660, 2147483648
    %v2663 = vxor.u32 %v2661, 2147483648
    %v2664 = vmul.f32 %v2662, 1.442695
    %v2665 = vpow.pop %v2664
    %v2666 = vmul.f32 %v2663, 1.442695
    %v2667 = vpow.pop %v2666
    %v2668 = vadd.f32 %v2665, 1.0
    %v2669 = vadd.f32 %v2667, 1.0
    %v2670 = vrcp.pop %v2668
    %v2671 = vmul.f32 1.0, %v2670
    %v2672 = vrcp.pop %v2669
    %v2673 = vmul.f32 1.0, %v2672
    %2674 = vrot.lane.b32.xlu0 %v2656, 64
    %v2675 = vpop.permute.xlu0 %2674
    %2676 = vrot.lane.b32.xlu0 %v2657, 64
    %v2677 = vpop.permute.xlu0 %2676
    %v2680 = vmul.f32 %v2671, %v2675
    %v2681 = vmul.f32 %v2673, %v2677
    %2684 = vrot.lane.b32.xlu0 %v2680, 64
    %v2685 = vpop.permute.xlu0 %2684
    %2686 = vrot.lane.b32.xlu0 %v2681, 64
    %v2687 = vpop.permute.xlu0 %2686
    %v2690 = vadd.f32 %v1818, %v2685
    %v2691 = vadd.f32 %v1823, %v2687
    %v2692 = vtanh.pop %v2690
    %v2693 = vtanh.pop %v2691
    %v2694 = vsub.f32 1.0, %v2671
    %v2695 = vsub.f32 1.0, %v2673
    %2698 = vrot.lane.b32.xlu0 %v2692, 96
    %v2699 = vpop.permute.xlu0 %2698
    %2700 = vrot.lane.b32.xlu0 %v2693, 96
    %v2701 = vpop.permute.xlu0 %2700
    %v2704 = vmul.f32 %v2694, %v2699
    %v2705 = vmul.f32 %v2695, %v2701
    %v2706 = vrot.slane %v2563, 7
    %v2707 = vrot.slane %v2564, 7
    %v2710 = vmul.f32 %v2671, %v2706
    %v2711 = vmul.f32 %v2673, %v2707
    %v2712 = vadd.f32 %v2704, %v2710
    %v2713 = vadd.f32 %v2705, %v2711
    %vm2714 = vcmp.eq.s32.totalorder %v1838, 6
    %v2715 = vlaneseq
    %v2716 = vshrl.u32 %v2715, 7
    %v2717 = vsub.s32 5, %v2716
    %v2718 = vrot.slane %v2712, %v2717
    %v2719 = vlaneseq
    %v2720 = vshrl.u32 %v2719, 7
    %v2721 = vsub.s32 5, %v2720
    %v2722 = vrot.slane %v2713, %v2721
    %v2723 = vsel %vm2714, %v2718, %v2574
    %v2724 = vsel %vm2714, %v2722, %v2575
    %v2727 = vrot.slane %v2712, 5
    %v2728 = vrot.slane %v2713, 4
    %v2729 = vsel %vm542, %v2728, %v2727
    %2730 = vrot.lane.b32.xlu0 %v2729, 96
    %v2731 = vpop.permute.xlu0 %2730
    %v2732 = vsel %vm298, %v2731, 0
    %2734 = vmatprep.subr.mxu0 0.0
    %2735 = vmatpush1.msra.mxu0 0.0
    %2736 = vmatprep.subr.mxu0 0.0
    %2737 = vmatpush1.msra.mxu0 0.0
    %2738 = vmatprep.subr.mxu0 0.0
    %2739 = vmatpush1.msra.mxu0 0.0
    %2740 = vmatprep.subr.mxu0 0.0
    %2741 = vmatpush1.msra.mxu0 0.0
    %2742 = vmatprep.subr.mxu0 0.0
    %2743 = vmatpush1.msra.mxu0 0.0
    %2744 = vmatprep.subr.mxu0 0.0
    %2745 = vmatpush1.msra.mxu0 0.0
    %2746 = vmatprep.subr.mxu0 0.0
    %2747 = vmatpush1.msra.mxu0 0.0
    %2748 = vmatprep.subr.mxu0 0.0
    %2749 = vmatpush1.msra.mxu0 0.0
    %2750 = vmatprep.subr.mxu0 0.0
    %2751 = vmatpush1.msra.mxu0 0.0
    %2752 = vmatprep.subr.mxu0 0.0
    %2753 = vmatpush1.msra.mxu0 0.0
    %2754 = vmatprep.subr.mxu0 0.0
    %2755 = vmatpush1.msra.mxu0 0.0
    %2756 = vmatprep.subr.mxu0 0.0
    %2757 = vmatpush1.msra.mxu0 0.0
    %2758 = vmatprep.subr.mxu0 0.0
    %2759 = vmatpush1.msra.mxu0 %v1829
    %2760 = vmatprep.subr.mxu0 0.0
    %2761 = vmatpush1.msra.mxu0 %v1828
    %2762 = vmatprep.subr.mxu0 0.0
    %2763 = vmatpush1.msra.mxu0 %v1827
    %2764 = vmatprep.subr.mxu0 0.0
    %2765 = vmatpush1.msra.mxu0 %v1826
    %2766 = vmatprep.subr.mxu0 0.0
    %2767 = vmatpush2.msra.mxu0 0.0
    %2768 = vmatprep.subr.mxu0 0.0
    %2769 = vmatpush2.msra.mxu0 0.0
    %2770 = vmatprep.subr.mxu0 0.0
    %2771 = vmatpush2.msra.mxu0 0.0
    %2772 = vmatprep.subr.mxu0 0.0
    %2773 = vmatpush2.msra.mxu0 0.0
    %2774 = vmatprep.subr.mxu0 0.0
    %2775 = vmatpush2.msra.mxu0 0.0
    %2776 = vmatprep.subr.mxu0 0.0
    %2777 = vmatpush2.msra.mxu0 0.0
    %2778 = vmatprep.subr.mxu0 0.0
    %2779 = vmatpush2.msra.mxu0 0.0
    %2780 = vmatprep.subr.mxu0 0.0
    %2781 = vmatpush2.msra.mxu0 0.0
    %2782 = vmatprep.subr.mxu0 0.0
    %2783 = vmatpush2.msra.mxu0 0.0
    %2784 = vmatprep.subr.mxu0 0.0
    %2785 = vmatpush2.msra.mxu0 0.0
    %2786 = vmatprep.subr.mxu0 0.0
    %2787 = vmatpush2.msra.mxu0 0.0
    %2788 = vmatprep.subr.mxu0 0.0
    %2789 = vmatpush2.msra.mxu0 0.0
    %2790 = vmatprep.subr.mxu0 0.0
    %2791 = vmatpush2.msra.mxu0 0.0
    %2792 = vmatprep.subr.mxu0 0.0
    %2793 = vmatpush2.msra.mxu0 0.0
    %2794 = vmatprep.subr.mxu0 0.0
    %2795 = vmatpush2.msra.mxu0 0.0
    %2796 = vmatprep.subr.mxu0 0.0
    %2797 = vmatpush2.msra.mxu0 0.0
    %2798 = vmatprep.mubr.f32.mxu0 0.0
    %2799 = vmatmul.mubr.f32.gmra.mxu0 %v2732
    %v2800 = vpop.f32.mrf.mxu0
    %v2801 = vadd.f32 %v1835, %v2800
    %v2802 = vpop.f32.mrf.mxu0
    %2803 = vdwg.mxu0
    %v2805 = vrot.slane %v2801, 2
    %v2806 = vrot.slane %v2801, 3
    %v2809 = vadd.f32 %v1818, %v2805
    %v2810 = vadd.f32 %v1823, %v2806
    %v2811 = vxor.u32 %v2809, 2147483648
    %v2812 = vxor.u32 %v2810, 2147483648
    %v2813 = vmul.f32 %v2811, 1.442695
    %v2814 = vpow.pop %v2813
    %v2815 = vmul.f32 %v2812, 1.442695
    %v2816 = vpow.pop %v2815
    %v2817 = vadd.f32 %v2814, 1.0
    %v2818 = vadd.f32 %v2816, 1.0
    %v2819 = vrcp.pop %v2817
    %v2820 = vmul.f32 1.0, %v2819
    %v2821 = vrcp.pop %v2818
    %v2822 = vmul.f32 1.0, %v2821
    %2823 = vrot.lane.b32.xlu0 %v2805, 64
    %v2824 = vpop.permute.xlu0 %2823
    %2825 = vrot.lane.b32.xlu0 %v2806, 64
    %v2826 = vpop.permute.xlu0 %2825
    %v2829 = vmul.f32 %v2820, %v2824
    %v2830 = vmul.f32 %v2822, %v2826
    %2833 = vrot.lane.b32.xlu0 %v2829, 64
    %v2834 = vpop.permute.xlu0 %2833
    %2835 = vrot.lane.b32.xlu0 %v2830, 64
    %v2836 = vpop.permute.xlu0 %2835
    %v2839 = vadd.f32 %v1818, %v2834
    %v2840 = vadd.f32 %v1823, %v2836
    %v2841 = vtanh.pop %v2839
    %v2842 = vtanh.pop %v2840
    %v2843 = vsub.f32 1.0, %v2820
    %v2844 = vsub.f32 1.0, %v2822
    %2847 = vrot.lane.b32.xlu0 %v2841, 96
    %v2848 = vpop.permute.xlu0 %2847
    %2849 = vrot.lane.b32.xlu0 %v2842, 96
    %v2850 = vpop.permute.xlu0 %2849
    %v2853 = vmul.f32 %v2843, %v2848
    %v2854 = vmul.f32 %v2844, %v2850
    %v2855 = vrot.slane %v2712, 7
    %v2856 = vrot.slane %v2713, 7
    %v2859 = vmul.f32 %v2820, %v2855
    %v2860 = vmul.f32 %v2822, %v2856
    %v2861 = vadd.f32 %v2853, %v2859
    %v2862 = vadd.f32 %v2854, %v2860
    %vm2863 = vcmp.eq.s32.totalorder %v1838, 7
    %v2864 = vlaneseq
    %v2865 = vshrl.u32 %v2864, 7
    %v2866 = vsub.s32 6, %v2865
    %v2867 = vrot.slane %v2861, %v2866
    %v2868 = vlaneseq
    %v2869 = vshrl.u32 %v2868, 7
    %v2870 = vsub.s32 6, %v2869
    %v2871 = vrot.slane %v2862, %v2870
    %v2872 = vsel %vm2863, %v2867, %v2723
    %v2873 = vsel %vm2863, %v2871, %v2724
    %v2874 = vld [vmem:[%s14] sm:$0xff]
    %v2875 = vld [vmem:[%s14 + $0x8] sm:$0xff]
    %v2876 = vld [vmem:[%s14 + $0x10] sm:$0xff]
    %v2877 = vld [vmem:[%s14 + $0x18] sm:$0xff]
    %v2878 = vld [vmem:[%s15] sm:$0x1]
    %v2880 = vlaneseq
    %v2881 = vshrl.u32 %v2880, 7
    %v2882 = vsub.s32 0, %v2881
    %v2883 = vrot.slane %v2878, %v2882
    %2887 = vrot.lane.b32.xlu0 %v2872, 96
    %v2888 = vpop.permute.xlu0 %2887
    %2889 = vrot.lane.b32.xlu0 %v2873, 96
    %v2890 = vpop.permute.xlu0 %2889
    %v2891 = vsel %vm298, %v2888, 0
    %v2893 = vsel %vm298, %v2890, 0
    %2895 = vmatprep.subr.mxu0 0.0
    %2896 = vmatpush1.msra.mxu0 0.0
    %2897 = vmatprep.subr.mxu0 0.0
    %2898 = vmatpush1.msra.mxu0 0.0
    %2899 = vmatprep.subr.mxu0 0.0
    %2900 = vmatpush1.msra.mxu0 0.0
    %2901 = vmatprep.subr.mxu0 0.0
    %2902 = vmatpush1.msra.mxu0 0.0
    %2903 = vmatprep.subr.mxu0 0.0
    %2904 = vmatpush1.msra.mxu0 0.0
    %2905 = vmatprep.subr.mxu0 0.0
    %2906 = vmatpush1.msra.mxu0 0.0
    %2907 = vmatprep.subr.mxu0 0.0
    %2908 = vmatpush1.msra.mxu0 0.0
    %2909 = vmatprep.subr.mxu0 0.0
    %2910 = vmatpush1.msra.mxu0 0.0
    %2911 = vmatprep.subr.mxu0 0.0
    %2912 = vmatpush1.msra.mxu0 0.0
    %2913 = vmatprep.subr.mxu0 0.0
    %2914 = vmatpush1.msra.mxu0 0.0
    %2915 = vmatprep.subr.mxu0 0.0
    %2916 = vmatpush1.msra.mxu0 0.0
    %2917 = vmatprep.subr.mxu0 0.0
    %2918 = vmatpush1.msra.mxu0 0.0
    %2919 = vmatprep.subr.mxu0 0.0
    %2920 = vmatpush1.msra.mxu0 %v2877
    %2921 = vmatprep.subr.mxu0 0.0
    %2922 = vmatpush1.msra.mxu0 %v2876
    %2923 = vmatprep.subr.mxu0 0.0
    %2924 = vmatpush1.msra.mxu0 %v2875
    %2925 = vmatprep.subr.mxu0 0.0
    %2926 = vmatpush1.msra.mxu0 %v2874
    %2927 = vmatprep.subr.mxu0 0.0
    %2928 = vmatpush2.msra.mxu0 0.0
    %2929 = vmatprep.subr.mxu0 0.0
    %2930 = vmatpush2.msra.mxu0 0.0
    %2931 = vmatprep.subr.mxu0 0.0
    %2932 = vmatpush2.msra.mxu0 0.0
    %2933 = vmatprep.subr.mxu0 0.0
    %2934 = vmatpush2.msra.mxu0 0.0
    %2935 = vmatprep.subr.mxu0 0.0
    %2936 = vmatpush2.msra.mxu0 0.0
    %2937 = vmatprep.subr.mxu0 0.0
    %2938 = vmatpush2.msra.mxu0 0.0
    %2939 = vmatprep.subr.mxu0 0.0
    %2940 = vmatpush2.msra.mxu0 0.0
    %2941 = vmatprep.subr.mxu0 0.0
    %2942 = vmatpush2.msra.mxu0 0.0
    %2943 = vmatprep.subr.mxu0 0.0
    %2944 = vmatpush2.msra.mxu0 0.0
    %2945 = vmatprep.subr.mxu0 0.0
    %2946 = vmatpush2.msra.mxu0 0.0
    %2947 = vmatprep.subr.mxu0 0.0
    %2948 = vmatpush2.msra.mxu0 0.0
    %2949 = vmatprep.subr.mxu0 0.0
    %2950 = vmatpush2.msra.mxu0 0.0
    %2951 = vmatprep.subr.mxu0 0.0
    %2952 = vmatpush2.msra.mxu0 0.0
    %2953 = vmatprep.subr.mxu0 0.0
    %2954 = vmatpush2.msra.mxu0 0.0
    %2955 = vmatprep.subr.mxu0 0.0
    %2956 = vmatpush2.msra.mxu0 0.0
    %2957 = vmatprep.subr.mxu0 0.0
    %2958 = vmatpush2.msra.mxu0 0.0
    %2959 = vmatprep.mubr.f32.mxu0 0.0
    %2960 = vmatmul.mubr.f32.gmra.mxu0 %v2891
    %v2961 = vpop.f32.mrf.mxu0
    %v2962 = vadd.f32 %v2883, %v2961
    %v2963 = vpop.f32.mrf.mxu0
    %2964 = vmatprep.mubr.f32.mxu0 0.0
    %2965 = vmatmul.mubr.f32.gmra.mxu0 %v2893
    %v2966 = vpop.f32.mrf.mxu0
    %v2967 = vadd.f32 %v2883, %v2966
    %v2968 = vpop.f32.mrf.mxu0
    %2969 = vdwg.mxu0
    %vm2970 = vcmp.eq.s32.totalorder %v196, 0
    %v2971 = vsel %vm2970, 1, 0
    %v2972 = vcvt.s32.f32 %v2971
    %v2973 = vadd.f32 %v2972, 1e-09
    %v2974 = vlog2.pop %v2973
    %v2975 = vmul.f32 %v2974, 0.6931472
    %vm2976 = vcmp.eq.s32.totalorder %v1838, 0
    %v2979 = vunpack.c.l.s4 1966171168
    %v2980 = vunpack.c.0.s8 %v2979
    %v2981 = vlaneseq
    %v2982 = vshrl.u32 %v2981, 7
    %v2983 = vsub.s32 %v2980, %v2982
    %v2984 = vrot.slane %v2975, %v2983
    %v2985 = vcombine.high %v2984, %v2984
    %v2987 = vunpack.c.l.s4 1966171168
    %v2988 = vunpack.c.0.s8 %v2987
    %v2989 = vlaneseq
    %v2990 = vshrl.u32 %v2989, 7
    %v2991 = vsub.s32 %v2988, %v2990
    %v2992 = vrot.slane %v2984, %v2991
    %v2994 = vunpack.c.l.s4 1966171168
    %v2995 = vunpack.c.0.s8 %v2994
    %v2996 = vlaneseq
    %v2997 = vshrl.u32 %v2996, 7
    %v2998 = vsub.s32 %v2995, %v2997
    %v2999 = vrot.slane %v2985, %v2998
    %v3000 = vlaneseq
    %v3001 = vshrl.u32 %v3000, 7
    %v3002 = vsub.s32 0, %v3001
    %v3003 = vrot.slane %v2992, %v3002
    %v3004 = vlaneseq
    %v3005 = vshrl.u32 %v3004, 7
    %v3006 = vsub.s32 0, %v3005
    %v3007 = vrot.slane %v2999, %v3006
    %v3010 = vsel %vm2976, %v3003, %v2962
    %v3011 = vsel %vm2976, %v3007, %v2967
    %3012 = vst.msk [vmem:[#allocation19] sm:$0xff] %vm205, %v3010
    %3013 = vst.msk [vmem:[#allocation19 + $0x8] sm:$0xff] %vm205, %v3011
    // Predicated region
    $region106: #{forward.1} parent=1 // pred_check
      _
    $region107: #{forward.1} parent=1 // pred_check_branch
      %3015 = sbr.rel (0) target = $region109
    $region108: #{forward.1} parent=1 // pred_region
      %s3017 = ssub.s32 256, 256
      %3018 = vsyncadd [#allocation4], %s3017
      %s3019 = sshll.u32 [#allocation19], 4
      %s3020 = int_to_ptr.vmem [resolvable:$true] %s3019
      %3025 = dma.vmem_to_hbm [thread:$0]  %s3020, 256, %s16, [#allocation4], 128, 128, 8
    $region109: #{forward.1} parent=1 // pred_fallthru
      _
    // Predicated region
    $region110: #{forward.1} parent=1 // pred_check
      _
    $region111: #{forward.1} parent=1 // pred_check_branch
      %3027 = sbr.rel (0) target = $region113
    $region112: #{forward.1} parent=1 // pred_region
      %3028 = dma.done [#allocation4], 256
    $region113: #{forward.1} parent=1 // pred_fallthru
      _
    %3029 = vsyncpa [#allocation3], 1
    %3030 = vsyncpa [#allocation6], 1
    %3031 = vsyncpa [#allocation9], 1
    %3032 = vsyncpa [#allocation12], 1
    %3033 = vsyncpa [#allocation15], 1
    %3034 = vsyncpa [#allocation18], 1
    %3035 = vsyncpa [#allocation4], 1

</llo_original>
